<compile_context>
chip_gen: v7x
topology: tpu7x:2x2x1
jax: 0.10.0
libtpu: 0.0.40
codegen_flags: <defaults>
</compile_context>

<pallas_src>
import numpy as np
import jax
import jax.numpy as jnp
from jax.experimental import pallas as pl
from jax.experimental.pallas import tpu as pltpu


# ----------------------------- fused Pallas kernel ---------------------------

def encoder_kernel(x_ref, whw_ref, bhw_ref, wih_ref, whh_ref, b_ref,
                   h0_ref, c0_ref, hn_ref, cn_ref, fin_ref):
    """Fused Highway (2 layers) + wavefronted multi-layer LSTM (gate order i,f,g,o).

    x_ref   : [S*Bp, E]   time-major, batch padded to Bp=8; rows ordered (t, b)
    whw_ref : [HW, E, 3E] concatenated highway weights (cols = gate|nonlin|lin), bf16
    bhw_ref : [HW, 1, 3E] concatenated highway biases, f32
    wih_ref : [L, E, 4H]  pre-transposed LSTM input weights, bf16 (E == H)
    whh_ref : [L, H, 4H]  pre-transposed LSTM hidden weights, bf16
    b_ref   : [L, 1, 4H]  combined b_ih + b_hh, f32
    h0/c0   : [L, Bp, H]  initial state (padded rows are zeros), f32
    hn/cn   : [L, B, H]   final state outputs (unpadded), f32
    fin_ref : [1, H]      c_n of last layer, batch row 0
    """
    SBp, E = x_ref.shape
    L, Bp, H = h0_ref.shape
    S = SBp // Bp
    HW = whw_ref.shape[0]
    B = hn_ref.shape[1]

    # ---------------- Highway: x = g*relu(Wn x+bn) + (1-g)*(Wl x+bl) ----------
    x = x_ref[...]                                            # [S*Bp, E] f32
    for l in range(HW):                                       # static unroll (2)
        y = jnp.dot(x.astype(jnp.bfloat16), whw_ref[l],
                    preferred_element_type=jnp.float32) + bhw_ref[l]
        gate = jax.nn.sigmoid(y[:, 0:E])
        nonlin = jnp.maximum(y[:, E:2 * E], 0.0)
        lin = y[:, 2 * E:3 * E]
        x = gate * nonlin + (1.0 - gate) * lin                # [S*Bp, E] f32

    # ---------------- LSTM: hoisted layer-0 projection (off the serial chain) -
    gates_in0 = (jnp.dot(x.astype(jnp.bfloat16), wih_ref[0],
                         preferred_element_type=jnp.float32)
                 + b_ref[0])                                  # [S*Bp, 4H] f32

    def cell(gates, c_prev):
        sg = jax.nn.sigmoid(gates)                            # one EUP pass, full 4H width
        tg = jnp.tanh(gates)                                  # one EUP pass, full 4H width
        i_g = sg[:, 0:H]
        f_g = sg[:, H:2 * H]
        g_g = tg[:, 2 * H:3 * H]
        o_g = sg[:, 3 * H:4 * H]
        c_new = f_g * c_prev + i_g * g_g                      # f32 state
        h_new = o_g * jnp.tanh(c_new)
        return h_new, c_new

    h = [h0_ref[l] for l in range(L)]                         # [Bp, H] f32 each
    c = [c0_ref[l] for l in range(L)]
    stage = [None] * L        # stage[l] = layer l-1 output at the timestep layer l consumes next

    # Wavefront: wave w runs layer l at timestep t = w - l; dependent chain is
    # S + L - 1 waves instead of S * L sequential cell updates.
    for w in range(S + L - 1):                                # static unroll (9)
        for l in range(L - 1, -1, -1):                        # high->low: read stage before overwrite
            t = w - l
            if 0 <= t < S:
                if l == 0:
                    gi = gates_in0[t * Bp:(t + 1) * Bp, :]    # sublane-aligned row block
                else:
                    gi = (jnp.dot(stage[l].astype(jnp.bfloat16), wih_ref[l],
                                  preferred_element_type=jnp.float32)
                          + b_ref[l])
                gates = gi + jnp.dot(h[l].astype(jnp.bfloat16), whh_ref[l],
                                     preferred_element_type=jnp.float32)
                h[l], c[l] = cell(gates, c[l])
                if l + 1 < L:
                    stage[l + 1] = h[l]

    # ---------------- outputs (unpadded rows only) -----------------------------
    for l in range(L):
        hn_ref[l] = h[l][:B, :]
        cn_ref[l] = c[l][:B, :]
    fin_ref[...] = c[L - 1][0:1, :]                           # last layer cell state, batch 0


# ----------------------------- pallas_call wrapper ---------------------------

def encoder_forward(x, state, hw_params, lstm_params):
    """Mirrors Encoder.forward(input, State)."""
    B, S, E = x.shape
    h0, c0 = state
    L, _, H = h0.shape
    whw, bhw = hw_params
    wih, whh, bias = lstm_params
    assert E == H  # stacked per-layer LSTM input weights require E == H

    # Pad batch to the 8-sublane granularity; padded rows are zeros and are
    # never read back (row-wise math keeps real rows exact).
    Bp = ((B + 7) // 8) * 8
    pad_b = Bp - B

    x_tm = jnp.transpose(x, (1, 0, 2))                        # [S, B, E]
    if pad_b:
        x_tm = jnp.pad(x_tm, ((0, 0), (0, pad_b), (0, 0)))
        h0p = jnp.pad(h0, ((0, 0), (0, pad_b), (0, 0)))
        c0p = jnp.pad(c0, ((0, 0), (0, pad_b), (0, 0)))
    else:
        h0p, c0p = h0, c0
    x_tm = x_tm.reshape(S * Bp, E)                            # rows ordered (t, b_pad)

    # MXU operands in bf16 (f32 accumulate inside the kernel); biases/state f32.
    whw_bf = whw.astype(jnp.bfloat16)
    wih_bf = wih.astype(jnp.bfloat16)
    whh_bf = whh.astype(jnp.bfloat16)

    args = (x_tm, whw_bf, bhw, wih_bf, whh_bf, bias, h0p, c0p)
    vmem = lambda: pl.BlockSpec(memory_space=pltpu.MemorySpace.VMEM)

    h_n, c_n, fin = pl.pallas_call(
        encoder_kernel,
        out_shape=(jax.ShapeDtypeStruct((L, B, H), jnp.float32),
                   jax.ShapeDtypeStruct((L, B, H), jnp.float32),
                   jax.ShapeDtypeStruct((1, H), jnp.float32)),
        in_specs=[vmem() for _ in args],
        out_specs=(vmem(), vmem(), vmem()),
    )(*args)

    transfer_state_1 = h_n
    transfer_state_2 = c_n
    final_state = fin.reshape(H)                              # metadata-only reshape
    return final_state, transfer_state_1, transfer_state_2


# ----------------------------- pure-JAX reference ----------------------------

def ref_highway(x, wn, bn, wl, bl, wg, bg):
    for l in range(wn.shape[0]):
        gate = jax.nn.sigmoid(x @ wg[l] + bg[l])
        nonlin = jnp.maximum(x @ wn[l] + bn[l], 0.0)
        lin = x @ wl[l] + bl[l]
        x = gate * nonlin + (1.0 - gate) * lin
    return x


def ref_lstm(x, h0, c0, wih, whh, b):
    B, S, E = x.shape
    L, _, H = h0.shape
    layer_in = x
    hs, cs = [], []
    for l in range(L):
        h, c = h0[l], c0[l]
        outs = []
        for t in range(S):
            gates = layer_in[:, t, :] @ wih[l] + h @ whh[l] + b[l]
            i_g = jax.nn.sigmoid(gates[:, :H])
            f_g = jax.nn.sigmoid(gates[:, H:2 * H])
            g_g = jnp.tanh(gates[:, 2 * H:3 * H])
            o_g = jax.nn.sigmoid(gates[:, 3 * H:])
            c = f_g * c + i_g * g_g
            h = o_g * jnp.tanh(c)
            outs.append(h)
        layer_in = jnp.stack(outs, axis=1)
        hs.append(h)
        cs.append(c)
    return jnp.stack(hs), jnp.stack(cs)


# ----------------------------- main ------------------------------------------

if __name__ == "__main__":
    # params: word_embed_size=24, sum_depth=8 -> embed_size E=32
    #         encoder_rnn_size H=32, encoder_num_layers L=2
    B, S = 2, 8
    word_embed_size, sum_depth = 24, 8
    E = word_embed_size + sum_depth
    H = 32
    L = 2
    HW_LAYERS = 2
    assert E == H

    key = jax.random.PRNGKey(0)
    ks = jax.random.split(key, 16)
    sc = jnp.float32(0.1)

    # Highway params (weights [layer, in, out], biases [layer, 1, E])
    wn = jax.random.normal(ks[0], (HW_LAYERS, E, E), jnp.float32) * sc
    bn = jax.random.normal(ks[1], (HW_LAYERS, 1, E), jnp.float32) * sc
    wl = jax.random.normal(ks[2], (HW_LAYERS, E, E), jnp.float32) * sc
    bl = jax.random.normal(ks[3], (HW_LAYERS, 1, E), jnp.float32) * sc
    wg = jax.random.normal(ks[4], (HW_LAYERS, E, E), jnp.float32) * sc
    bg = jax.random.normal(ks[5], (HW_LAYERS, 1, E), jnp.float32) * sc

    # Concatenated highway weights for the kernel: columns = [gate | nonlin | lin]
    whw = jnp.concatenate([wg, wn, wl], axis=-1)              # [HW, E, 3E]
    bhw = jnp.concatenate([bg, bn, bl], axis=-1)              # [HW, 1, 3E]
    hw_params = (whw, bhw)

    # LSTM params (pre-transposed; bias = b_ih + b_hh combined; gate order i,f,g,o)
    wih = jax.random.normal(ks[6], (L, E, 4 * H), jnp.float32) * sc
    whh = jax.random.normal(ks[7], (L, H, 4 * H), jnp.float32) * sc
    bias = jax.random.normal(ks[8], (L, 1, 4 * H), jnp.float32) * sc
    lstm_params = (wih, whh, bias)

    # Inputs: input [B, S, E] and State = (h0, c0), each [L, B, H]
    x = jax.random.normal(ks[10], (B, S, E), jnp.float32)
    h0 = jax.random.normal(ks[11], (L, B, H), jnp.float32) * sc
    c0 = jax.random.normal(ks[12], (L, B, H), jnp.float32) * sc

    final_state, ts1, ts2 = encoder_forward(x, (h0, c0), hw_params, lstm_params)
    jax.block_until_ready((final_state, ts1, ts2))

    # Reference check (pure f32 JAX, un-fused, un-concatenated weights).
    # Kernel uses bf16 MXU operands with f32 accumulation -> 2e-2 tolerance.
    xr = ref_highway(x.reshape(-1, E), wn, bn, wl, bl, wg, bg).reshape(B, S, E)
    hn_ref, cn_ref = ref_lstm(xr, h0, c0, wih, whh, bias)
    fin_ref = cn_ref[-1][0]

    np.testing.assert_allclose(np.asarray(ts1), np.asarray(hn_ref), rtol=2e-2, atol=2e-2)
    np.testing.assert_allclose(np.asarray(ts2), np.asarray(cn_ref), rtol=2e-2, atol=2e-2)
    np.testing.assert_allclose(np.asarray(final_state), np.asarray(fin_ref), rtol=2e-2, atol=2e-2)
    assert final_state.shape == (H,)
    assert ts1.shape == (L, B, H) and ts2.shape == (L, B, H)

    print("KERNEL_OK")
</pallas_src>

<mosaic_0001>
module attributes {stable_mosaic.version = 11 : i64} {
  func.func @encoder_kernel(%arg0: memref<64x32xf32, #tpu.memory_space<vmem>>, %arg1: memref<2x32x96xbf16, #tpu.memory_space<vmem>>, %arg2: memref<2x1x96xf32, #tpu.memory_space<vmem>>, %arg3: memref<2x32x128xbf16, #tpu.memory_space<vmem>>, %arg4: memref<2x32x128xbf16, #tpu.memory_space<vmem>>, %arg5: memref<2x1x128xf32, #tpu.memory_space<vmem>>, %arg6: memref<2x8x32xf32, #tpu.memory_space<vmem>>, %arg7: memref<2x8x32xf32, #tpu.memory_space<vmem>>, %arg8: memref<2x2x32xf32, #tpu.memory_space<vmem>>, %arg9: memref<2x2x32xf32, #tpu.memory_space<vmem>>, %arg10: memref<1x32xf32, #tpu.memory_space<vmem>>) attributes {dimension_semantics = [], scalar_prefetch = 0 : i64, scratch_operands = 0 : i64, tpu.core_type = #tpu.core_type<tc>} {
    %c0 = arith.constant 0 : index
    %c0_0 = arith.constant 0 : index
    %0 = vector.load %arg0[%c0, %c0_0] : memref<64x32xf32, #tpu.memory_space<vmem>>, vector<64x32xf32>
    %1 = arith.truncf %0 : vector<64x32xf32> to vector<64x32xbf16>
    %c0_1 = arith.constant 0 : index
    %c0_2 = arith.constant 0 : index
    %c0_3 = arith.constant 0 : index
    %2 = vector.load %arg1[%c0_1, %c0_2, %c0_3] : memref<2x32x96xbf16, #tpu.memory_space<vmem>>, vector<1x32x96xbf16>
    %3 = vector.shape_cast %2 : vector<1x32x96xbf16> to vector<32x96xbf16>
    %cst = arith.constant dense<0.000000e+00> : vector<64x96xf32>
    %4 = tpu.matmul %1, %3, %cst {dimension_numbers = #tpu.dot_dimension_numbers<[1], [0], [0], [1], [0, 0, 1, 1], [], []>} : vector<64x32xbf16>, vector<32x96xbf16>, vector<64x96xf32> -> vector<64x96xf32>
    %c0_4 = arith.constant 0 : index
    %c0_5 = arith.constant 0 : index
    %c0_6 = arith.constant 0 : index
    %5 = vector.load %arg2[%c0_4, %c0_5, %c0_6] : memref<2x1x96xf32, #tpu.memory_space<vmem>>, vector<1x1x96xf32>
    %6 = vector.shape_cast %5 : vector<1x1x96xf32> to vector<1x96xf32>
    %7 = vector.broadcast %6 : vector<1x96xf32> to vector<64x96xf32>
    %8 = arith.addf %4, %7 : vector<64x96xf32>
    %9 = vector.extract_strided_slice %8 {offsets = [0, 0], sizes = [64, 32], strides = [1, 1]} : vector<64x96xf32> to vector<64x32xf32>
    %10 = arith.negf %9 : vector<64x32xf32>
    %11 = math.exp %10 : vector<64x32xf32>
    %cst_7 = arith.constant 1.000000e+00 : f32
    %12 = vector.broadcast %cst_7 : f32 to vector<64x32xf32>
    %13 = arith.addf %12, %11 : vector<64x32xf32>
    %14 = arith.divf %12, %13 : vector<64x32xf32>
    %15 = vector.extract_strided_slice %8 {offsets = [0, 32], sizes = [64, 32], strides = [1, 1]} : vector<64x96xf32> to vector<64x32xf32>
    %cst_8 = arith.constant 0.000000e+00 : f32
    %16 = vector.broadcast %cst_8 : f32 to vector<64x32xf32>
    %17 = arith.maximumf %15, %16 : vector<64x32xf32>
    %18 = vector.extract_strided_slice %8 {offsets = [0, 64], sizes = [64, 32], strides = [1, 1]} : vector<64x96xf32> to vector<64x32xf32>
    %19 = arith.mulf %14, %17 : vector<64x32xf32>
    %cst_9 = arith.constant 1.000000e+00 : f32
    %20 = vector.broadcast %cst_9 : f32 to vector<64x32xf32>
    %21 = arith.subf %20, %14 : vector<64x32xf32>
    %22 = arith.mulf %21, %18 : vector<64x32xf32>
    %23 = arith.addf %19, %22 : vector<64x32xf32>
    %24 = arith.truncf %23 : vector<64x32xf32> to vector<64x32xbf16>
    %c1 = arith.constant 1 : index
    %c0_10 = arith.constant 0 : index
    %c0_11 = arith.constant 0 : index
    %25 = vector.load %arg1[%c1, %c0_10, %c0_11] : memref<2x32x96xbf16, #tpu.memory_space<vmem>>, vector<1x32x96xbf16>
    %26 = vector.shape_cast %25 : vector<1x32x96xbf16> to vector<32x96xbf16>
    %cst_12 = arith.constant dense<0.000000e+00> : vector<64x96xf32>
    %27 = tpu.matmul %24, %26, %cst_12 {dimension_numbers = #tpu.dot_dimension_numbers<[1], [0], [0], [1], [0, 0, 1, 1], [], []>} : vector<64x32xbf16>, vector<32x96xbf16>, vector<64x96xf32> -> vector<64x96xf32>
    %c1_13 = arith.constant 1 : index
    %c0_14 = arith.constant 0 : index
    %c0_15 = arith.constant 0 : index
    %28 = vector.load %arg2[%c1_13, %c0_14, %c0_15] : memref<2x1x96xf32, #tpu.memory_space<vmem>>, vector<1x1x96xf32>
    %29 = vector.shape_cast %28 : vector<1x1x96xf32> to vector<1x96xf32>
    %30 = vector.broadcast %29 : vector<1x96xf32> to vector<64x96xf32>
    %31 = arith.addf %27, %30 : vector<64x96xf32>
    %32 = vector.extract_strided_slice %31 {offsets = [0, 0], sizes = [64, 32], strides = [1, 1]} : vector<64x96xf32> to vector<64x32xf32>
    %33 = arith.negf %32 : vector<64x32xf32>
    %34 = math.exp %33 : vector<64x32xf32>
    %cst_16 = arith.constant 1.000000e+00 : f32
    %35 = vector.broadcast %cst_16 : f32 to vector<64x32xf32>
    %36 = arith.addf %35, %34 : vector<64x32xf32>
    %37 = arith.divf %35, %36 : vector<64x32xf32>
    %38 = vector.extract_strided_slice %31 {offsets = [0, 32], sizes = [64, 32], strides = [1, 1]} : vector<64x96xf32> to vector<64x32xf32>
    %cst_17 = arith.constant 0.000000e+00 : f32
    %39 = vector.broadcast %cst_17 : f32 to vector<64x32xf32>
    %40 = arith.maximumf %38, %39 : vector<64x32xf32>
    %41 = vector.extract_strided_slice %31 {offsets = [0, 64], sizes = [64, 32], strides = [1, 1]} : vector<64x96xf32> to vector<64x32xf32>
    %42 = arith.mulf %37, %40 : vector<64x32xf32>
    %cst_18 = arith.constant 1.000000e+00 : f32
    %43 = vector.broadcast %cst_18 : f32 to vector<64x32xf32>
    %44 = arith.subf %43, %37 : vector<64x32xf32>
    %45 = arith.mulf %44, %41 : vector<64x32xf32>
    %46 = arith.addf %42, %45 : vector<64x32xf32>
    %47 = arith.truncf %46 : vector<64x32xf32> to vector<64x32xbf16>
    %c0_19 = arith.constant 0 : index
    %c0_20 = arith.constant 0 : index
    %c0_21 = arith.constant 0 : index
    %48 = vector.load %arg3[%c0_19, %c0_20, %c0_21] : memref<2x32x128xbf16, #tpu.memory_space<vmem>>, vector<1x32x128xbf16>
    %49 = vector.shape_cast %48 : vector<1x32x128xbf16> to vector<32x128xbf16>
    %cst_22 = arith.constant dense<0.000000e+00> : vector<64x128xf32>
    %50 = tpu.matmul %47, %49, %cst_22 {dimension_numbers = #tpu.dot_dimension_numbers<[1], [0], [0], [1], [0, 0, 1, 1], [], []>} : vector<64x32xbf16>, vector<32x128xbf16>, vector<64x128xf32> -> vector<64x128xf32>
    %c0_23 = arith.constant 0 : index
    %c0_24 = arith.constant 0 : index
    %c0_25 = arith.constant 0 : index
    %51 = vector.load %arg5[%c0_23, %c0_24, %c0_25] : memref<2x1x128xf32, #tpu.memory_space<vmem>>, vector<1x1x128xf32>
    %52 = vector.shape_cast %51 : vector<1x1x128xf32> to vector<1x128xf32>
    %53 = vector.broadcast %52 : vector<1x128xf32> to vector<64x128xf32>
    %54 = arith.addf %50, %53 : vector<64x128xf32>
    %c0_26 = arith.constant 0 : index
    %c0_27 = arith.constant 0 : index
    %c0_28 = arith.constant 0 : index
    %55 = vector.load %arg6[%c0_26, %c0_27, %c0_28] : memref<2x8x32xf32, #tpu.memory_space<vmem>>, vector<1x8x32xf32>
    %56 = vector.shape_cast %55 : vector<1x8x32xf32> to vector<8x32xf32>
    %c1_29 = arith.constant 1 : index
    %c0_30 = arith.constant 0 : index
    %c0_31 = arith.constant 0 : index
    %57 = vector.load %arg6[%c1_29, %c0_30, %c0_31] : memref<2x8x32xf32, #tpu.memory_space<vmem>>, vector<1x8x32xf32>
    %58 = vector.shape_cast %57 : vector<1x8x32xf32> to vector<8x32xf32>
    %c0_32 = arith.constant 0 : index
    %c0_33 = arith.constant 0 : index
    %c0_34 = arith.constant 0 : index
    %59 = vector.load %arg7[%c0_32, %c0_33, %c0_34] : memref<2x8x32xf32, #tpu.memory_space<vmem>>, vector<1x8x32xf32>
    %60 = vector.shape_cast %59 : vector<1x8x32xf32> to vector<8x32xf32>
    %c1_35 = arith.constant 1 : index
    %c0_36 = arith.constant 0 : index
    %c0_37 = arith.constant 0 : index
    %61 = vector.load %arg7[%c1_35, %c0_36, %c0_37] : memref<2x8x32xf32, #tpu.memory_space<vmem>>, vector<1x8x32xf32>
    %62 = vector.shape_cast %61 : vector<1x8x32xf32> to vector<8x32xf32>
    %63 = vector.extract_strided_slice %54 {offsets = [0, 0], sizes = [8, 128], strides = [1, 1]} : vector<64x128xf32> to vector<8x128xf32>
    %64 = arith.truncf %56 : vector<8x32xf32> to vector<8x32xbf16>
    %c0_38 = arith.constant 0 : index
    %c0_39 = arith.constant 0 : index
    %c0_40 = arith.constant 0 : index
    %65 = vector.load %arg4[%c0_38, %c0_39, %c0_40] : memref<2x32x128xbf16, #tpu.memory_space<vmem>>, vector<1x32x128xbf16>
    %66 = vector.shape_cast %65 : vector<1x32x128xbf16> to vector<32x128xbf16>
    %cst_41 = arith.constant dense<0.000000e+00> : vector<8x128xf32>
    %67 = tpu.matmul %64, %66, %cst_41 {dimension_numbers = #tpu.dot_dimension_numbers<[1], [0], [0], [1], [0, 0, 1, 1], [], []>} : vector<8x32xbf16>, vector<32x128xbf16>, vector<8x128xf32> -> vector<8x128xf32>
    %68 = arith.addf %63, %67 : vector<8x128xf32>
    %69 = arith.negf %68 : vector<8x128xf32>
    %70 = math.exp %69 : vector<8x128xf32>
    %cst_42 = arith.constant 1.000000e+00 : f32
    %71 = vector.broadcast %cst_42 : f32 to vector<8x128xf32>
    %72 = arith.addf %71, %70 : vector<8x128xf32>
    %73 = arith.divf %71, %72 : vector<8x128xf32>
    %74 = math.tanh %68 : vector<8x128xf32>
    %75 = vector.extract_strided_slice %73 {offsets = [0, 0], sizes = [8, 32], strides = [1, 1]} : vector<8x128xf32> to vector<8x32xf32>
    %76 = vector.extract_strided_slice %73 {offsets = [0, 32], sizes = [8, 32], strides = [1, 1]} : vector<8x128xf32> to vector<8x32xf32>
    %77 = vector.extract_strided_slice %74 {offsets = [0, 64], sizes = [8, 32], strides = [1, 1]} : vector<8x128xf32> to vector<8x32xf32>
    %78 = vector.extract_strided_slice %73 {offsets = [0, 96], sizes = [8, 32], strides = [1, 1]} : vector<8x128xf32> to vector<8x32xf32>
    %79 = arith.mulf %76, %60 : vector<8x32xf32>
    %80 = arith.mulf %75, %77 : vector<8x32xf32>
    %81 = arith.addf %79, %80 : vector<8x32xf32>
    %82 = math.tanh %81 : vector<8x32xf32>
    %83 = arith.mulf %78, %82 : vector<8x32xf32>
    %84 = arith.truncf %83 : vector<8x32xf32> to vector<8x32xbf16>
    %c1_43 = arith.constant 1 : index
    %c0_44 = arith.constant 0 : index
    %c0_45 = arith.constant 0 : index
    %85 = vector.load %arg3[%c1_43, %c0_44, %c0_45] : memref<2x32x128xbf16, #tpu.memory_space<vmem>>, vector<1x32x128xbf16>
    %86 = vector.shape_cast %85 : vector<1x32x128xbf16> to vector<32x128xbf16>
    %cst_46 = arith.constant dense<0.000000e+00> : vector<8x128xf32>
    %87 = tpu.matmul %84, %86, %cst_46 {dimension_numbers = #tpu.dot_dimension_numbers<[1], [0], [0], [1], [0, 0, 1, 1], [], []>} : vector<8x32xbf16>, vector<32x128xbf16>, vector<8x128xf32> -> vector<8x128xf32>
    %c1_47 = arith.constant 1 : index
    %c0_48 = arith.constant 0 : index
    %c0_49 = arith.constant 0 : index
    %88 = vector.load %arg5[%c1_47, %c0_48, %c0_49] : memref<2x1x128xf32, #tpu.memory_space<vmem>>, vector<1x1x128xf32>
    %89 = vector.shape_cast %88 : vector<1x1x128xf32> to vector<1x128xf32>
    %90 = vector.broadcast %89 : vector<1x128xf32> to vector<8x128xf32>
    %91 = arith.addf %87, %90 : vector<8x128xf32>
    %92 = arith.truncf %58 : vector<8x32xf32> to vector<8x32xbf16>
    %c1_50 = arith.constant 1 : index
    %c0_51 = arith.constant 0 : index
    %c0_52 = arith.constant 0 : index
    %93 = vector.load %arg4[%c1_50, %c0_51, %c0_52] : memref<2x32x128xbf16, #tpu.memory_space<vmem>>, vector<1x32x128xbf16>
    %94 = vector.shape_cast %93 : vector<1x32x128xbf16> to vector<32x128xbf16>
    %cst_53 = arith.constant dense<0.000000e+00> : vector<8x128xf32>
    %95 = tpu.matmul %92, %94, %cst_53 {dimension_numbers = #tpu.dot_dimension_numbers<[1], [0], [0], [1], [0, 0, 1, 1], [], []>} : vector<8x32xbf16>, vector<32x128xbf16>, vector<8x128xf32> -> vector<8x128xf32>
    %96 = arith.addf %91, %95 : vector<8x128xf32>
    %97 = arith.negf %96 : vector<8x128xf32>
    %98 = math.exp %97 : vector<8x128xf32>
    %cst_54 = arith.constant 1.000000e+00 : f32
    %99 = vector.broadcast %cst_54 : f32 to vector<8x128xf32>
    %100 = arith.addf %99, %98 : vector<8x128xf32>
    %101 = arith.divf %99, %100 : vector<8x128xf32>
    %102 = math.tanh %96 : vector<8x128xf32>
    %103 = vector.extract_strided_slice %101 {offsets = [0, 0], sizes = [8, 32], strides = [1, 1]} : vector<8x128xf32> to vector<8x32xf32>
    %104 = vector.extract_strided_slice %101 {offsets = [0, 32], sizes = [8, 32], strides = [1, 1]} : vector<8x128xf32> to vector<8x32xf32>
    %105 = vector.extract_strided_slice %102 {offsets = [0, 64], sizes = [8, 32], strides = [1, 1]} : vector<8x128xf32> to vector<8x32xf32>
    %106 = vector.extract_strided_slice %101 {offsets = [0, 96], sizes = [8, 32], strides = [1, 1]} : vector<8x128xf32> to vector<8x32xf32>
    %107 = arith.mulf %104, %62 : vector<8x32xf32>
    %108 = arith.mulf %103, %105 : vector<8x32xf32>
    %109 = arith.addf %107, %108 : vector<8x32xf32>
    %110 = math.tanh %109 : vector<8x32xf32>
    %111 = arith.mulf %106, %110 : vector<8x32xf32>
    %112 = vector.extract_strided_slice %54 {offsets = [8, 0], sizes = [8, 128], strides = [1, 1]} : vector<64x128xf32> to vector<8x128xf32>
    %113 = arith.truncf %83 : vector<8x32xf32> to vector<8x32xbf16>
    %c0_55 = arith.constant 0 : index
    %c0_56 = arith.constant 0 : index
    %c0_57 = arith.constant 0 : index
    %114 = vector.load %arg4[%c0_55, %c0_56, %c0_57] : memref<2x32x128xbf16, #tpu.memory_space<vmem>>, vector<1x32x128xbf16>
    %115 = vector.shape_cast %114 : vector<1x32x128xbf16> to vector<32x128xbf16>
    %cst_58 = arith.constant dense<0.000000e+00> : vector<8x128xf32>
    %116 = tpu.matmul %113, %115, %cst_58 {dimension_numbers = #tpu.dot_dimension_numbers<[1], [0], [0], [1], [0, 0, 1, 1], [], []>} : vector<8x32xbf16>, vector<32x128xbf16>, vector<8x128xf32> -> vector<8x128xf32>
    %117 = arith.addf %112, %116 : vector<8x128xf32>
    %118 = arith.negf %117 : vector<8x128xf32>
    %119 = math.exp %118 : vector<8x128xf32>
    %cst_59 = arith.constant 1.000000e+00 : f32
    %120 = vector.broadcast %cst_59 : f32 to vector<8x128xf32>
    %121 = arith.addf %120, %119 : vector<8x128xf32>
    %122 = arith.divf %120, %121 : vector<8x128xf32>
    %123 = math.tanh %117 : vector<8x128xf32>
    %124 = vector.extract_strided_slice %122 {offsets = [0, 0], sizes = [8, 32], strides = [1, 1]} : vector<8x128xf32> to vector<8x32xf32>
    %125 = vector.extract_strided_slice %122 {offsets = [0, 32], sizes = [8, 32], strides = [1, 1]} : vector<8x128xf32> to vector<8x32xf32>
    %126 = vector.extract_strided_slice %123 {offsets = [0, 64], sizes = [8, 32], strides = [1, 1]} : vector<8x128xf32> to vector<8x32xf32>
    %127 = vector.extract_strided_slice %122 {offsets = [0, 96], sizes = [8, 32], strides = [1, 1]} : vector<8x128xf32> to vector<8x32xf32>
    %128 = arith.mulf %125, %81 : vector<8x32xf32>
    %129 = arith.mulf %124, %126 : vector<8x32xf32>
    %130 = arith.addf %128, %129 : vector<8x32xf32>
    %131 = math.tanh %130 : vector<8x32xf32>
    %132 = arith.mulf %127, %131 : vector<8x32xf32>
    %133 = arith.truncf %132 : vector<8x32xf32> to vector<8x32xbf16>
    %c1_60 = arith.constant 1 : index
    %c0_61 = arith.constant 0 : index
    %c0_62 = arith.constant 0 : index
    %134 = vector.load %arg3[%c1_60, %c0_61, %c0_62] : memref<2x32x128xbf16, #tpu.memory_space<vmem>>, vector<1x32x128xbf16>
    %135 = vector.shape_cast %134 : vector<1x32x128xbf16> to vector<32x128xbf16>
    %cst_63 = arith.constant dense<0.000000e+00> : vector<8x128xf32>
    %136 = tpu.matmul %133, %135, %cst_63 {dimension_numbers = #tpu.dot_dimension_numbers<[1], [0], [0], [1], [0, 0, 1, 1], [], []>} : vector<8x32xbf16>, vector<32x128xbf16>, vector<8x128xf32> -> vector<8x128xf32>
    %c1_64 = arith.constant 1 : index
    %c0_65 = arith.constant 0 : index
    %c0_66 = arith.constant 0 : index
    %137 = vector.load %arg5[%c1_64, %c0_65, %c0_66] : memref<2x1x128xf32, #tpu.memory_space<vmem>>, vector<1x1x128xf32>
    %138 = vector.shape_cast %137 : vector<1x1x128xf32> to vector<1x128xf32>
    %139 = vector.broadcast %138 : vector<1x128xf32> to vector<8x128xf32>
    %140 = arith.addf %136, %139 : vector<8x128xf32>
    %141 = arith.truncf %111 : vector<8x32xf32> to vector<8x32xbf16>
    %c1_67 = arith.constant 1 : index
    %c0_68 = arith.constant 0 : index
    %c0_69 = arith.constant 0 : index
    %142 = vector.load %arg4[%c1_67, %c0_68, %c0_69] : memref<2x32x128xbf16, #tpu.memory_space<vmem>>, vector<1x32x128xbf16>
    %143 = vector.shape_cast %142 : vector<1x32x128xbf16> to vector<32x128xbf16>
    %cst_70 = arith.constant dense<0.000000e+00> : vector<8x128xf32>
    %144 = tpu.matmul %141, %143, %cst_70 {dimension_numbers = #tpu.dot_dimension_numbers<[1], [0], [0], [1], [0, 0, 1, 1], [], []>} : vector<8x32xbf16>, vector<32x128xbf16>, vector<8x128xf32> -> vector<8x128xf32>
    %145 = arith.addf %140, %144 : vector<8x128xf32>
    %146 = arith.negf %145 : vector<8x128xf32>
    %147 = math.exp %146 : vector<8x128xf32>
    %cst_71 = arith.constant 1.000000e+00 : f32
    %148 = vector.broadcast %cst_71 : f32 to vector<8x128xf32>
    %149 = arith.addf %148, %147 : vector<8x128xf32>
    %150 = arith.divf %148, %149 : vector<8x128xf32>
    %151 = math.tanh %145 : vector<8x128xf32>
    %152 = vector.extract_strided_slice %150 {offsets = [0, 0], sizes = [8, 32], strides = [1, 1]} : vector<8x128xf32> to vector<8x32xf32>
    %153 = vector.extract_strided_slice %150 {offsets = [0, 32], sizes = [8, 32], strides = [1, 1]} : vector<8x128xf32> to vector<8x32xf32>
    %154 = vector.extract_strided_slice %151 {offsets = [0, 64], sizes = [8, 32], strides = [1, 1]} : vector<8x128xf32> to vector<8x32xf32>
    %155 = vector.extract_strided_slice %150 {offsets = [0, 96], sizes = [8, 32], strides = [1, 1]} : vector<8x128xf32> to vector<8x32xf32>
    %156 = arith.mulf %153, %109 : vector<8x32xf32>
    %157 = arith.mulf %152, %154 : vector<8x32xf32>
    %158 = arith.addf %156, %157 : vector<8x32xf32>
    %159 = math.tanh %158 : vector<8x32xf32>
    %160 = arith.mulf %155, %159 : vector<8x32xf32>
    %161 = vector.extract_strided_slice %54 {offsets = [16, 0], sizes = [8, 128], strides = [1, 1]} : vector<64x128xf32> to vector<8x128xf32>
    %162 = arith.truncf %132 : vector<8x32xf32> to vector<8x32xbf16>
    %c0_72 = arith.constant 0 : index
    %c0_73 = arith.constant 0 : index
    %c0_74 = arith.constant 0 : index
    %163 = vector.load %arg4[%c0_72, %c0_73, %c0_74] : memref<2x32x128xbf16, #tpu.memory_space<vmem>>, vector<1x32x128xbf16>
    %164 = vector.shape_cast %163 : vector<1x32x128xbf16> to vector<32x128xbf16>
    %cst_75 = arith.constant dense<0.000000e+00> : vector<8x128xf32>
    %165 = tpu.matmul %162, %164, %cst_75 {dimension_numbers = #tpu.dot_dimension_numbers<[1], [0], [0], [1], [0, 0, 1, 1], [], []>} : vector<8x32xbf16>, vector<32x128xbf16>, vector<8x128xf32> -> vector<8x128xf32>
    %166 = arith.addf %161, %165 : vector<8x128xf32>
    %167 = arith.negf %166 : vector<8x128xf32>
    %168 = math.exp %167 : vector<8x128xf32>
    %cst_76 = arith.constant 1.000000e+00 : f32
    %169 = vector.broadcast %cst_76 : f32 to vector<8x128xf32>
    %170 = arith.addf %169, %168 : vector<8x128xf32>
    %171 = arith.divf %169, %170 : vector<8x128xf32>
    %172 = math.tanh %166 : vector<8x128xf32>
    %173 = vector.extract_strided_slice %171 {offsets = [0, 0], sizes = [8, 32], strides = [1, 1]} : vector<8x128xf32> to vector<8x32xf32>
    %174 = vector.extract_strided_slice %171 {offsets = [0, 32], sizes = [8, 32], strides = [1, 1]} : vector<8x128xf32> to vector<8x32xf32>
    %175 = vector.extract_strided_slice %172 {offsets = [0, 64], sizes = [8, 32], strides = [1, 1]} : vector<8x128xf32> to vector<8x32xf32>
    %176 = vector.extract_strided_slice %171 {offsets = [0, 96], sizes = [8, 32], strides = [1, 1]} : vector<8x128xf32> to vector<8x32xf32>
    %177 = arith.mulf %174, %130 : vector<8x32xf32>
    %178 = arith.mulf %173, %175 : vector<8x32xf32>
    %179 = arith.addf %177, %178 : vector<8x32xf32>
    %180 = math.tanh %179 : vector<8x32xf32>
    %181 = arith.mulf %176, %180 : vector<8x32xf32>
    %182 = arith.truncf %181 : vector<8x32xf32> to vector<8x32xbf16>
    %c1_77 = arith.constant 1 : index
    %c0_78 = arith.constant 0 : index
    %c0_79 = arith.constant 0 : index
    %183 = vector.load %arg3[%c1_77, %c0_78, %c0_79] : memref<2x32x128xbf16, #tpu.memory_space<vmem>>, vector<1x32x128xbf16>
    %184 = vector.shape_cast %183 : vector<1x32x128xbf16> to vector<32x128xbf16>
    %cst_80 = arith.constant dense<0.000000e+00> : vector<8x128xf32>
    %185 = tpu.matmul %182, %184, %cst_80 {dimension_numbers = #tpu.dot_dimension_numbers<[1], [0], [0], [1], [0, 0, 1, 1], [], []>} : vector<8x32xbf16>, vector<32x128xbf16>, vector<8x128xf32> -> vector<8x128xf32>
    %c1_81 = arith.constant 1 : index
    %c0_82 = arith.constant 0 : index
    %c0_83 = arith.constant 0 : index
    %186 = vector.load %arg5[%c1_81, %c0_82, %c0_83] : memref<2x1x128xf32, #tpu.memory_space<vmem>>, vector<1x1x128xf32>
    %187 = vector.shape_cast %186 : vector<1x1x128xf32> to vector<1x128xf32>
    %188 = vector.broadcast %187 : vector<1x128xf32> to vector<8x128xf32>
    %189 = arith.addf %185, %188 : vector<8x128xf32>
    %190 = arith.truncf %160 : vector<8x32xf32> to vector<8x32xbf16>
    %c1_84 = arith.constant 1 : index
    %c0_85 = arith.constant 0 : index
    %c0_86 = arith.constant 0 : index
    %191 = vector.load %arg4[%c1_84, %c0_85, %c0_86] : memref<2x32x128xbf16, #tpu.memory_space<vmem>>, vector<1x32x128xbf16>
    %192 = vector.shape_cast %191 : vector<1x32x128xbf16> to vector<32x128xbf16>
    %cst_87 = arith.constant dense<0.000000e+00> : vector<8x128xf32>
    %193 = tpu.matmul %190, %192, %cst_87 {dimension_numbers = #tpu.dot_dimension_numbers<[1], [0], [0], [1], [0, 0, 1, 1], [], []>} : vector<8x32xbf16>, vector<32x128xbf16>, vector<8x128xf32> -> vector<8x128xf32>
    %194 = arith.addf %189, %193 : vector<8x128xf32>
    %195 = arith.negf %194 : vector<8x128xf32>
    %196 = math.exp %195 : vector<8x128xf32>
    %cst_88 = arith.constant 1.000000e+00 : f32
    %197 = vector.broadcast %cst_88 : f32 to vector<8x128xf32>
    %198 = arith.addf %197, %196 : vector<8x128xf32>
    %199 = arith.divf %197, %198 : vector<8x128xf32>
    %200 = math.tanh %194 : vector<8x128xf32>
    %201 = vector.extract_strided_slice %199 {offsets = [0, 0], sizes = [8, 32], strides = [1, 1]} : vector<8x128xf32> to vector<8x32xf32>
    %202 = vector.extract_strided_slice %199 {offsets = [0, 32], sizes = [8, 32], strides = [1, 1]} : vector<8x128xf32> to vector<8x32xf32>
    %203 = vector.extract_strided_slice %200 {offsets = [0, 64], sizes = [8, 32], strides = [1, 1]} : vector<8x128xf32> to vector<8x32xf32>
    %204 = vector.extract_strided_slice %199 {offsets = [0, 96], sizes = [8, 32], strides = [1, 1]} : vector<8x128xf32> to vector<8x32xf32>
    %205 = arith.mulf %202, %158 : vector<8x32xf32>
    %206 = arith.mulf %201, %203 : vector<8x32xf32>
    %207 = arith.addf %205, %206 : vector<8x32xf32>
    %208 = math.tanh %207 : vector<8x32xf32>
    %209 = arith.mulf %204, %208 : vector<8x32xf32>
    %210 = vector.extract_strided_slice %54 {offsets = [24, 0], sizes = [8, 128], strides = [1, 1]} : vector<64x128xf32> to vector<8x128xf32>
    %211 = arith.truncf %181 : vector<8x32xf32> to vector<8x32xbf16>
    %c0_89 = arith.constant 0 : index
    %c0_90 = arith.constant 0 : index
    %c0_91 = arith.constant 0 : index
    %212 = vector.load %arg4[%c0_89, %c0_90, %c0_91] : memref<2x32x128xbf16, #tpu.memory_space<vmem>>, vector<1x32x128xbf16>
    %213 = vector.shape_cast %212 : vector<1x32x128xbf16> to vector<32x128xbf16>
    %cst_92 = arith.constant dense<0.000000e+00> : vector<8x128xf32>
    %214 = tpu.matmul %211, %213, %cst_92 {dimension_numbers = #tpu.dot_dimension_numbers<[1], [0], [0], [1], [0, 0, 1, 1], [], []>} : vector<8x32xbf16>, vector<32x128xbf16>, vector<8x128xf32> -> vector<8x128xf32>
    %215 = arith.addf %210, %214 : vector<8x128xf32>
    %216 = arith.negf %215 : vector<8x128xf32>
    %217 = math.exp %216 : vector<8x128xf32>
    %cst_93 = arith.constant 1.000000e+00 : f32
    %218 = vector.broadcast %cst_93 : f32 to vector<8x128xf32>
    %219 = arith.addf %218, %217 : vector<8x128xf32>
    %220 = arith.divf %218, %219 : vector<8x128xf32>
    %221 = math.tanh %215 : vector<8x128xf32>
    %222 = vector.extract_strided_slice %220 {offsets = [0, 0], sizes = [8, 32], strides = [1, 1]} : vector<8x128xf32> to vector<8x32xf32>
    %223 = vector.extract_strided_slice %220 {offsets = [0, 32], sizes = [8, 32], strides = [1, 1]} : vector<8x128xf32> to vector<8x32xf32>
    %224 = vector.extract_strided_slice %221 {offsets = [0, 64], sizes = [8, 32], strides = [1, 1]} : vector<8x128xf32> to vector<8x32xf32>
    %225 = vector.extract_strided_slice %220 {offsets = [0, 96], sizes = [8, 32], strides = [1, 1]} : vector<8x128xf32> to vector<8x32xf32>
    %226 = arith.mulf %223, %179 : vector<8x32xf32>
    %227 = arith.mulf %222, %224 : vector<8x32xf32>
    %228 = arith.addf %226, %227 : vector<8x32xf32>
    %229 = math.tanh %228 : vector<8x32xf32>
    %230 = arith.mulf %225, %229 : vector<8x32xf32>
    %231 = arith.truncf %230 : vector<8x32xf32> to vector<8x32xbf16>
    %c1_94 = arith.constant 1 : index
    %c0_95 = arith.constant 0 : index
    %c0_96 = arith.constant 0 : index
    %232 = vector.load %arg3[%c1_94, %c0_95, %c0_96] : memref<2x32x128xbf16, #tpu.memory_space<vmem>>, vector<1x32x128xbf16>
    %233 = vector.shape_cast %232 : vector<1x32x128xbf16> to vector<32x128xbf16>
    %cst_97 = arith.constant dense<0.000000e+00> : vector<8x128xf32>
    %234 = tpu.matmul %231, %233, %cst_97 {dimension_numbers = #tpu.dot_dimension_numbers<[1], [0], [0], [1], [0, 0, 1, 1], [], []>} : vector<8x32xbf16>, vector<32x128xbf16>, vector<8x128xf32> -> vector<8x128xf32>
    %c1_98 = arith.constant 1 : index
    %c0_99 = arith.constant 0 : index
    %c0_100 = arith.constant 0 : index
    %235 = vector.load %arg5[%c1_98, %c0_99, %c0_100] : memref<2x1x128xf32, #tpu.memory_space<vmem>>, vector<1x1x128xf32>
    %236 = vector.shape_cast %235 : vector<1x1x128xf32> to vector<1x128xf32>
    %237 = vector.broadcast %236 : vector<1x128xf32> to vector<8x128xf32>
    %238 = arith.addf %234, %237 : vector<8x128xf32>
    %239 = arith.truncf %209 : vector<8x32xf32> to vector<8x32xbf16>
    %c1_101 = arith.constant 1 : index
    %c0_102 = arith.constant 0 : index
    %c0_103 = arith.constant 0 : index
    %240 = vector.load %arg4[%c1_101, %c0_102, %c0_103] : memref<2x32x128xbf16, #tpu.memory_space<vmem>>, vector<1x32x128xbf16>
    %241 = vector.shape_cast %240 : vector<1x32x128xbf16> to vector<32x128xbf16>
    %cst_104 = arith.constant dense<0.000000e+00> : vector<8x128xf32>
    %242 = tpu.matmul %239, %241, %cst_104 {dimension_numbers = #tpu.dot_dimension_numbers<[1], [0], [0], [1], [0, 0, 1, 1], [], []>} : vector<8x32xbf16>, vector<32x128xbf16>, vector<8x128xf32> -> vector<8x128xf32>
    %243 = arith.addf %238, %242 : vector<8x128xf32>
    %244 = arith.negf %243 : vector<8x128xf32>
    %245 = math.exp %244 : vector<8x128xf32>
    %cst_105 = arith.constant 1.000000e+00 : f32
    %246 = vector.broadcast %cst_105 : f32 to vector<8x128xf32>
    %247 = arith.addf %246, %245 : vector<8x128xf32>
    %248 = arith.divf %246, %247 : vector<8x128xf32>
    %249 = math.tanh %243 : vector<8x128xf32>
    %250 = vector.extract_strided_slice %248 {offsets = [0, 0], sizes = [8, 32], strides = [1, 1]} : vector<8x128xf32> to vector<8x32xf32>
    %251 = vector.extract_strided_slice %248 {offsets = [0, 32], sizes = [8, 32], strides = [1, 1]} : vector<8x128xf32> to vector<8x32xf32>
    %252 = vector.extract_strided_slice %249 {offsets = [0, 64], sizes = [8, 32], strides = [1, 1]} : vector<8x128xf32> to vector<8x32xf32>
    %253 = vector.extract_strided_slice %248 {offsets = [0, 96], sizes = [8, 32], strides = [1, 1]} : vector<8x128xf32> to vector<8x32xf32>
    %254 = arith.mulf %251, %207 : vector<8x32xf32>
    %255 = arith.mulf %250, %252 : vector<8x32xf32>
    %256 = arith.addf %254, %255 : vector<8x32xf32>
    %257 = math.tanh %256 : vector<8x32xf32>
    %258 = arith.mulf %253, %257 : vector<8x32xf32>
    %259 = vector.extract_strided_slice %54 {offsets = [32, 0], sizes = [8, 128], strides = [1, 1]} : vector<64x128xf32> to vector<8x128xf32>
    %260 = arith.truncf %230 : vector<8x32xf32> to vector<8x32xbf16>
    %c0_106 = arith.constant 0 : index
    %c0_107 = arith.constant 0 : index
    %c0_108 = arith.constant 0 : index
    %261 = vector.load %arg4[%c0_106, %c0_107, %c0_108] : memref<2x32x128xbf16, #tpu.memory_space<vmem>>, vector<1x32x128xbf16>
    %262 = vector.shape_cast %261 : vector<1x32x128xbf16> to vector<32x128xbf16>
    %cst_109 = arith.constant dense<0.000000e+00> : vector<8x128xf32>
    %263 = tpu.matmul %260, %262, %cst_109 {dimension_numbers = #tpu.dot_dimension_numbers<[1], [0], [0], [1], [0, 0, 1, 1], [], []>} : vector<8x32xbf16>, vector<32x128xbf16>, vector<8x128xf32> -> vector<8x128xf32>
    %264 = arith.addf %259, %263 : vector<8x128xf32>
    %265 = arith.negf %264 : vector<8x128xf32>
    %266 = math.exp %265 : vector<8x128xf32>
    %cst_110 = arith.constant 1.000000e+00 : f32
    %267 = vector.broadcast %cst_110 : f32 to vector<8x128xf32>
    %268 = arith.addf %267, %266 : vector<8x128xf32>
    %269 = arith.divf %267, %268 : vector<8x128xf32>
    %270 = math.tanh %264 : vector<8x128xf32>
    %271 = vector.extract_strided_slice %269 {offsets = [0, 0], sizes = [8, 32], strides = [1, 1]} : vector<8x128xf32> to vector<8x32xf32>
    %272 = vector.extract_strided_slice %269 {offsets = [0, 32], sizes = [8, 32], strides = [1, 1]} : vector<8x128xf32> to vector<8x32xf32>
    %273 = vector.extract_strided_slice %270 {offsets = [0, 64], sizes = [8, 32], strides = [1, 1]} : vector<8x128xf32> to vector<8x32xf32>
    %274 = vector.extract_strided_slice %269 {offsets = [0, 96], sizes = [8, 32], strides = [1, 1]} : vector<8x128xf32> to vector<8x32xf32>
    %275 = arith.mulf %272, %228 : vector<8x32xf32>
    %276 = arith.mulf %271, %273 : vector<8x32xf32>
    %277 = arith.addf %275, %276 : vector<8x32xf32>
    %278 = math.tanh %277 : vector<8x32xf32>
    %279 = arith.mulf %274, %278 : vector<8x32xf32>
    %280 = arith.truncf %279 : vector<8x32xf32> to vector<8x32xbf16>
    %c1_111 = arith.constant 1 : index
    %c0_112 = arith.constant 0 : index
    %c0_113 = arith.constant 0 : index
    %281 = vector.load %arg3[%c1_111, %c0_112, %c0_113] : memref<2x32x128xbf16, #tpu.memory_space<vmem>>, vector<1x32x128xbf16>
    %282 = vector.shape_cast %281 : vector<1x32x128xbf16> to vector<32x128xbf16>
    %cst_114 = arith.constant dense<0.000000e+00> : vector<8x128xf32>
    %283 = tpu.matmul %280, %282, %cst_114 {dimension_numbers = #tpu.dot_dimension_numbers<[1], [0], [0], [1], [0, 0, 1, 1], [], []>} : vector<8x32xbf16>, vector<32x128xbf16>, vector<8x128xf32> -> vector<8x128xf32>
    %c1_115 = arith.constant 1 : index
    %c0_116 = arith.constant 0 : index
    %c0_117 = arith.constant 0 : index
    %284 = vector.load %arg5[%c1_115, %c0_116, %c0_117] : memref<2x1x128xf32, #tpu.memory_space<vmem>>, vector<1x1x128xf32>
    %285 = vector.shape_cast %284 : vector<1x1x128xf32> to vector<1x128xf32>
    %286 = vector.broadcast %285 : vector<1x128xf32> to vector<8x128xf32>
    %287 = arith.addf %283, %286 : vector<8x128xf32>
    %288 = arith.truncf %258 : vector<8x32xf32> to vector<8x32xbf16>
    %c1_118 = arith.constant 1 : index
    %c0_119 = arith.constant 0 : index
    %c0_120 = arith.constant 0 : index
    %289 = vector.load %arg4[%c1_118, %c0_119, %c0_120] : memref<2x32x128xbf16, #tpu.memory_space<vmem>>, vector<1x32x128xbf16>
    %290 = vector.shape_cast %289 : vector<1x32x128xbf16> to vector<32x128xbf16>
    %cst_121 = arith.constant dense<0.000000e+00> : vector<8x128xf32>
    %291 = tpu.matmul %288, %290, %cst_121 {dimension_numbers = #tpu.dot_dimension_numbers<[1], [0], [0], [1], [0, 0, 1, 1], [], []>} : vector<8x32xbf16>, vector<32x128xbf16>, vector<8x128xf32> -> vector<8x128xf32>
    %292 = arith.addf %287, %291 : vector<8x128xf32>
    %293 = arith.negf %292 : vector<8x128xf32>
    %294 = math.exp %293 : vector<8x128xf32>
    %cst_122 = arith.constant 1.000000e+00 : f32
    %295 = vector.broadcast %cst_122 : f32 to vector<8x128xf32>
    %296 = arith.addf %295, %294 : vector<8x128xf32>
    %297 = arith.divf %295, %296 : vector<8x128xf32>
    %298 = math.tanh %292 : vector<8x128xf32>
    %299 = vector.extract_strided_slice %297 {offsets = [0, 0], sizes = [8, 32], strides = [1, 1]} : vector<8x128xf32> to vector<8x32xf32>
    %300 = vector.extract_strided_slice %297 {offsets = [0, 32], sizes = [8, 32], strides = [1, 1]} : vector<8x128xf32> to vector<8x32xf32>
    %301 = vector.extract_strided_slice %298 {offsets = [0, 64], sizes = [8, 32], strides = [1, 1]} : vector<8x128xf32> to vector<8x32xf32>
    %302 = vector.extract_strided_slice %297 {offsets = [0, 96], sizes = [8, 32], strides = [1, 1]} : vector<8x128xf32> to vector<8x32xf32>
    %303 = arith.mulf %300, %256 : vector<8x32xf32>
    %304 = arith.mulf %299, %301 : vector<8x32xf32>
    %305 = arith.addf %303, %304 : vector<8x32xf32>
    %306 = math.tanh %305 : vector<8x32xf32>
    %307 = arith.mulf %302, %306 : vector<8x32xf32>
    %308 = vector.extract_strided_slice %54 {offsets = [40, 0], sizes = [8, 128], strides = [1, 1]} : vector<64x128xf32> to vector<8x128xf32>
    %309 = arith.truncf %279 : vector<8x32xf32> to vector<8x32xbf16>
    %c0_123 = arith.constant 0 : index
    %c0_124 = arith.constant 0 : index
    %c0_125 = arith.constant 0 : index
    %310 = vector.load %arg4[%c0_123, %c0_124, %c0_125] : memref<2x32x128xbf16, #tpu.memory_space<vmem>>, vector<1x32x128xbf16>
    %311 = vector.shape_cast %310 : vector<1x32x128xbf16> to vector<32x128xbf16>
    %cst_126 = arith.constant dense<0.000000e+00> : vector<8x128xf32>
    %312 = tpu.matmul %309, %311, %cst_126 {dimension_numbers = #tpu.dot_dimension_numbers<[1], [0], [0], [1], [0, 0, 1, 1], [], []>} : vector<8x32xbf16>, vector<32x128xbf16>, vector<8x128xf32> -> vector<8x128xf32>
    %313 = arith.addf %308, %312 : vector<8x128xf32>
    %314 = arith.negf %313 : vector<8x128xf32>
    %315 = math.exp %314 : vector<8x128xf32>
    %cst_127 = arith.constant 1.000000e+00 : f32
    %316 = vector.broadcast %cst_127 : f32 to vector<8x128xf32>
    %317 = arith.addf %316, %315 : vector<8x128xf32>
    %318 = arith.divf %316, %317 : vector<8x128xf32>
    %319 = math.tanh %313 : vector<8x128xf32>
    %320 = vector.extract_strided_slice %318 {offsets = [0, 0], sizes = [8, 32], strides = [1, 1]} : vector<8x128xf32> to vector<8x32xf32>
    %321 = vector.extract_strided_slice %318 {offsets = [0, 32], sizes = [8, 32], strides = [1, 1]} : vector<8x128xf32> to vector<8x32xf32>
    %322 = vector.extract_strided_slice %319 {offsets = [0, 64], sizes = [8, 32], strides = [1, 1]} : vector<8x128xf32> to vector<8x32xf32>
    %323 = vector.extract_strided_slice %318 {offsets = [0, 96], sizes = [8, 32], strides = [1, 1]} : vector<8x128xf32> to vector<8x32xf32>
    %324 = arith.mulf %321, %277 : vector<8x32xf32>
    %325 = arith.mulf %320, %322 : vector<8x32xf32>
    %326 = arith.addf %324, %325 : vector<8x32xf32>
    %327 = math.tanh %326 : vector<8x32xf32>
    %328 = arith.mulf %323, %327 : vector<8x32xf32>
    %329 = arith.truncf %328 : vector<8x32xf32> to vector<8x32xbf16>
    %c1_128 = arith.constant 1 : index
    %c0_129 = arith.constant 0 : index
    %c0_130 = arith.constant 0 : index
    %330 = vector.load %arg3[%c1_128, %c0_129, %c0_130] : memref<2x32x128xbf16, #tpu.memory_space<vmem>>, vector<1x32x128xbf16>
    %331 = vector.shape_cast %330 : vector<1x32x128xbf16> to vector<32x128xbf16>
    %cst_131 = arith.constant dense<0.000000e+00> : vector<8x128xf32>
    %332 = tpu.matmul %329, %331, %cst_131 {dimension_numbers = #tpu.dot_dimension_numbers<[1], [0], [0], [1], [0, 0, 1, 1], [], []>} : vector<8x32xbf16>, vector<32x128xbf16>, vector<8x128xf32> -> vector<8x128xf32>
    %c1_132 = arith.constant 1 : index
    %c0_133 = arith.constant 0 : index
    %c0_134 = arith.constant 0 : index
    %333 = vector.load %arg5[%c1_132, %c0_133, %c0_134] : memref<2x1x128xf32, #tpu.memory_space<vmem>>, vector<1x1x128xf32>
    %334 = vector.shape_cast %333 : vector<1x1x128xf32> to vector<1x128xf32>
    %335 = vector.broadcast %334 : vector<1x128xf32> to vector<8x128xf32>
    %336 = arith.addf %332, %335 : vector<8x128xf32>
    %337 = arith.truncf %307 : vector<8x32xf32> to vector<8x32xbf16>
    %c1_135 = arith.constant 1 : index
    %c0_136 = arith.constant 0 : index
    %c0_137 = arith.constant 0 : index
    %338 = vector.load %arg4[%c1_135, %c0_136, %c0_137] : memref<2x32x128xbf16, #tpu.memory_space<vmem>>, vector<1x32x128xbf16>
    %339 = vector.shape_cast %338 : vector<1x32x128xbf16> to vector<32x128xbf16>
    %cst_138 = arith.constant dense<0.000000e+00> : vector<8x128xf32>
    %340 = tpu.matmul %337, %339, %cst_138 {dimension_numbers = #tpu.dot_dimension_numbers<[1], [0], [0], [1], [0, 0, 1, 1], [], []>} : vector<8x32xbf16>, vector<32x128xbf16>, vector<8x128xf32> -> vector<8x128xf32>
    %341 = arith.addf %336, %340 : vector<8x128xf32>
    %342 = arith.negf %341 : vector<8x128xf32>
    %343 = math.exp %342 : vector<8x128xf32>
    %cst_139 = arith.constant 1.000000e+00 : f32
    %344 = vector.broadcast %cst_139 : f32 to vector<8x128xf32>
    %345 = arith.addf %344, %343 : vector<8x128xf32>
    %346 = arith.divf %344, %345 : vector<8x128xf32>
    %347 = math.tanh %341 : vector<8x128xf32>
    %348 = vector.extract_strided_slice %346 {offsets = [0, 0], sizes = [8, 32], strides = [1, 1]} : vector<8x128xf32> to vector<8x32xf32>
    %349 = vector.extract_strided_slice %346 {offsets = [0, 32], sizes = [8, 32], strides = [1, 1]} : vector<8x128xf32> to vector<8x32xf32>
    %350 = vector.extract_strided_slice %347 {offsets = [0, 64], sizes = [8, 32], strides = [1, 1]} : vector<8x128xf32> to vector<8x32xf32>
    %351 = vector.extract_strided_slice %346 {offsets = [0, 96], sizes = [8, 32], strides = [1, 1]} : vector<8x128xf32> to vector<8x32xf32>
    %352 = arith.mulf %349, %305 : vector<8x32xf32>
    %353 = arith.mulf %348, %350 : vector<8x32xf32>
    %354 = arith.addf %352, %353 : vector<8x32xf32>
    %355 = math.tanh %354 : vector<8x32xf32>
    %356 = arith.mulf %351, %355 : vector<8x32xf32>
    %357 = vector.extract_strided_slice %54 {offsets = [48, 0], sizes = [8, 128], strides = [1, 1]} : vector<64x128xf32> to vector<8x128xf32>
    %358 = arith.truncf %328 : vector<8x32xf32> to vector<8x32xbf16>
    %c0_140 = arith.constant 0 : index
    %c0_141 = arith.constant 0 : index
    %c0_142 = arith.constant 0 : index
    %359 = vector.load %arg4[%c0_140, %c0_141, %c0_142] : memref<2x32x128xbf16, #tpu.memory_space<vmem>>, vector<1x32x128xbf16>
    %360 = vector.shape_cast %359 : vector<1x32x128xbf16> to vector<32x128xbf16>
    %cst_143 = arith.constant dense<0.000000e+00> : vector<8x128xf32>
    %361 = tpu.matmul %358, %360, %cst_143 {dimension_numbers = #tpu.dot_dimension_numbers<[1], [0], [0], [1], [0, 0, 1, 1], [], []>} : vector<8x32xbf16>, vector<32x128xbf16>, vector<8x128xf32> -> vector<8x128xf32>
    %362 = arith.addf %357, %361 : vector<8x128xf32>
    %363 = arith.negf %362 : vector<8x128xf32>
    %364 = math.exp %363 : vector<8x128xf32>
    %cst_144 = arith.constant 1.000000e+00 : f32
    %365 = vector.broadcast %cst_144 : f32 to vector<8x128xf32>
    %366 = arith.addf %365, %364 : vector<8x128xf32>
    %367 = arith.divf %365, %366 : vector<8x128xf32>
    %368 = math.tanh %362 : vector<8x128xf32>
    %369 = vector.extract_strided_slice %367 {offsets = [0, 0], sizes = [8, 32], strides = [1, 1]} : vector<8x128xf32> to vector<8x32xf32>
    %370 = vector.extract_strided_slice %367 {offsets = [0, 32], sizes = [8, 32], strides = [1, 1]} : vector<8x128xf32> to vector<8x32xf32>
    %371 = vector.extract_strided_slice %368 {offsets = [0, 64], sizes = [8, 32], strides = [1, 1]} : vector<8x128xf32> to vector<8x32xf32>
    %372 = vector.extract_strided_slice %367 {offsets = [0, 96], sizes = [8, 32], strides = [1, 1]} : vector<8x128xf32> to vector<8x32xf32>
    %373 = arith.mulf %370, %326 : vector<8x32xf32>
    %374 = arith.mulf %369, %371 : vector<8x32xf32>
    %375 = arith.addf %373, %374 : vector<8x32xf32>
    %376 = math.tanh %375 : vector<8x32xf32>
    %377 = arith.mulf %372, %376 : vector<8x32xf32>
    %378 = arith.truncf %377 : vector<8x32xf32> to vector<8x32xbf16>
    %c1_145 = arith.constant 1 : index
    %c0_146 = arith.constant 0 : index
    %c0_147 = arith.constant 0 : index
    %379 = vector.load %arg3[%c1_145, %c0_146, %c0_147] : memref<2x32x128xbf16, #tpu.memory_space<vmem>>, vector<1x32x128xbf16>
    %380 = vector.shape_cast %379 : vector<1x32x128xbf16> to vector<32x128xbf16>
    %cst_148 = arith.constant dense<0.000000e+00> : vector<8x128xf32>
    %381 = tpu.matmul %378, %380, %cst_148 {dimension_numbers = #tpu.dot_dimension_numbers<[1], [0], [0], [1], [0, 0, 1, 1], [], []>} : vector<8x32xbf16>, vector<32x128xbf16>, vector<8x128xf32> -> vector<8x128xf32>
    %c1_149 = arith.constant 1 : index
    %c0_150 = arith.constant 0 : index
    %c0_151 = arith.constant 0 : index
    %382 = vector.load %arg5[%c1_149, %c0_150, %c0_151] : memref<2x1x128xf32, #tpu.memory_space<vmem>>, vector<1x1x128xf32>
    %383 = vector.shape_cast %382 : vector<1x1x128xf32> to vector<1x128xf32>
    %384 = vector.broadcast %383 : vector<1x128xf32> to vector<8x128xf32>
    %385 = arith.addf %381, %384 : vector<8x128xf32>
    %386 = arith.truncf %356 : vector<8x32xf32> to vector<8x32xbf16>
    %c1_152 = arith.constant 1 : index
    %c0_153 = arith.constant 0 : index
    %c0_154 = arith.constant 0 : index
    %387 = vector.load %arg4[%c1_152, %c0_153, %c0_154] : memref<2x32x128xbf16, #tpu.memory_space<vmem>>, vector<1x32x128xbf16>
    %388 = vector.shape_cast %387 : vector<1x32x128xbf16> to vector<32x128xbf16>
    %cst_155 = arith.constant dense<0.000000e+00> : vector<8x128xf32>
    %389 = tpu.matmul %386, %388, %cst_155 {dimension_numbers = #tpu.dot_dimension_numbers<[1], [0], [0], [1], [0, 0, 1, 1], [], []>} : vector<8x32xbf16>, vector<32x128xbf16>, vector<8x128xf32> -> vector<8x128xf32>
    %390 = arith.addf %385, %389 : vector<8x128xf32>
    %391 = arith.negf %390 : vector<8x128xf32>
    %392 = math.exp %391 : vector<8x128xf32>
    %cst_156 = arith.constant 1.000000e+00 : f32
    %393 = vector.broadcast %cst_156 : f32 to vector<8x128xf32>
    %394 = arith.addf %393, %392 : vector<8x128xf32>
    %395 = arith.divf %393, %394 : vector<8x128xf32>
    %396 = math.tanh %390 : vector<8x128xf32>
    %397 = vector.extract_strided_slice %395 {offsets = [0, 0], sizes = [8, 32], strides = [1, 1]} : vector<8x128xf32> to vector<8x32xf32>
    %398 = vector.extract_strided_slice %395 {offsets = [0, 32], sizes = [8, 32], strides = [1, 1]} : vector<8x128xf32> to vector<8x32xf32>
    %399 = vector.extract_strided_slice %396 {offsets = [0, 64], sizes = [8, 32], strides = [1, 1]} : vector<8x128xf32> to vector<8x32xf32>
    %400 = vector.extract_strided_slice %395 {offsets = [0, 96], sizes = [8, 32], strides = [1, 1]} : vector<8x128xf32> to vector<8x32xf32>
    %401 = arith.mulf %398, %354 : vector<8x32xf32>
    %402 = arith.mulf %397, %399 : vector<8x32xf32>
    %403 = arith.addf %401, %402 : vector<8x32xf32>
    %404 = math.tanh %403 : vector<8x32xf32>
    %405 = arith.mulf %400, %404 : vector<8x32xf32>
    %406 = vector.extract_strided_slice %54 {offsets = [56, 0], sizes = [8, 128], strides = [1, 1]} : vector<64x128xf32> to vector<8x128xf32>
    %407 = arith.truncf %377 : vector<8x32xf32> to vector<8x32xbf16>
    %c0_157 = arith.constant 0 : index
    %c0_158 = arith.constant 0 : index
    %c0_159 = arith.constant 0 : index
    %408 = vector.load %arg4[%c0_157, %c0_158, %c0_159] : memref<2x32x128xbf16, #tpu.memory_space<vmem>>, vector<1x32x128xbf16>
    %409 = vector.shape_cast %408 : vector<1x32x128xbf16> to vector<32x128xbf16>
    %cst_160 = arith.constant dense<0.000000e+00> : vector<8x128xf32>
    %410 = tpu.matmul %407, %409, %cst_160 {dimension_numbers = #tpu.dot_dimension_numbers<[1], [0], [0], [1], [0, 0, 1, 1], [], []>} : vector<8x32xbf16>, vector<32x128xbf16>, vector<8x128xf32> -> vector<8x128xf32>
    %411 = arith.addf %406, %410 : vector<8x128xf32>
    %412 = arith.negf %411 : vector<8x128xf32>
    %413 = math.exp %412 : vector<8x128xf32>
    %cst_161 = arith.constant 1.000000e+00 : f32
    %414 = vector.broadcast %cst_161 : f32 to vector<8x128xf32>
    %415 = arith.addf %414, %413 : vector<8x128xf32>
    %416 = arith.divf %414, %415 : vector<8x128xf32>
    %417 = math.tanh %411 : vector<8x128xf32>
    %418 = vector.extract_strided_slice %416 {offsets = [0, 0], sizes = [8, 32], strides = [1, 1]} : vector<8x128xf32> to vector<8x32xf32>
    %419 = vector.extract_strided_slice %416 {offsets = [0, 32], sizes = [8, 32], strides = [1, 1]} : vector<8x128xf32> to vector<8x32xf32>
    %420 = vector.extract_strided_slice %417 {offsets = [0, 64], sizes = [8, 32], strides = [1, 1]} : vector<8x128xf32> to vector<8x32xf32>
    %421 = vector.extract_strided_slice %416 {offsets = [0, 96], sizes = [8, 32], strides = [1, 1]} : vector<8x128xf32> to vector<8x32xf32>
    %422 = arith.mulf %419, %375 : vector<8x32xf32>
    %423 = arith.mulf %418, %420 : vector<8x32xf32>
    %424 = arith.addf %422, %423 : vector<8x32xf32>
    %425 = math.tanh %424 : vector<8x32xf32>
    %426 = arith.mulf %421, %425 : vector<8x32xf32>
    %427 = arith.truncf %426 : vector<8x32xf32> to vector<8x32xbf16>
    %c1_162 = arith.constant 1 : index
    %c0_163 = arith.constant 0 : index
    %c0_164 = arith.constant 0 : index
    %428 = vector.load %arg3[%c1_162, %c0_163, %c0_164] : memref<2x32x128xbf16, #tpu.memory_space<vmem>>, vector<1x32x128xbf16>
    %429 = vector.shape_cast %428 : vector<1x32x128xbf16> to vector<32x128xbf16>
    %cst_165 = arith.constant dense<0.000000e+00> : vector<8x128xf32>
    %430 = tpu.matmul %427, %429, %cst_165 {dimension_numbers = #tpu.dot_dimension_numbers<[1], [0], [0], [1], [0, 0, 1, 1], [], []>} : vector<8x32xbf16>, vector<32x128xbf16>, vector<8x128xf32> -> vector<8x128xf32>
    %c1_166 = arith.constant 1 : index
    %c0_167 = arith.constant 0 : index
    %c0_168 = arith.constant 0 : index
    %431 = vector.load %arg5[%c1_166, %c0_167, %c0_168] : memref<2x1x128xf32, #tpu.memory_space<vmem>>, vector<1x1x128xf32>
    %432 = vector.shape_cast %431 : vector<1x1x128xf32> to vector<1x128xf32>
    %433 = vector.broadcast %432 : vector<1x128xf32> to vector<8x128xf32>
    %434 = arith.addf %430, %433 : vector<8x128xf32>
    %435 = arith.truncf %405 : vector<8x32xf32> to vector<8x32xbf16>
    %c1_169 = arith.constant 1 : index
    %c0_170 = arith.constant 0 : index
    %c0_171 = arith.constant 0 : index
    %436 = vector.load %arg4[%c1_169, %c0_170, %c0_171] : memref<2x32x128xbf16, #tpu.memory_space<vmem>>, vector<1x32x128xbf16>
    %437 = vector.shape_cast %436 : vector<1x32x128xbf16> to vector<32x128xbf16>
    %cst_172 = arith.constant dense<0.000000e+00> : vector<8x128xf32>
    %438 = tpu.matmul %435, %437, %cst_172 {dimension_numbers = #tpu.dot_dimension_numbers<[1], [0], [0], [1], [0, 0, 1, 1], [], []>} : vector<8x32xbf16>, vector<32x128xbf16>, vector<8x128xf32> -> vector<8x128xf32>
    %439 = arith.addf %434, %438 : vector<8x128xf32>
    %440 = arith.negf %439 : vector<8x128xf32>
    %441 = math.exp %440 : vector<8x128xf32>
    %cst_173 = arith.constant 1.000000e+00 : f32
    %442 = vector.broadcast %cst_173 : f32 to vector<8x128xf32>
    %443 = arith.addf %442, %441 : vector<8x128xf32>
    %444 = arith.divf %442, %443 : vector<8x128xf32>
    %445 = math.tanh %439 : vector<8x128xf32>
    %446 = vector.extract_strided_slice %444 {offsets = [0, 0], sizes = [8, 32], strides = [1, 1]} : vector<8x128xf32> to vector<8x32xf32>
    %447 = vector.extract_strided_slice %444 {offsets = [0, 32], sizes = [8, 32], strides = [1, 1]} : vector<8x128xf32> to vector<8x32xf32>
    %448 = vector.extract_strided_slice %445 {offsets = [0, 64], sizes = [8, 32], strides = [1, 1]} : vector<8x128xf32> to vector<8x32xf32>
    %449 = vector.extract_strided_slice %444 {offsets = [0, 96], sizes = [8, 32], strides = [1, 1]} : vector<8x128xf32> to vector<8x32xf32>
    %450 = arith.mulf %447, %403 : vector<8x32xf32>
    %451 = arith.mulf %446, %448 : vector<8x32xf32>
    %452 = arith.addf %450, %451 : vector<8x32xf32>
    %453 = math.tanh %452 : vector<8x32xf32>
    %454 = arith.mulf %449, %453 : vector<8x32xf32>
    %455 = vector.extract_strided_slice %426 {offsets = [0, 0], sizes = [2, 32], strides = [1, 1]} : vector<8x32xf32> to vector<2x32xf32>
    %c0_174 = arith.constant 0 : index
    %c0_175 = arith.constant 0 : index
    %c0_176 = arith.constant 0 : index
    %456 = vector.load %arg8[%c0_174, %c0_175, %c0_176] : memref<2x2x32xf32, #tpu.memory_space<vmem>>, vector<1x2x32xf32>
    %457 = vector.shape_cast %456 : vector<1x2x32xf32> to vector<2x32xf32>
    %458 = vector.shape_cast %455 : vector<2x32xf32> to vector<1x2x32xf32>
    tpu.vector_store %arg8[%c0_174, %c0_175, %c0_176], %458 {strides = array<i32>} : memref<2x2x32xf32, #tpu.memory_space<vmem>>, vector<1x2x32xf32>,
    %459 = vector.extract_strided_slice %424 {offsets = [0, 0], sizes = [2, 32], strides = [1, 1]} : vector<8x32xf32> to vector<2x32xf32>
    %c0_177 = arith.constant 0 : index
    %c0_178 = arith.constant 0 : index
    %c0_179 = arith.constant 0 : index
    %460 = vector.load %arg9[%c0_177, %c0_178, %c0_179] : memref<2x2x32xf32, #tpu.memory_space<vmem>>, vector<1x2x32xf32>
    %461 = vector.shape_cast %460 : vector<1x2x32xf32> to vector<2x32xf32>
    %462 = vector.shape_cast %459 : vector<2x32xf32> to vector<1x2x32xf32>
    tpu.vector_store %arg9[%c0_177, %c0_178, %c0_179], %462 {strides = array<i32>} : memref<2x2x32xf32, #tpu.memory_space<vmem>>, vector<1x2x32xf32>,
    %463 = vector.extract_strided_slice %454 {offsets = [0, 0], sizes = [2, 32], strides = [1, 1]} : vector<8x32xf32> to vector<2x32xf32>
    %c1_180 = arith.constant 1 : index
    %c0_181 = arith.constant 0 : index
    %c0_182 = arith.constant 0 : index
    %464 = vector.load %arg8[%c1_180, %c0_181, %c0_182] : memref<2x2x32xf32, #tpu.memory_space<vmem>>, vector<1x2x32xf32>
    %465 = vector.shape_cast %464 : vector<1x2x32xf32> to vector<2x32xf32>
    %466 = vector.shape_cast %463 : vector<2x32xf32> to vector<1x2x32xf32>
    tpu.vector_store %arg8[%c1_180, %c0_181, %c0_182], %466 {strides = array<i32>} : memref<2x2x32xf32, #tpu.memory_space<vmem>>, vector<1x2x32xf32>,
    %467 = vector.extract_strided_slice %452 {offsets = [0, 0], sizes = [2, 32], strides = [1, 1]} : vector<8x32xf32> to vector<2x32xf32>
    %c1_183 = arith.constant 1 : index
    %c0_184 = arith.constant 0 : index
    %c0_185 = arith.constant 0 : index
    %468 = vector.load %arg9[%c1_183, %c0_184, %c0_185] : memref<2x2x32xf32, #tpu.memory_space<vmem>>, vector<1x2x32xf32>
    %469 = vector.shape_cast %468 : vector<1x2x32xf32> to vector<2x32xf32>
    %470 = vector.shape_cast %467 : vector<2x32xf32> to vector<1x2x32xf32>
    tpu.vector_store %arg9[%c1_183, %c0_184, %c0_185], %470 {strides = array<i32>} : memref<2x2x32xf32, #tpu.memory_space<vmem>>, vector<1x2x32xf32>,
    %471 = vector.extract_strided_slice %452 {offsets = [0, 0], sizes = [1, 32], strides = [1, 1]} : vector<8x32xf32> to vector<1x32xf32>
    %c0_186 = arith.constant 0 : index
    %c0_187 = arith.constant 0 : index
    %472 = vector.load %arg10[%c0_186, %c0_187] : memref<1x32xf32, #tpu.memory_space<vmem>>, vector<1x32xf32>
    tpu.vector_store %arg10[%c0_186, %c0_187], %471 {strides = array<i32>} : memref<1x32xf32, #tpu.memory_space<vmem>>, vector<1x32xf32>,
    return
  }
}

</mosaic_0001>

<llo_original>
// kernel: tpu_custom_call.1
$region0: #{tpu_custom_call.1}
  #allocation0 [shape = 'u32[]', space=smem, size = 0x4, offset = 0x4, fixed_abs, tag = 'smem constant byte address 0x4 - core index']
  #allocation1 [shape = 'u32[144,128]{1,0:T(1,128)}', space=vmem, size = 0x12000, scoped, tag = 'internal scratch']
  %s0 = inlined_call_operand.vmem [shape: f32[64,32], index: 0, kind: input, shape index: {}]
  %s1 = inlined_call_operand.vmem [shape: bf16[2,32,96], index: 1, kind: input, shape index: {}]
  %s2 = inlined_call_operand.vmem [shape: f32[2,1,96], index: 2, kind: input, shape index: {}]
  %s3 = inlined_call_operand.vmem [shape: bf16[2,32,128], index: 3, kind: input, shape index: {}]
  %s4 = inlined_call_operand.vmem [shape: bf16[2,32,128], index: 4, kind: input, shape index: {}]
  %s5 = inlined_call_operand.hbm [shape: f32[2,1,128], index: 5, kind: input, shape index: {}]
  %s6 = inlined_call_operand.vmem [shape: f32[2,8,32], index: 6, kind: input, shape index: {}]
  %s7 = inlined_call_operand.hbm [shape: f32[2,8,32], index: 7, kind: input, shape index: {}]
  %s8 = inlined_call_operand.hbm [shape: f32[2,2,32], index: 8, kind: output, shape index: {0}]
  %s9 = inlined_call_operand.hbm [shape: f32[2,2,32], index: 9, kind: output, shape index: {1}]
  %s10 = inlined_call_operand.hbm [shape: f32[1,32], index: 10, kind: output, shape index: {2}]
  %11 = xla_tuple %s8, %s9, %s10
  %s12 = sld [smem:[#allocation0]]
  $region66: #{tpu_custom_call.1} parent=0
    _
  %s14 = ssub.s32 1, %s12
  %s15 = scalar_select 0, %s14, %s12
  $region1: #{tpu_custom_call.1} parent=0
    #allocation2 [shape = 'u8[1024]{0}', space=vmem, size = 0x400, scoped, tag = 'input window, operand 5, single buffered']
    #allocation3 [shape = 's32[1]{0}', space=sflag, size = 0x4, scoped, tag = 'scoped memory for tpu_custom_call.1']
    #allocation4 [shape = 's32[1]{0}', space=sflag, size = 0x4, scoped, tag = 'scoped memory for tpu_custom_call.1']
    #allocation5 [shape = 'u8[8192]{0}', space=vmem, size = 0x2000, scoped, tag = 'input window, operand 7, single buffered']
    #allocation6 [shape = 's32[1]{0}', space=sflag, size = 0x4, scoped, tag = 'scoped memory for tpu_custom_call.1']
    #allocation7 [shape = 'u8[2048]{0}', space=vmem, size = 0x800, scoped, tag = 'output window, operand 0, single buffered']
    #allocation8 [shape = 'u8[2048]{0}', space=vmem, size = 0x800, scoped, tag = 'output window, operand 1, single buffered']
    #allocation9 [shape = 's32[1]{0}', space=sflag, size = 0x4, scoped, tag = 'scoped memory for tpu_custom_call.1']
    #allocation10 [shape = 'u8[512]{0}', space=vmem, size = 0x400, scoped, tag = 'output window, operand 2, single buffered']
    %16 = vsyncpa [#allocation3], 0
    %17 = vsyncpa [#allocation6], 0
    %18 = vsyncpa [#allocation4], 0
    %19 = vsyncpa [#allocation9], 0
    // Predicated region
    $region2: #{tpu_custom_call.1} parent=1 // pred_check
      _
    $region3: #{tpu_custom_call.1} parent=1 // pred_check_branch
      %21 = sbr.rel (0) target = $region5
    $region4: #{tpu_custom_call.1} parent=1 // pred_region
      _
    $region5: #{tpu_custom_call.1} parent=1 // pred_fallthru
      _
    // Predicated region
    $region6: #{tpu_custom_call.1} parent=1 // pred_check
      _
    $region7: #{tpu_custom_call.1} parent=1 // pred_check_branch
      %23 = sbr.rel (0) target = $region9
    $region8: #{tpu_custom_call.1} parent=1 // pred_region
      _
    $region9: #{tpu_custom_call.1} parent=1 // pred_fallthru
      _
    // Predicated region
    $region10: #{tpu_custom_call.1} parent=1 // pred_check
      _
    $region11: #{tpu_custom_call.1} parent=1 // pred_check_branch
      %25 = sbr.rel (0) target = $region13
    $region12: #{tpu_custom_call.1} parent=1 // pred_region
      _
    $region13: #{tpu_custom_call.1} parent=1 // pred_fallthru
      _
    // Predicated region
    $region14: #{tpu_custom_call.1} parent=1 // pred_check
      _
    $region15: #{tpu_custom_call.1} parent=1 // pred_check_branch
      %27 = sbr.rel (0) target = $region17
    $region16: #{tpu_custom_call.1} parent=1 // pred_region
      _
    $region17: #{tpu_custom_call.1} parent=1 // pred_fallthru
      _
    // Predicated region
    $region18: #{tpu_custom_call.1} parent=1 // pred_check
      _
    $region19: #{tpu_custom_call.1} parent=1 // pred_check_branch
      %29 = sbr.rel (0) target = $region21
    $region20: #{tpu_custom_call.1} parent=1 // pred_region
      _
    $region21: #{tpu_custom_call.1} parent=1 // pred_fallthru
      _
    // Predicated region
    $region22: #{tpu_custom_call.1} parent=1 // pred_check
      _
    $region23: #{tpu_custom_call.1} parent=1 // pred_check_branch
      %31 = sbr.rel (0) target = $region25
    $region24: #{tpu_custom_call.1} parent=1 // pred_region
      %s33 = ssub.s32 32, 32
      %34 = vsyncadd [#allocation3], %s33
      %s35 = sshll.u32 [#allocation2], 4
      %s36 = int_to_ptr.vmem [resolvable:$true] %s35
      %41 = dma.hbm_to_vmem [thread:$0]  %s5, 32, %s36, [#allocation3], 16, 16, 1
    $region25: #{tpu_custom_call.1} parent=1 // pred_fallthru
      _
    // Predicated region
    $region26: #{tpu_custom_call.1} parent=1 // pred_check
      _
    $region27: #{tpu_custom_call.1} parent=1 // pred_check_branch
      %43 = sbr.rel (0) target = $region29
    $region28: #{tpu_custom_call.1} parent=1 // pred_region
      _
    $region29: #{tpu_custom_call.1} parent=1 // pred_fallthru
      _
    // Predicated region
    $region30: #{tpu_custom_call.1} parent=1 // pred_check
      _
    $region31: #{tpu_custom_call.1} parent=1 // pred_check_branch
      %45 = sbr.rel (0) target = $region33
    $region32: #{tpu_custom_call.1} parent=1 // pred_region
      %s47 = ssub.s32 256, 256
      %48 = vsyncadd [#allocation6], %s47
      %s49 = sshll.u32 [#allocation5], 4
      %s50 = int_to_ptr.vmem [resolvable:$true] %s49
      %55 = dma.hbm_to_vmem [thread:$0]  %s7, 256, %s50, [#allocation6], 128, 128, 8
    $region33: #{tpu_custom_call.1} parent=1 // pred_fallthru
      _
    // Predicated region
    $region34: #{tpu_custom_call.1} parent=1 // pred_check
      _
    $region35: #{tpu_custom_call.1} parent=1 // pred_check_branch
      %57 = sbr.rel (0) target = $region37
    $region36: #{tpu_custom_call.1} parent=1 // pred_region
      %58 = dma.done [#allocation3], 32
    $region37: #{tpu_custom_call.1} parent=1 // pred_fallthru
      _
    // Predicated region
    $region38: #{tpu_custom_call.1} parent=1 // pred_check
      _
    $region39: #{tpu_custom_call.1} parent=1 // pred_check_branch
      %60 = sbr.rel (0) target = $region41
    $region40: #{tpu_custom_call.1} parent=1 // pred_region
      %61 = dma.done [#allocation6], 256
    $region41: #{tpu_custom_call.1} parent=1 // pred_fallthru
      _
    %v63 = vld [vmem:[%s0] sm:$0xff]
    %v64 = vld [vmem:[%s0 + $0x8] sm:$0xff]
    %v65 = vld [vmem:[%s0 + $0x10] sm:$0xff]
    %v66 = vld [vmem:[%s0 + $0x18] sm:$0xff]
    %v67 = vld [vmem:[%s0 + $0x20] sm:$0xff]
    %v68 = vld [vmem:[%s0 + $0x28] sm:$0xff]
    %v69 = vld [vmem:[%s0 + $0x30] sm:$0xff]
    %v70 = vld [vmem:[%s0 + $0x38] sm:$0xff]
    %v71 = vpack.c.bf16 %v64, %v63
    %v72 = vpack.c.bf16 %v66, %v65
    %v73 = vpack.c.bf16 %v68, %v67
    %v74 = vpack.c.bf16 %v70, %v69
    %v75 = vld [vmem:[%s1] sm:$0xf]
    %v76 = vld [vmem:[%s1 + $0x4] sm:$0xf]
    %v77 = vld [vmem:[%s1 + $0x8] sm:$0xf]
    %v78 = vld [vmem:[%s1 + $0xc] sm:$0xf]
    %v79 = vld [vmem:[%s2] sm:$0x1]
    %v81 = vlaneseq
    %v82 = vshrl.u32 %v81, 7
    %v83 = vsub.s32 0, %v82
    %v84 = vrot.slane %v79, %v83
    %v90 = vunpack.c.l.b16 %v75
    %v91 = vunpack.c.l.b16 %v76
    %v92 = vunpack.c.l.b16 %v77
    %v93 = vunpack.c.l.b16 %v78
    %v94 = vpack.c.b16 %v91, %v90
    %v95 = vpack.c.b16 %v93, %v92
    %vm98 = vcmask 261120
    %v100 = vsel %vm98, %v71, 0
    %v103 = vsel %vm98, %v72, 0
    %v106 = vsel %vm98, %v73, 0
    %v109 = vsel %vm98, %v74, 0
    %111 = vmatprep.subr.bf16.mxu0 0
    %112 = vmatpush1.bf16.msra.mxu0 %v94
    %113 = vmatprep.subr.bf16.mxu0 0
    %114 = vmatpush1.bf16.msra.mxu0 %v95
    %115 = vmatprep.subr.bf16.mxu0 0
    %116 = vmatpush1.bf16.msra.mxu0 0
    %117 = vmatprep.subr.bf16.mxu0 0
    %118 = vmatpush1.bf16.msra.mxu0 0
    %119 = vmatprep.subr.bf16.mxu0 0
    %120 = vmatpush1.bf16.msra.mxu0 0
    %121 = vmatprep.subr.bf16.mxu0 0
    %122 = vmatpush1.bf16.msra.mxu0 0
    %123 = vmatprep.subr.bf16.mxu0 0
    %124 = vmatpush1.bf16.msra.mxu0 0
    %125 = vmatprep.subr.bf16.mxu0 0
    %126 = vmatpush1.bf16.msra.mxu0 0
    %127 = vmatprep.subr.bf16.mxu0 0
    %128 = vmatpush1.bf16.msra.mxu0 0
    %129 = vmatprep.subr.bf16.mxu0 0
    %130 = vmatpush1.bf16.msra.mxu0 0
    %131 = vmatprep.subr.bf16.mxu0 0
    %132 = vmatpush1.bf16.msra.mxu0 0
    %133 = vmatprep.subr.bf16.mxu0 0
    %134 = vmatpush1.bf16.msra.mxu0 0
    %135 = vmatprep.subr.bf16.mxu0 0
    %136 = vmatpush1.bf16.msra.mxu0 0
    %137 = vmatprep.subr.bf16.mxu0 0
    %138 = vmatpush1.bf16.msra.mxu0 0
    %139 = vmatprep.subr.bf16.mxu0 0
    %140 = vmatpush1.bf16.msra.mxu0 0
    %141 = vmatprep.subr.bf16.mxu0 0
    %142 = vmatpush1.bf16.msra.mxu0 0
    %143 = vmatprep.mubr.bf16.mxu0 0
    %144 = vmatmul.mubr.bf16.gmra.mrb[0].mxu0 %v100
    %v145 = vpop.f32.mrb[0].mxu0
    %v146 = vadd.f32 %v84, %v145
    %v147 = vpop.f32.mrb[0].mxu0
    %v148 = vpop.f32.mrb[0].mxu0
    %v149 = vadd.f32 %v84, %v148
    %v150 = vpop.f32.mrb[0].mxu0
    %151 = vmatprep.mubr.bf16.mxu0 0
    %152 = vmatmul.mubr.bf16.gmra.mrb[0].mxu0 %v103
    %v153 = vpop.f32.mrb[0].mxu0
    %v154 = vadd.f32 %v84, %v153
    %v155 = vpop.f32.mrb[0].mxu0
    %v156 = vpop.f32.mrb[0].mxu0
    %v157 = vadd.f32 %v84, %v156
    %v158 = vpop.f32.mrb[0].mxu0
    %159 = vmatprep.mubr.bf16.mxu0 0
    %160 = vmatmul.mubr.bf16.gmra.mrb[0].mxu0 %v106
    %v161 = vpop.f32.mrb[0].mxu0
    %v162 = vadd.f32 %v84, %v161
    %v163 = vpop.f32.mrb[0].mxu0
    %v164 = vpop.f32.mrb[0].mxu0
    %v165 = vadd.f32 %v84, %v164
    %v166 = vpop.f32.mrb[0].mxu0
    %167 = vmatprep.mubr.bf16.mxu0 0
    %168 = vmatmul.mubr.bf16.gmra.mrb[0].mxu0 %v109
    %v169 = vpop.f32.mrb[0].mxu0
    %v170 = vadd.f32 %v84, %v169
    %v171 = vpop.f32.mrb[0].mxu0
    %v172 = vpop.f32.mrb[0].mxu0
    %v173 = vadd.f32 %v84, %v172
    %v174 = vpop.f32.mrb[0].mxu0
    %175 = vdwg.mxu0
    %v176 = vxor.u32 %v146, 2147483648
    %v177 = vxor.u32 %v149, 2147483648
    %v178 = vxor.u32 %v154, 2147483648
    %v179 = vxor.u32 %v157, 2147483648
    %v180 = vxor.u32 %v162, 2147483648
    %v181 = vxor.u32 %v165, 2147483648
    %v182 = vxor.u32 %v170, 2147483648
    %v183 = vxor.u32 %v173, 2147483648
    %v184 = vmul.f32 %v176, 1.442695
    %v185 = vpow.pop %v184
    %v186 = vmul.f32 %v177, 1.442695
    %v187 = vpow.pop %v186
    %v188 = vmul.f32 %v178, 1.442695
    %v189 = vpow.pop %v188
    %v190 = vmul.f32 %v179, 1.442695
    %v191 = vpow.pop %v190
    %v192 = vmul.f32 %v180, 1.442695
    %v193 = vpow.pop %v192
    %v194 = vmul.f32 %v181, 1.442695
    %v195 = vpow.pop %v194
    %v196 = vmul.f32 %v182, 1.442695
    %v197 = vpow.pop %v196
    %v198 = vmul.f32 %v183, 1.442695
    %v199 = vpow.pop %v198
    %v200 = vadd.f32 %v185, 1.0
    %v201 = vadd.f32 %v187, 1.0
    %v202 = vadd.f32 %v189, 1.0
    %v203 = vadd.f32 %v191, 1.0
    %v204 = vadd.f32 %v193, 1.0
    %v205 = vadd.f32 %v195, 1.0
    %v206 = vadd.f32 %v197, 1.0
    %v207 = vadd.f32 %v199, 1.0
    %v208 = vrcp.pop %v200
    %v209 = vmul.f32 1.0, %v208
    %v210 = vrcp.pop %v201
    %v211 = vmul.f32 1.0, %v210
    %v212 = vrcp.pop %v202
    %v213 = vmul.f32 1.0, %v212
    %v214 = vrcp.pop %v203
    %v215 = vmul.f32 1.0, %v214
    %v216 = vrcp.pop %v204
    %v217 = vmul.f32 1.0, %v216
    %v218 = vrcp.pop %v205
    %v219 = vmul.f32 1.0, %v218
    %v220 = vrcp.pop %v206
    %v221 = vmul.f32 1.0, %v220
    %v222 = vrcp.pop %v207
    %v223 = vmul.f32 1.0, %v222
    %v224 = vmax.f32 %v146, 0.0
    %v225 = vmax.f32 %v149, 0.0
    %v226 = vmax.f32 %v154, 0.0
    %v227 = vmax.f32 %v157, 0.0
    %v228 = vmax.f32 %v162, 0.0
    %v229 = vmax.f32 %v165, 0.0
    %v230 = vmax.f32 %v170, 0.0
    %v231 = vmax.f32 %v173, 0.0
    %240 = vrot.lane.b32.xlu0 %v224, 96
    %v241 = vpop.permute.xlu0 %240
    %242 = vrot.lane.b32.xlu0 %v225, 96
    %v243 = vpop.permute.xlu0 %242
    %244 = vrot.lane.b32.xlu0 %v226, 96
    %v245 = vpop.permute.xlu0 %244
    %246 = vrot.lane.b32.xlu0 %v227, 96
    %v247 = vpop.permute.xlu0 %246
    %248 = vrot.lane.b32.xlu0 %v228, 96
    %v249 = vpop.permute.xlu0 %248
    %250 = vrot.lane.b32.xlu0 %v229, 96
    %v251 = vpop.permute.xlu0 %250
    %252 = vrot.lane.b32.xlu0 %v230, 96
    %v253 = vpop.permute.xlu0 %252
    %254 = vrot.lane.b32.xlu0 %v231, 96
    %v255 = vpop.permute.xlu0 %254
    %v264 = vmul.f32 %v209, %v241
    %v265 = vmul.f32 %v211, %v243
    %v266 = vmul.f32 %v213, %v245
    %v267 = vmul.f32 %v215, %v247
    %v268 = vmul.f32 %v217, %v249
    %v269 = vmul.f32 %v219, %v251
    %v270 = vmul.f32 %v221, %v253
    %v271 = vmul.f32 %v223, %v255
    %v272 = vsub.f32 1.0, %v209
    %v273 = vsub.f32 1.0, %v211
    %v274 = vsub.f32 1.0, %v213
    %v275 = vsub.f32 1.0, %v215
    %v276 = vsub.f32 1.0, %v217
    %v277 = vsub.f32 1.0, %v219
    %v278 = vsub.f32 1.0, %v221
    %v279 = vsub.f32 1.0, %v223
    %288 = vrot.lane.b32.xlu0 %v146, 64
    %v289 = vpop.permute.xlu0 %288
    %290 = vrot.lane.b32.xlu0 %v149, 64
    %v291 = vpop.permute.xlu0 %290
    %292 = vrot.lane.b32.xlu0 %v154, 64
    %v293 = vpop.permute.xlu0 %292
    %294 = vrot.lane.b32.xlu0 %v157, 64
    %v295 = vpop.permute.xlu0 %294
    %296 = vrot.lane.b32.xlu0 %v162, 64
    %v297 = vpop.permute.xlu0 %296
    %298 = vrot.lane.b32.xlu0 %v165, 64
    %v299 = vpop.permute.xlu0 %298
    %300 = vrot.lane.b32.xlu0 %v170, 64
    %v301 = vpop.permute.xlu0 %300
    %302 = vrot.lane.b32.xlu0 %v173, 64
    %v303 = vpop.permute.xlu0 %302
    %v312 = vmul.f32 %v272, %v289
    %v313 = vmul.f32 %v273, %v291
    %v314 = vmul.f32 %v274, %v293
    %v315 = vmul.f32 %v275, %v295
    %v316 = vmul.f32 %v276, %v297
    %v317 = vmul.f32 %v277, %v299
    %v318 = vmul.f32 %v278, %v301
    %v319 = vmul.f32 %v279, %v303
    %v320 = vadd.f32 %v264, %v312
    %v321 = vadd.f32 %v265, %v313
    %v322 = vadd.f32 %v266, %v314
    %v323 = vadd.f32 %v267, %v315
    %v324 = vadd.f32 %v268, %v316
    %v325 = vadd.f32 %v269, %v317
    %v326 = vadd.f32 %v270, %v318
    %v327 = vadd.f32 %v271, %v319
    %v328 = vpack.c.bf16 %v321, %v320
    %v329 = vpack.c.bf16 %v323, %v322
    %v330 = vpack.c.bf16 %v325, %v324
    %v331 = vpack.c.bf16 %v327, %v326
    %s332 = scalar_lea.vmem %s1, 16
    %v333 = vld [vmem:[%s332] sm:$0xf]
    %v334 = vld [vmem:[%s332 + $0x4] sm:$0xf]
    %v335 = vld [vmem:[%s332 + $0x8] sm:$0xf]
    %v336 = vld [vmem:[%s332 + $0xc] sm:$0xf]
    %s337 = scalar_lea.vmem %s2, 1
    %v338 = vld [vmem:[%s337] sm:$0x1]
    %v340 = vlaneseq
    %v341 = vshrl.u32 %v340, 7
    %v342 = vsub.s32 0, %v341
    %v343 = vrot.slane %v338, %v342
    %v349 = vunpack.c.l.b16 %v333
    %v350 = vunpack.c.l.b16 %v334
    %v351 = vunpack.c.l.b16 %v335
    %v352 = vunpack.c.l.b16 %v336
    %v353 = vpack.c.b16 %v350, %v349
    %v354 = vpack.c.b16 %v352, %v351
    %v358 = vsel %vm98, %v328, 0
    %v361 = vsel %vm98, %v329, 0
    %v364 = vsel %vm98, %v330, 0
    %v367 = vsel %vm98, %v331, 0
    %369 = vmatprep.subr.bf16.mxu0 0
    %370 = vmatpush1.bf16.msra.mxu0 %v353
    %371 = vmatprep.subr.bf16.mxu0 0
    %372 = vmatpush1.bf16.msra.mxu0 %v354
    %373 = vmatprep.subr.bf16.mxu0 0
    %374 = vmatpush1.bf16.msra.mxu0 0
    %375 = vmatprep.subr.bf16.mxu0 0
    %376 = vmatpush1.bf16.msra.mxu0 0
    %377 = vmatprep.subr.bf16.mxu0 0
    %378 = vmatpush1.bf16.msra.mxu0 0
    %379 = vmatprep.subr.bf16.mxu0 0
    %380 = vmatpush1.bf16.msra.mxu0 0
    %381 = vmatprep.subr.bf16.mxu0 0
    %382 = vmatpush1.bf16.msra.mxu0 0
    %383 = vmatprep.subr.bf16.mxu0 0
    %384 = vmatpush1.bf16.msra.mxu0 0
    %385 = vmatprep.subr.bf16.mxu0 0
    %386 = vmatpush1.bf16.msra.mxu0 0
    %387 = vmatprep.subr.bf16.mxu0 0
    %388 = vmatpush1.bf16.msra.mxu0 0
    %389 = vmatprep.subr.bf16.mxu0 0
    %390 = vmatpush1.bf16.msra.mxu0 0
    %391 = vmatprep.subr.bf16.mxu0 0
    %392 = vmatpush1.bf16.msra.mxu0 0
    %393 = vmatprep.subr.bf16.mxu0 0
    %394 = vmatpush1.bf16.msra.mxu0 0
    %395 = vmatprep.subr.bf16.mxu0 0
    %396 = vmatpush1.bf16.msra.mxu0 0
    %397 = vmatprep.subr.bf16.mxu0 0
    %398 = vmatpush1.bf16.msra.mxu0 0
    %399 = vmatprep.subr.bf16.mxu0 0
    %400 = vmatpush1.bf16.msra.mxu0 0
    %401 = vmatprep.mubr.bf16.mxu0 0
    %402 = vmatmul.mubr.bf16.gmra.mrb[0].mxu0 %v358
    %v403 = vpop.f32.mrb[0].mxu0
    %v404 = vadd.f32 %v343, %v403
    %v405 = vpop.f32.mrb[0].mxu0
    %v406 = vpop.f32.mrb[0].mxu0
    %v407 = vadd.f32 %v343, %v406
    %v408 = vpop.f32.mrb[0].mxu0
    %409 = vmatprep.mubr.bf16.mxu0 0
    %410 = vmatmul.mubr.bf16.gmra.mrb[0].mxu0 %v361
    %v411 = vpop.f32.mrb[0].mxu0
    %v412 = vadd.f32 %v343, %v411
    %v413 = vpop.f32.mrb[0].mxu0
    %v414 = vpop.f32.mrb[0].mxu0
    %v415 = vadd.f32 %v343, %v414
    %v416 = vpop.f32.mrb[0].mxu0
    %417 = vmatprep.mubr.bf16.mxu0 0
    %418 = vmatmul.mubr.bf16.gmra.mrb[0].mxu0 %v364
    %v419 = vpop.f32.mrb[0].mxu0
    %v420 = vadd.f32 %v343, %v419
    %v421 = vpop.f32.mrb[0].mxu0
    %v422 = vpop.f32.mrb[0].mxu0
    %v423 = vadd.f32 %v343, %v422
    %v424 = vpop.f32.mrb[0].mxu0
    %425 = vmatprep.mubr.bf16.mxu0 0
    %426 = vmatmul.mubr.bf16.gmra.mrb[0].mxu0 %v367
    %v427 = vpop.f32.mrb[0].mxu0
    %v428 = vadd.f32 %v343, %v427
    %v429 = vpop.f32.mrb[0].mxu0
    %v430 = vpop.f32.mrb[0].mxu0
    %v431 = vadd.f32 %v343, %v430
    %v432 = vpop.f32.mrb[0].mxu0
    %433 = vdwg.mxu0
    %v434 = vxor.u32 %v404, 2147483648
    %v435 = vxor.u32 %v407, 2147483648
    %v436 = vxor.u32 %v412, 2147483648
    %v437 = vxor.u32 %v415, 2147483648
    %v438 = vxor.u32 %v420, 2147483648
    %v439 = vxor.u32 %v423, 2147483648
    %v440 = vxor.u32 %v428, 2147483648
    %v441 = vxor.u32 %v431, 2147483648
    %v442 = vmul.f32 %v434, 1.442695
    %v443 = vpow.pop %v442
    %v444 = vmul.f32 %v435, 1.442695
    %v445 = vpow.pop %v444
    %v446 = vmul.f32 %v436, 1.442695
    %v447 = vpow.pop %v446
    %v448 = vmul.f32 %v437, 1.442695
    %v449 = vpow.pop %v448
    %v450 = vmul.f32 %v438, 1.442695
    %v451 = vpow.pop %v450
    %v452 = vmul.f32 %v439, 1.442695
    %v453 = vpow.pop %v452
    %v454 = vmul.f32 %v440, 1.442695
    %v455 = vpow.pop %v454
    %v456 = vmul.f32 %v441, 1.442695
    %v457 = vpow.pop %v456
    %v458 = vadd.f32 %v443, 1.0
    %v459 = vadd.f32 %v445, 1.0
    %v460 = vadd.f32 %v447, 1.0
    %v461 = vadd.f32 %v449, 1.0
    %v462 = vadd.f32 %v451, 1.0
    %v463 = vadd.f32 %v453, 1.0
    %v464 = vadd.f32 %v455, 1.0
    %v465 = vadd.f32 %v457, 1.0
    %v466 = vrcp.pop %v458
    %v467 = vmul.f32 1.0, %v466
    %v468 = vrcp.pop %v459
    %v469 = vmul.f32 1.0, %v468
    %v470 = vrcp.pop %v460
    %v471 = vmul.f32 1.0, %v470
    %v472 = vrcp.pop %v461
    %v473 = vmul.f32 1.0, %v472
    %v474 = vrcp.pop %v462
    %v475 = vmul.f32 1.0, %v474
    %v476 = vrcp.pop %v463
    %v477 = vmul.f32 1.0, %v476
    %v478 = vrcp.pop %v464
    %v479 = vmul.f32 1.0, %v478
    %v480 = vrcp.pop %v465
    %v481 = vmul.f32 1.0, %v480
    %v482 = vmax.f32 %v404, 0.0
    %v483 = vmax.f32 %v407, 0.0
    %v484 = vmax.f32 %v412, 0.0
    %v485 = vmax.f32 %v415, 0.0
    %v486 = vmax.f32 %v420, 0.0
    %v487 = vmax.f32 %v423, 0.0
    %v488 = vmax.f32 %v428, 0.0
    %v489 = vmax.f32 %v431, 0.0
    %498 = vrot.lane.b32.xlu0 %v482, 96
    %v499 = vpop.permute.xlu0 %498
    %500 = vrot.lane.b32.xlu0 %v483, 96
    %v501 = vpop.permute.xlu0 %500
    %502 = vrot.lane.b32.xlu0 %v484, 96
    %v503 = vpop.permute.xlu0 %502
    %504 = vrot.lane.b32.xlu0 %v485, 96
    %v505 = vpop.permute.xlu0 %504
    %506 = vrot.lane.b32.xlu0 %v486, 96
    %v507 = vpop.permute.xlu0 %506
    %508 = vrot.lane.b32.xlu0 %v487, 96
    %v509 = vpop.permute.xlu0 %508
    %510 = vrot.lane.b32.xlu0 %v488, 96
    %v511 = vpop.permute.xlu0 %510
    %512 = vrot.lane.b32.xlu0 %v489, 96
    %v513 = vpop.permute.xlu0 %512
    %v522 = vmul.f32 %v467, %v499
    %v523 = vmul.f32 %v469, %v501
    %v524 = vmul.f32 %v471, %v503
    %v525 = vmul.f32 %v473, %v505
    %v526 = vmul.f32 %v475, %v507
    %v527 = vmul.f32 %v477, %v509
    %v528 = vmul.f32 %v479, %v511
    %v529 = vmul.f32 %v481, %v513
    %v530 = vsub.f32 1.0, %v467
    %v531 = vsub.f32 1.0, %v469
    %v532 = vsub.f32 1.0, %v471
    %v533 = vsub.f32 1.0, %v473
    %v534 = vsub.f32 1.0, %v475
    %v535 = vsub.f32 1.0, %v477
    %v536 = vsub.f32 1.0, %v479
    %v537 = vsub.f32 1.0, %v481
    %546 = vrot.lane.b32.xlu0 %v404, 64
    %v547 = vpop.permute.xlu0 %546
    %548 = vrot.lane.b32.xlu0 %v407, 64
    %v549 = vpop.permute.xlu0 %548
    %550 = vrot.lane.b32.xlu0 %v412, 64
    %v551 = vpop.permute.xlu0 %550
    %552 = vrot.lane.b32.xlu0 %v415, 64
    %v553 = vpop.permute.xlu0 %552
    %554 = vrot.lane.b32.xlu0 %v420, 64
    %v555 = vpop.permute.xlu0 %554
    %556 = vrot.lane.b32.xlu0 %v423, 64
    %v557 = vpop.permute.xlu0 %556
    %558 = vrot.lane.b32.xlu0 %v428, 64
    %v559 = vpop.permute.xlu0 %558
    %560 = vrot.lane.b32.xlu0 %v431, 64
    %v561 = vpop.permute.xlu0 %560
    %v570 = vmul.f32 %v530, %v547
    %v571 = vmul.f32 %v531, %v549
    %v572 = vmul.f32 %v532, %v551
    %v573 = vmul.f32 %v533, %v553
    %v574 = vmul.f32 %v534, %v555
    %v575 = vmul.f32 %v535, %v557
    %v576 = vmul.f32 %v536, %v559
    %v577 = vmul.f32 %v537, %v561
    %v578 = vadd.f32 %v522, %v570
    %v579 = vadd.f32 %v523, %v571
    %v580 = vadd.f32 %v524, %v572
    %v581 = vadd.f32 %v525, %v573
    %v582 = vadd.f32 %v526, %v574
    %v583 = vadd.f32 %v527, %v575
    %v584 = vadd.f32 %v528, %v576
    %v585 = vadd.f32 %v529, %v577
    %v586 = vpack.c.bf16 %v579, %v578
    %v587 = vpack.c.bf16 %v581, %v580
    %v588 = vpack.c.bf16 %v583, %v582
    %v589 = vpack.c.bf16 %v585, %v584
    %v590 = vld [vmem:[%s3] sm:$0xf]
    %v591 = vld [vmem:[%s3 + $0x4] sm:$0xf]
    %v592 = vld [vmem:[%s3 + $0x8] sm:$0xf]
    %v593 = vld [vmem:[%s3 + $0xc] sm:$0xf]
    %v594 = vld [vmem:[#allocation2] sm:$0x1]
    %v596 = vlaneseq
    %v597 = vshrl.u32 %v596, 7
    %v598 = vsub.s32 0, %v597
    %v599 = vrot.slane %v594, %v598
    %v605 = vunpack.c.l.b16 %v590
    %v606 = vunpack.c.l.b16 %v591
    %v607 = vunpack.c.l.b16 %v592
    %v608 = vunpack.c.l.b16 %v593
    %v609 = vpack.c.b16 %v606, %v605
    %v610 = vpack.c.b16 %v608, %v607
    %v614 = vsel %vm98, %v586, 0
    %v617 = vsel %vm98, %v587, 0
    %v620 = vsel %vm98, %v588, 0
    %v623 = vsel %vm98, %v589, 0
    %625 = vmatprep.subr.bf16.mxu0 0
    %626 = vmatpush1.bf16.msra.mxu0 %v609
    %627 = vmatprep.subr.bf16.mxu0 0
    %628 = vmatpush1.bf16.msra.mxu0 %v610
    %629 = vmatprep.subr.bf16.mxu0 0
    %630 = vmatpush1.bf16.msra.mxu0 0
    %631 = vmatprep.subr.bf16.mxu0 0
    %632 = vmatpush1.bf16.msra.mxu0 0
    %633 = vmatprep.subr.bf16.mxu0 0
    %634 = vmatpush1.bf16.msra.mxu0 0
    %635 = vmatprep.subr.bf16.mxu0 0
    %636 = vmatpush1.bf16.msra.mxu0 0
    %637 = vmatprep.subr.bf16.mxu0 0
    %638 = vmatpush1.bf16.msra.mxu0 0
    %639 = vmatprep.subr.bf16.mxu0 0
    %640 = vmatpush1.bf16.msra.mxu0 0
    %641 = vmatprep.subr.bf16.mxu0 0
    %642 = vmatpush1.bf16.msra.mxu0 0
    %643 = vmatprep.subr.bf16.mxu0 0
    %644 = vmatpush1.bf16.msra.mxu0 0
    %645 = vmatprep.subr.bf16.mxu0 0
    %646 = vmatpush1.bf16.msra.mxu0 0
    %647 = vmatprep.subr.bf16.mxu0 0
    %648 = vmatpush1.bf16.msra.mxu0 0
    %649 = vmatprep.subr.bf16.mxu0 0
    %650 = vmatpush1.bf16.msra.mxu0 0
    %651 = vmatprep.subr.bf16.mxu0 0
    %652 = vmatpush1.bf16.msra.mxu0 0
    %653 = vmatprep.subr.bf16.mxu0 0
    %654 = vmatpush1.bf16.msra.mxu0 0
    %655 = vmatprep.subr.bf16.mxu0 0
    %656 = vmatpush1.bf16.msra.mxu0 0
    %657 = vmatprep.mubr.bf16.mxu0 0
    %658 = vmatmul.mubr.bf16.gmra.mrb[0].mxu0 %v614
    %v659 = vpop.f32.mrb[0].mxu0
    %v660 = vadd.f32 %v599, %v659
    %v661 = vpop.f32.mrb[0].mxu0
    %v662 = vpop.f32.mrb[0].mxu0
    %v663 = vadd.f32 %v599, %v662
    %v664 = vpop.f32.mrb[0].mxu0
    %665 = vmatprep.mubr.bf16.mxu0 0
    %666 = vmatmul.mubr.bf16.gmra.mrb[0].mxu0 %v617
    %v667 = vpop.f32.mrb[0].mxu0
    %v668 = vadd.f32 %v599, %v667
    %v669 = vpop.f32.mrb[0].mxu0
    %v670 = vpop.f32.mrb[0].mxu0
    %v671 = vadd.f32 %v599, %v670
    %v672 = vpop.f32.mrb[0].mxu0
    %673 = vmatprep.mubr.bf16.mxu0 0
    %674 = vmatmul.mubr.bf16.gmra.mrb[0].mxu0 %v620
    %v675 = vpop.f32.mrb[0].mxu0
    %v676 = vadd.f32 %v599, %v675
    %v677 = vpop.f32.mrb[0].mxu0
    %v678 = vpop.f32.mrb[0].mxu0
    %v679 = vadd.f32 %v599, %v678
    %v680 = vpop.f32.mrb[0].mxu0
    %681 = vmatprep.mubr.bf16.mxu0 0
    %682 = vmatmul.mubr.bf16.gmra.mrb[0].mxu0 %v623
    %v683 = vpop.f32.mrb[0].mxu0
    %v684 = vadd.f32 %v599, %v683
    %v685 = vpop.f32.mrb[0].mxu0
    %v686 = vpop.f32.mrb[0].mxu0
    %v687 = vadd.f32 %v599, %v686
    %v688 = vpop.f32.mrb[0].mxu0
    %689 = vdwg.mxu0
    %v690 = vld [vmem:[%s6] sm:$0xff]
    %s691 = scalar_lea.vmem %s6, 8
    %v692 = vld [vmem:[%s691] sm:$0xff]
    %v693 = vld [vmem:[#allocation5] sm:$0xff]
    %s694 = scalar_lea.vmem [#allocation5], 8
    %v695 = vld [vmem:[%s694] sm:$0xff]
    %v696 = vpack.c.bf16 %v690, %v690
    %v697 = vld [vmem:[%s4] sm:$0xf]
    %v698 = vld [vmem:[%s4 + $0x4] sm:$0xf]
    %v699 = vld [vmem:[%s4 + $0x8] sm:$0xf]
    %v700 = vld [vmem:[%s4 + $0xc] sm:$0xf]
    %v705 = vunpack.c.l.b16 %v697
    %v706 = vunpack.c.l.b16 %v698
    %v707 = vunpack.c.l.b16 %v699
    %v708 = vunpack.c.l.b16 %v700
    %v709 = vpack.c.b16 %v706, %v705
    %v710 = vpack.c.b16 %v708, %v707
    %v714 = vsel %vm98, %v696, 0
    %716 = vmatprep.subr.bf16.mxu0 0
    %717 = vmatpush1.bf16.msra.mxu0 %v709
    %718 = vmatprep.subr.bf16.mxu0 0
    %719 = vmatpush1.bf16.msra.mxu0 %v710
    %720 = vmatprep.subr.bf16.mxu0 0
    %721 = vmatpush1.bf16.msra.mxu0 0
    %722 = vmatprep.subr.bf16.mxu0 0
    %723 = vmatpush1.bf16.msra.mxu0 0
    %724 = vmatprep.subr.bf16.mxu0 0
    %725 = vmatpush1.bf16.msra.mxu0 0
    %726 = vmatprep.subr.bf16.mxu0 0
    %727 = vmatpush1.bf16.msra.mxu0 0
    %728 = vmatprep.subr.bf16.mxu0 0
    %729 = vmatpush1.bf16.msra.mxu0 0
    %730 = vmatprep.subr.bf16.mxu0 0
    %731 = vmatpush1.bf16.msra.mxu0 0
    %732 = vmatprep.subr.bf16.mxu0 0
    %733 = vmatpush1.bf16.msra.mxu0 0
    %734 = vmatprep.subr.bf16.mxu0 0
    %735 = vmatpush1.bf16.msra.mxu0 0
    %736 = vmatprep.subr.bf16.mxu0 0
    %737 = vmatpush1.bf16.msra.mxu0 0
    %738 = vmatprep.subr.bf16.mxu0 0
    %739 = vmatpush1.bf16.msra.mxu0 0
    %740 = vmatprep.subr.bf16.mxu0 0
    %741 = vmatpush1.bf16.msra.mxu0 0
    %742 = vmatprep.subr.bf16.mxu0 0
    %743 = vmatpush1.bf16.msra.mxu0 0
    %744 = vmatprep.subr.bf16.mxu0 0
    %745 = vmatpush1.bf16.msra.mxu0 0
    %746 = vmatprep.subr.bf16.mxu0 0
    %747 = vmatpush1.bf16.msra.mxu0 0
    %748 = vmatprep.mubr.bf16.mxu0 0
    %749 = vmatmul.mubr.bf16.gmra.mrb[0].mxu0 %v714
    %v750 = vpop.f32.mrb[0].mxu0
    %v751 = vadd.f32 0.0, %v750
    %v752 = vpop.f32.mrb[0].mxu0
    %v753 = vpop.f32.mrb[0].mxu0
    %v754 = vpop.f32.mrb[0].mxu0
    %755 = vdwg.mxu0
    %v756 = vadd.f32 %v660, %v751
    %v757 = vxor.u32 %v756, 2147483648
    %v758 = vmul.f32 %v757, 1.442695
    %v759 = vpow.pop %v758
    %v760 = vadd.f32 %v759, 1.0
    %v761 = vrcp.pop %v760
    %v762 = vmul.f32 1.0, %v761
    %v763 = vtanh.pop %v756
    %765 = vrot.lane.b32.xlu0 %v693, 32
    %v766 = vpop.permute.xlu0 %765
    %v768 = vmul.f32 %v762, %v766
    %770 = vrot.lane.b32.xlu0 %v763, 64
    %v771 = vpop.permute.xlu0 %770
    %v773 = vmul.f32 %v762, %v771
    %775 = vrot.lane.b32.xlu0 %v773, 32
    %v776 = vpop.permute.xlu0 %775
    %v778 = vadd.f32 %v768, %v776
    %v779 = vtanh.pop %v778
    %781 = vrot.lane.b32.xlu0 %v779, 64
    %v782 = vpop.permute.xlu0 %781
    %v784 = vmul.f32 %v762, %v782
    %v785 = vpack.c.bf16 %v784, %v784
    %s786 = scalar_lea.vmem %s3, 16
    %v787 = vld [vmem:[%s786] sm:$0xf]
    %v788 = vld [vmem:[%s786 + $0x4] sm:$0xf]
    %v789 = vld [vmem:[%s786 + $0x8] sm:$0xf]
    %v790 = vld [vmem:[%s786 + $0xc] sm:$0xf]
    %s791 = scalar_lea.vmem [#allocation2], 1
    %v792 = vld [vmem:[%s791] sm:$0x1]
    %v794 = vlaneseq
    %v795 = vshrl.u32 %v794, 7
    %v796 = vsub.s32 0, %v795
    %v797 = vrot.slane %v792, %v796
    %800 = vrot.lane.b32.xlu0 %v785, 32
    %v801 = vpop.permute.xlu0 %800
    %v806 = vunpack.c.l.b16 %v787
    %v807 = vunpack.c.l.b16 %v788
    %v808 = vunpack.c.l.b16 %v789
    %v809 = vunpack.c.l.b16 %v790
    %v810 = vpack.c.b16 %v807, %v806
    %v811 = vpack.c.b16 %v809, %v808
    %v815 = vsel %vm98, %v801, 0
    %817 = vmatprep.subr.bf16.mxu0 0
    %818 = vmatpush1.bf16.msra.mxu0 %v810
    %819 = vmatprep.subr.bf16.mxu0 0
    %820 = vmatpush1.bf16.msra.mxu0 %v811
    %821 = vmatprep.subr.bf16.mxu0 0
    %822 = vmatpush1.bf16.msra.mxu0 0
    %823 = vmatprep.subr.bf16.mxu0 0
    %824 = vmatpush1.bf16.msra.mxu0 0
    %825 = vmatprep.subr.bf16.mxu0 0
    %826 = vmatpush1.bf16.msra.mxu0 0
    %827 = vmatprep.subr.bf16.mxu0 0
    %828 = vmatpush1.bf16.msra.mxu0 0
    %829 = vmatprep.subr.bf16.mxu0 0
    %830 = vmatpush1.bf16.msra.mxu0 0
    %831 = vmatprep.subr.bf16.mxu0 0
    %832 = vmatpush1.bf16.msra.mxu0 0
    %833 = vmatprep.subr.bf16.mxu0 0
    %834 = vmatpush1.bf16.msra.mxu0 0
    %835 = vmatprep.subr.bf16.mxu0 0
    %836 = vmatpush1.bf16.msra.mxu0 0
    %837 = vmatprep.subr.bf16.mxu0 0
    %838 = vmatpush1.bf16.msra.mxu0 0
    %839 = vmatprep.subr.bf16.mxu0 0
    %840 = vmatpush1.bf16.msra.mxu0 0
    %841 = vmatprep.subr.bf16.mxu0 0
    %842 = vmatpush1.bf16.msra.mxu0 0
    %843 = vmatprep.subr.bf16.mxu0 0
    %844 = vmatpush1.bf16.msra.mxu0 0
    %845 = vmatprep.subr.bf16.mxu0 0
    %846 = vmatpush1.bf16.msra.mxu0 0
    %847 = vmatprep.subr.bf16.mxu0 0
    %848 = vmatpush1.bf16.msra.mxu0 0
    %849 = vmatprep.mubr.bf16.mxu0 0
    %850 = vmatmul.mubr.bf16.gmra.mrb[0].mxu0 %v815
    %v851 = vpop.f32.mrb[0].mxu0
    %v852 = vadd.f32 %v797, %v851
    %v853 = vpop.f32.mrb[0].mxu0
    %v854 = vpop.f32.mrb[0].mxu0
    %v855 = vpop.f32.mrb[0].mxu0
    %856 = vdwg.mxu0
    %v857 = vpack.c.bf16 %v692, %v692
    %s858 = scalar_lea.vmem %s4, 16
    %v859 = vld [vmem:[%s858] sm:$0xf]
    %v860 = vld [vmem:[%s858 + $0x4] sm:$0xf]
    %v861 = vld [vmem:[%s858 + $0x8] sm:$0xf]
    %v862 = vld [vmem:[%s858 + $0xc] sm:$0xf]
    %v867 = vunpack.c.l.b16 %v859
    %v868 = vunpack.c.l.b16 %v860
    %v869 = vunpack.c.l.b16 %v861
    %v870 = vunpack.c.l.b16 %v862
    %v871 = vpack.c.b16 %v868, %v867
    %v872 = vpack.c.b16 %v870, %v869
    %v876 = vsel %vm98, %v857, 0
    %878 = vmatprep.subr.bf16.mxu0 0
    %879 = vmatpush1.bf16.msra.mxu0 %v871
    %880 = vmatprep.subr.bf16.mxu0 0
    %881 = vmatpush1.bf16.msra.mxu0 %v872
    %882 = vmatprep.subr.bf16.mxu0 0
    %883 = vmatpush1.bf16.msra.mxu0 0
    %884 = vmatprep.subr.bf16.mxu0 0
    %885 = vmatpush1.bf16.msra.mxu0 0
    %886 = vmatprep.subr.bf16.mxu0 0
    %887 = vmatpush1.bf16.msra.mxu0 0
    %888 = vmatprep.subr.bf16.mxu0 0
    %889 = vmatpush1.bf16.msra.mxu0 0
    %890 = vmatprep.subr.bf16.mxu0 0
    %891 = vmatpush1.bf16.msra.mxu0 0
    %892 = vmatprep.subr.bf16.mxu0 0
    %893 = vmatpush1.bf16.msra.mxu0 0
    %894 = vmatprep.subr.bf16.mxu0 0
    %895 = vmatpush1.bf16.msra.mxu0 0
    %896 = vmatprep.subr.bf16.mxu0 0
    %897 = vmatpush1.bf16.msra.mxu0 0
    %898 = vmatprep.subr.bf16.mxu0 0
    %899 = vmatpush1.bf16.msra.mxu0 0
    %900 = vmatprep.subr.bf16.mxu0 0
    %901 = vmatpush1.bf16.msra.mxu0 0
    %902 = vmatprep.subr.bf16.mxu0 0
    %903 = vmatpush1.bf16.msra.mxu0 0
    %904 = vmatprep.subr.bf16.mxu0 0
    %905 = vmatpush1.bf16.msra.mxu0 0
    %906 = vmatprep.subr.bf16.mxu0 0
    %907 = vmatpush1.bf16.msra.mxu0 0
    %908 = vmatprep.subr.bf16.mxu0 0
    %909 = vmatpush1.bf16.msra.mxu0 0
    %910 = vmatprep.mubr.bf16.mxu0 0
    %911 = vmatmul.mubr.bf16.gmra.mrb[0].mxu0 %v876
    %v912 = vpop.f32.mrb[0].mxu0
    %v913 = vadd.f32 0.0, %v912
    %v914 = vpop.f32.mrb[0].mxu0
    %v915 = vpop.f32.mrb[0].mxu0
    %v916 = vpop.f32.mrb[0].mxu0
    %917 = vdwg.mxu0
    %v918 = vadd.f32 %v852, %v913
    %v919 = vxor.u32 %v918, 2147483648
    %v920 = vmul.f32 %v919, 1.442695
    %v921 = vpow.pop %v920
    %v922 = vadd.f32 %v921, 1.0
    %v923 = vrcp.pop %v922
    %v924 = vmul.f32 1.0, %v923
    %v925 = vtanh.pop %v918
    %927 = vrot.lane.b32.xlu0 %v695, 32
    %v928 = vpop.permute.xlu0 %927
    %v930 = vmul.f32 %v924, %v928
    %932 = vrot.lane.b32.xlu0 %v925, 64
    %v933 = vpop.permute.xlu0 %932
    %v935 = vmul.f32 %v924, %v933
    %937 = vrot.lane.b32.xlu0 %v935, 32
    %v938 = vpop.permute.xlu0 %937
    %v940 = vadd.f32 %v930, %v938
    %v941 = vtanh.pop %v940
    %943 = vrot.lane.b32.xlu0 %v941, 64
    %v944 = vpop.permute.xlu0 %943
    %v946 = vmul.f32 %v924, %v944
    %947 = vmatprep.subr.bf16.mxu0 0
    %948 = vmatpush1.bf16.msra.mxu0 %v709
    %949 = vmatprep.subr.bf16.mxu0 0
    %950 = vmatpush1.bf16.msra.mxu0 %v710
    %951 = vmatprep.subr.bf16.mxu0 0
    %952 = vmatpush1.bf16.msra.mxu0 0
    %953 = vmatprep.subr.bf16.mxu0 0
    %954 = vmatpush1.bf16.msra.mxu0 0
    %955 = vmatprep.subr.bf16.mxu0 0
    %956 = vmatpush1.bf16.msra.mxu0 0
    %957 = vmatprep.subr.bf16.mxu0 0
    %958 = vmatpush1.bf16.msra.mxu0 0
    %959 = vmatprep.subr.bf16.mxu0 0
    %960 = vmatpush1.bf16.msra.mxu0 0
    %961 = vmatprep.subr.bf16.mxu0 0
    %962 = vmatpush1.bf16.msra.mxu0 0
    %963 = vmatprep.subr.bf16.mxu0 0
    %964 = vmatpush1.bf16.msra.mxu0 0
    %965 = vmatprep.subr.bf16.mxu0 0
    %966 = vmatpush1.bf16.msra.mxu0 0
    %967 = vmatprep.subr.bf16.mxu0 0
    %968 = vmatpush1.bf16.msra.mxu0 0
    %969 = vmatprep.subr.bf16.mxu0 0
    %970 = vmatpush1.bf16.msra.mxu0 0
    %971 = vmatprep.subr.bf16.mxu0 0
    %972 = vmatpush1.bf16.msra.mxu0 0
    %973 = vmatprep.subr.bf16.mxu0 0
    %974 = vmatpush1.bf16.msra.mxu0 0
    %975 = vmatprep.subr.bf16.mxu0 0
    %976 = vmatpush1.bf16.msra.mxu0 0
    %977 = vmatprep.subr.bf16.mxu0 0
    %978 = vmatpush1.bf16.msra.mxu0 0
    %979 = vmatprep.mubr.bf16.mxu0 0
    %980 = vmatmul.mubr.bf16.gmra.mrb[0].mxu0 %v815
    %v981 = vpop.f32.mrb[0].mxu0
    %v982 = vadd.f32 0.0, %v981
    %v983 = vpop.f32.mrb[0].mxu0
    %v984 = vpop.f32.mrb[0].mxu0
    %v985 = vpop.f32.mrb[0].mxu0
    %986 = vdwg.mxu0
    %v987 = vadd.f32 %v663, %v982
    %v988 = vxor.u32 %v987, 2147483648
    %v989 = vmul.f32 %v988, 1.442695
    %v990 = vpow.pop %v989
    %v991 = vadd.f32 %v990, 1.0
    %v992 = vrcp.pop %v991
    %v993 = vmul.f32 1.0, %v992
    %v994 = vtanh.pop %v987
    %v995 = vmul.f32 %v993, %v778
    %997 = vrot.lane.b32.xlu0 %v994, 64
    %v998 = vpop.permute.xlu0 %997
    %v1000 = vmul.f32 %v993, %v998
    %1002 = vrot.lane.b32.xlu0 %v1000, 32
    %v1003 = vpop.permute.xlu0 %1002
    %v1005 = vadd.f32 %v995, %v1003
    %v1006 = vtanh.pop %v1005
    %1008 = vrot.lane.b32.xlu0 %v1006, 64
    %v1009 = vpop.permute.xlu0 %1008
    %v1011 = vmul.f32 %v993, %v1009
    %v1012 = vpack.c.bf16 %v1011, %v1011
    %1014 = vrot.lane.b32.xlu0 %v1012, 32
    %v1015 = vpop.permute.xlu0 %1014
    %v1017 = vsel %vm98, %v1015, 0
    %1019 = vmatprep.subr.bf16.mxu0 0
    %1020 = vmatpush1.bf16.msra.mxu0 %v810
    %1021 = vmatprep.subr.bf16.mxu0 0
    %1022 = vmatpush1.bf16.msra.mxu0 %v811
    %1023 = vmatprep.subr.bf16.mxu0 0
    %1024 = vmatpush1.bf16.msra.mxu0 0
    %1025 = vmatprep.subr.bf16.mxu0 0
    %1026 = vmatpush1.bf16.msra.mxu0 0
    %1027 = vmatprep.subr.bf16.mxu0 0
    %1028 = vmatpush1.bf16.msra.mxu0 0
    %1029 = vmatprep.subr.bf16.mxu0 0
    %1030 = vmatpush1.bf16.msra.mxu0 0
    %1031 = vmatprep.subr.bf16.mxu0 0
    %1032 = vmatpush1.bf16.msra.mxu0 0
    %1033 = vmatprep.subr.bf16.mxu0 0
    %1034 = vmatpush1.bf16.msra.mxu0 0
    %1035 = vmatprep.subr.bf16.mxu0 0
    %1036 = vmatpush1.bf16.msra.mxu0 0
    %1037 = vmatprep.subr.bf16.mxu0 0
    %1038 = vmatpush1.bf16.msra.mxu0 0
    %1039 = vmatprep.subr.bf16.mxu0 0
    %1040 = vmatpush1.bf16.msra.mxu0 0
    %1041 = vmatprep.subr.bf16.mxu0 0
    %1042 = vmatpush1.bf16.msra.mxu0 0
    %1043 = vmatprep.subr.bf16.mxu0 0
    %1044 = vmatpush1.bf16.msra.mxu0 0
    %1045 = vmatprep.subr.bf16.mxu0 0
    %1046 = vmatpush1.bf16.msra.mxu0 0
    %1047 = vmatprep.subr.bf16.mxu0 0
    %1048 = vmatpush1.bf16.msra.mxu0 0
    %1049 = vmatprep.subr.bf16.mxu0 0
    %1050 = vmatpush1.bf16.msra.mxu0 0
    %1051 = vmatprep.mubr.bf16.mxu0 0
    %1052 = vmatmul.mubr.bf16.gmra.mrb[0].mxu0 %v1017
    %v1053 = vpop.f32.mrb[0].mxu0
    %v1054 = vadd.f32 %v797, %v1053
    %v1055 = vpop.f32.mrb[0].mxu0
    %v1056 = vpop.f32.mrb[0].mxu0
    %v1057 = vpop.f32.mrb[0].mxu0
    %1058 = vdwg.mxu0
    %v1059 = vpack.c.bf16 %v946, %v946
    %1061 = vrot.lane.b32.xlu0 %v1059, 32
    %v1062 = vpop.permute.xlu0 %1061
    %v1064 = vsel %vm98, %v1062, 0
    %1066 = vmatprep.subr.bf16.mxu0 0
    %1067 = vmatpush1.bf16.msra.mxu0 %v871
    %1068 = vmatprep.subr.bf16.mxu0 0
    %1069 = vmatpush1.bf16.msra.mxu0 %v872
    %1070 = vmatprep.subr.bf16.mxu0 0
    %1071 = vmatpush1.bf16.msra.mxu0 0
    %1072 = vmatprep.subr.bf16.mxu0 0
    %1073 = vmatpush1.bf16.msra.mxu0 0
    %1074 = vmatprep.subr.bf16.mxu0 0
    %1075 = vmatpush1.bf16.msra.mxu0 0
    %1076 = vmatprep.subr.bf16.mxu0 0
    %1077 = vmatpush1.bf16.msra.mxu0 0
    %1078 = vmatprep.subr.bf16.mxu0 0
    %1079 = vmatpush1.bf16.msra.mxu0 0
    %1080 = vmatprep.subr.bf16.mxu0 0
    %1081 = vmatpush1.bf16.msra.mxu0 0
    %1082 = vmatprep.subr.bf16.mxu0 0
    %1083 = vmatpush1.bf16.msra.mxu0 0
    %1084 = vmatprep.subr.bf16.mxu0 0
    %1085 = vmatpush1.bf16.msra.mxu0 0
    %1086 = vmatprep.subr.bf16.mxu0 0
    %1087 = vmatpush1.bf16.msra.mxu0 0
    %1088 = vmatprep.subr.bf16.mxu0 0
    %1089 = vmatpush1.bf16.msra.mxu0 0
    %1090 = vmatprep.subr.bf16.mxu0 0
    %1091 = vmatpush1.bf16.msra.mxu0 0
    %1092 = vmatprep.subr.bf16.mxu0 0
    %1093 = vmatpush1.bf16.msra.mxu0 0
    %1094 = vmatprep.subr.bf16.mxu0 0
    %1095 = vmatpush1.bf16.msra.mxu0 0
    %1096 = vmatprep.subr.bf16.mxu0 0
    %1097 = vmatpush1.bf16.msra.mxu0 0
    %1098 = vmatprep.mubr.bf16.mxu0 0
    %1099 = vmatmul.mubr.bf16.gmra.mrb[0].mxu0 %v1064
    %v1100 = vpop.f32.mrb[0].mxu0
    %v1101 = vadd.f32 0.0, %v1100
    %v1102 = vpop.f32.mrb[0].mxu0
    %v1103 = vpop.f32.mrb[0].mxu0
    %v1104 = vpop.f32.mrb[0].mxu0
    %1105 = vdwg.mxu0
    %v1106 = vadd.f32 %v1054, %v1101
    %v1107 = vxor.u32 %v1106, 2147483648
    %v1108 = vmul.f32 %v1107, 1.442695
    %v1109 = vpow.pop %v1108
    %v1110 = vadd.f32 %v1109, 1.0
    %v1111 = vrcp.pop %v1110
    %v1112 = vmul.f32 1.0, %v1111
    %v1113 = vtanh.pop %v1106
    %v1114 = vmul.f32 %v1112, %v940
    %1116 = vrot.lane.b32.xlu0 %v1113, 64
    %v1117 = vpop.permute.xlu0 %1116
    %v1119 = vmul.f32 %v1112, %v1117
    %1121 = vrot.lane.b32.xlu0 %v1119, 32
    %v1122 = vpop.permute.xlu0 %1121
    %v1124 = vadd.f32 %v1114, %v1122
    %v1125 = vtanh.pop %v1124
    %1127 = vrot.lane.b32.xlu0 %v1125, 64
    %v1128 = vpop.permute.xlu0 %1127
    %v1130 = vmul.f32 %v1112, %v1128
    %1131 = vmatprep.subr.bf16.mxu0 0
    %1132 = vmatpush1.bf16.msra.mxu0 %v709
    %1133 = vmatprep.subr.bf16.mxu0 0
    %1134 = vmatpush1.bf16.msra.mxu0 %v710
    %1135 = vmatprep.subr.bf16.mxu0 0
    %1136 = vmatpush1.bf16.msra.mxu0 0
    %1137 = vmatprep.subr.bf16.mxu0 0
    %1138 = vmatpush1.bf16.msra.mxu0 0
    %1139 = vmatprep.subr.bf16.mxu0 0
    %1140 = vmatpush1.bf16.msra.mxu0 0
    %1141 = vmatprep.subr.bf16.mxu0 0
    %1142 = vmatpush1.bf16.msra.mxu0 0
    %1143 = vmatprep.subr.bf16.mxu0 0
    %1144 = vmatpush1.bf16.msra.mxu0 0
    %1145 = vmatprep.subr.bf16.mxu0 0
    %1146 = vmatpush1.bf16.msra.mxu0 0
    %1147 = vmatprep.subr.bf16.mxu0 0
    %1148 = vmatpush1.bf16.msra.mxu0 0
    %1149 = vmatprep.subr.bf16.mxu0 0
    %1150 = vmatpush1.bf16.msra.mxu0 0
    %1151 = vmatprep.subr.bf16.mxu0 0
    %1152 = vmatpush1.bf16.msra.mxu0 0
    %1153 = vmatprep.subr.bf16.mxu0 0
    %1154 = vmatpush1.bf16.msra.mxu0 0
    %1155 = vmatprep.subr.bf16.mxu0 0
    %1156 = vmatpush1.bf16.msra.mxu0 0
    %1157 = vmatprep.subr.bf16.mxu0 0
    %1158 = vmatpush1.bf16.msra.mxu0 0
    %1159 = vmatprep.subr.bf16.mxu0 0
    %1160 = vmatpush1.bf16.msra.mxu0 0
    %1161 = vmatprep.subr.bf16.mxu0 0
    %1162 = vmatpush1.bf16.msra.mxu0 0
    %1163 = vmatprep.mubr.bf16.mxu0 0
    %1164 = vmatmul.mubr.bf16.gmra.mrb[0].mxu0 %v1017
    %v1165 = vpop.f32.mrb[0].mxu0
    %v1166 = vadd.f32 0.0, %v1165
    %v1167 = vpop.f32.mrb[0].mxu0
    %v1168 = vpop.f32.mrb[0].mxu0
    %v1169 = vpop.f32.mrb[0].mxu0
    %1170 = vdwg.mxu0
    %v1171 = vadd.f32 %v668, %v1166
    %v1172 = vxor.u32 %v1171, 2147483648
    %v1173 = vmul.f32 %v1172, 1.442695
    %v1174 = vpow.pop %v1173
    %v1175 = vadd.f32 %v1174, 1.0
    %v1176 = vrcp.pop %v1175
    %v1177 = vmul.f32 1.0, %v1176
    %v1178 = vtanh.pop %v1171
    %v1179 = vmul.f32 %v1177, %v1005
    %1181 = vrot.lane.b32.xlu0 %v1178, 64
    %v1182 = vpop.permute.xlu0 %1181
    %v1184 = vmul.f32 %v1177, %v1182
    %1186 = vrot.lane.b32.xlu0 %v1184, 32
    %v1187 = vpop.permute.xlu0 %1186
    %v1189 = vadd.f32 %v1179, %v1187
    %v1190 = vtanh.pop %v1189
    %1192 = vrot.lane.b32.xlu0 %v1190, 64
    %v1193 = vpop.permute.xlu0 %1192
    %v1195 = vmul.f32 %v1177, %v1193
    %v1196 = vpack.c.bf16 %v1195, %v1195
    %1198 = vrot.lane.b32.xlu0 %v1196, 32
    %v1199 = vpop.permute.xlu0 %1198
    %v1201 = vsel %vm98, %v1199, 0
    %1203 = vmatprep.subr.bf16.mxu0 0
    %1204 = vmatpush1.bf16.msra.mxu0 %v810
    %1205 = vmatprep.subr.bf16.mxu0 0
    %1206 = vmatpush1.bf16.msra.mxu0 %v811
    %1207 = vmatprep.subr.bf16.mxu0 0
    %1208 = vmatpush1.bf16.msra.mxu0 0
    %1209 = vmatprep.subr.bf16.mxu0 0
    %1210 = vmatpush1.bf16.msra.mxu0 0
    %1211 = vmatprep.subr.bf16.mxu0 0
    %1212 = vmatpush1.bf16.msra.mxu0 0
    %1213 = vmatprep.subr.bf16.mxu0 0
    %1214 = vmatpush1.bf16.msra.mxu0 0
    %1215 = vmatprep.subr.bf16.mxu0 0
    %1216 = vmatpush1.bf16.msra.mxu0 0
    %1217 = vmatprep.subr.bf16.mxu0 0
    %1218 = vmatpush1.bf16.msra.mxu0 0
    %1219 = vmatprep.subr.bf16.mxu0 0
    %1220 = vmatpush1.bf16.msra.mxu0 0
    %1221 = vmatprep.subr.bf16.mxu0 0
    %1222 = vmatpush1.bf16.msra.mxu0 0
    %1223 = vmatprep.subr.bf16.mxu0 0
    %1224 = vmatpush1.bf16.msra.mxu0 0
    %1225 = vmatprep.subr.bf16.mxu0 0
    %1226 = vmatpush1.bf16.msra.mxu0 0
    %1227 = vmatprep.subr.bf16.mxu0 0
    %1228 = vmatpush1.bf16.msra.mxu0 0
    %1229 = vmatprep.subr.bf16.mxu0 0
    %1230 = vmatpush1.bf16.msra.mxu0 0
    %1231 = vmatprep.subr.bf16.mxu0 0
    %1232 = vmatpush1.bf16.msra.mxu0 0
    %1233 = vmatprep.subr.bf16.mxu0 0
    %1234 = vmatpush1.bf16.msra.mxu0 0
    %1235 = vmatprep.mubr.bf16.mxu0 0
    %1236 = vmatmul.mubr.bf16.gmra.mrb[0].mxu0 %v1201
    %v1237 = vpop.f32.mrb[0].mxu0
    %v1238 = vadd.f32 %v797, %v1237
    %v1239 = vpop.f32.mrb[0].mxu0
    %v1240 = vpop.f32.mrb[0].mxu0
    %v1241 = vpop.f32.mrb[0].mxu0
    %1242 = vdwg.mxu0
    %v1243 = vpack.c.bf16 %v1130, %v1130
    %1245 = vrot.lane.b32.xlu0 %v1243, 32
    %v1246 = vpop.permute.xlu0 %1245
    %v1248 = vsel %vm98, %v1246, 0
    %1250 = vmatprep.subr.bf16.mxu0 0
    %1251 = vmatpush1.bf16.msra.mxu0 %v871
    %1252 = vmatprep.subr.bf16.mxu0 0
    %1253 = vmatpush1.bf16.msra.mxu0 %v872
    %1254 = vmatprep.subr.bf16.mxu0 0
    %1255 = vmatpush1.bf16.msra.mxu0 0
    %1256 = vmatprep.subr.bf16.mxu0 0
    %1257 = vmatpush1.bf16.msra.mxu0 0
    %1258 = vmatprep.subr.bf16.mxu0 0
    %1259 = vmatpush1.bf16.msra.mxu0 0
    %1260 = vmatprep.subr.bf16.mxu0 0
    %1261 = vmatpush1.bf16.msra.mxu0 0
    %1262 = vmatprep.subr.bf16.mxu0 0
    %1263 = vmatpush1.bf16.msra.mxu0 0
    %1264 = vmatprep.subr.bf16.mxu0 0
    %1265 = vmatpush1.bf16.msra.mxu0 0
    %1266 = vmatprep.subr.bf16.mxu0 0
    %1267 = vmatpush1.bf16.msra.mxu0 0
    %1268 = vmatprep.subr.bf16.mxu0 0
    %1269 = vmatpush1.bf16.msra.mxu0 0
    %1270 = vmatprep.subr.bf16.mxu0 0
    %1271 = vmatpush1.bf16.msra.mxu0 0
    %1272 = vmatprep.subr.bf16.mxu0 0
    %1273 = vmatpush1.bf16.msra.mxu0 0
    %1274 = vmatprep.subr.bf16.mxu0 0
    %1275 = vmatpush1.bf16.msra.mxu0 0
    %1276 = vmatprep.subr.bf16.mxu0 0
    %1277 = vmatpush1.bf16.msra.mxu0 0
    %1278 = vmatprep.subr.bf16.mxu0 0
    %1279 = vmatpush1.bf16.msra.mxu0 0
    %1280 = vmatprep.subr.bf16.mxu0 0
    %1281 = vmatpush1.bf16.msra.mxu0 0
    %1282 = vmatprep.mubr.bf16.mxu0 0
    %1283 = vmatmul.mubr.bf16.gmra.mrb[0].mxu0 %v1248
    %v1284 = vpop.f32.mrb[0].mxu0
    %v1285 = vadd.f32 0.0, %v1284
    %v1286 = vpop.f32.mrb[0].mxu0
    %v1287 = vpop.f32.mrb[0].mxu0
    %v1288 = vpop.f32.mrb[0].mxu0
    %1289 = vdwg.mxu0
    %v1290 = vadd.f32 %v1238, %v1285
    %v1291 = vxor.u32 %v1290, 2147483648
    %v1292 = vmul.f32 %v1291, 1.442695
    %v1293 = vpow.pop %v1292
    %v1294 = vadd.f32 %v1293, 1.0
    %v1295 = vrcp.pop %v1294
    %v1296 = vmul.f32 1.0, %v1295
    %v1297 = vtanh.pop %v1290
    %v1298 = vmul.f32 %v1296, %v1124
    %1300 = vrot.lane.b32.xlu0 %v1297, 64
    %v1301 = vpop.permute.xlu0 %1300
    %v1303 = vmul.f32 %v1296, %v1301
    %1305 = vrot.lane.b32.xlu0 %v1303, 32
    %v1306 = vpop.permute.xlu0 %1305
    %v1308 = vadd.f32 %v1298, %v1306
    %v1309 = vtanh.pop %v1308
    %1311 = vrot.lane.b32.xlu0 %v1309, 64
    %v1312 = vpop.permute.xlu0 %1311
    %v1314 = vmul.f32 %v1296, %v1312
    %1315 = vmatprep.subr.bf16.mxu0 0
    %1316 = vmatpush1.bf16.msra.mxu0 %v709
    %1317 = vmatprep.subr.bf16.mxu0 0
    %1318 = vmatpush1.bf16.msra.mxu0 %v710
    %1319 = vmatprep.subr.bf16.mxu0 0
    %1320 = vmatpush1.bf16.msra.mxu0 0
    %1321 = vmatprep.subr.bf16.mxu0 0
    %1322 = vmatpush1.bf16.msra.mxu0 0
    %1323 = vmatprep.subr.bf16.mxu0 0
    %1324 = vmatpush1.bf16.msra.mxu0 0
    %1325 = vmatprep.subr.bf16.mxu0 0
    %1326 = vmatpush1.bf16.msra.mxu0 0
    %1327 = vmatprep.subr.bf16.mxu0 0
    %1328 = vmatpush1.bf16.msra.mxu0 0
    %1329 = vmatprep.subr.bf16.mxu0 0
    %1330 = vmatpush1.bf16.msra.mxu0 0
    %1331 = vmatprep.subr.bf16.mxu0 0
    %1332 = vmatpush1.bf16.msra.mxu0 0
    %1333 = vmatprep.subr.bf16.mxu0 0
    %1334 = vmatpush1.bf16.msra.mxu0 0
    %1335 = vmatprep.subr.bf16.mxu0 0
    %1336 = vmatpush1.bf16.msra.mxu0 0
    %1337 = vmatprep.subr.bf16.mxu0 0
    %1338 = vmatpush1.bf16.msra.mxu0 0
    %1339 = vmatprep.subr.bf16.mxu0 0
    %1340 = vmatpush1.bf16.msra.mxu0 0
    %1341 = vmatprep.subr.bf16.mxu0 0
    %1342 = vmatpush1.bf16.msra.mxu0 0
    %1343 = vmatprep.subr.bf16.mxu0 0
    %1344 = vmatpush1.bf16.msra.mxu0 0
    %1345 = vmatprep.subr.bf16.mxu0 0
    %1346 = vmatpush1.bf16.msra.mxu0 0
    %1347 = vmatprep.mubr.bf16.mxu0 0
    %1348 = vmatmul.mubr.bf16.gmra.mrb[0].mxu0 %v1201
    %v1349 = vpop.f32.mrb[0].mxu0
    %v1350 = vadd.f32 0.0, %v1349
    %v1351 = vpop.f32.mrb[0].mxu0
    %v1352 = vpop.f32.mrb[0].mxu0
    %v1353 = vpop.f32.mrb[0].mxu0
    %1354 = vdwg.mxu0
    %v1355 = vadd.f32 %v671, %v1350
    %v1356 = vxor.u32 %v1355, 2147483648
    %v1357 = vmul.f32 %v1356, 1.442695
    %v1358 = vpow.pop %v1357
    %v1359 = vadd.f32 %v1358, 1.0
    %v1360 = vrcp.pop %v1359
    %v1361 = vmul.f32 1.0, %v1360
    %v1362 = vtanh.pop %v1355
    %v1363 = vmul.f32 %v1361, %v1189
    %1365 = vrot.lane.b32.xlu0 %v1362, 64
    %v1366 = vpop.permute.xlu0 %1365
    %v1368 = vmul.f32 %v1361, %v1366
    %1370 = vrot.lane.b32.xlu0 %v1368, 32
    %v1371 = vpop.permute.xlu0 %1370
    %v1373 = vadd.f32 %v1363, %v1371
    %v1374 = vtanh.pop %v1373
    %1376 = vrot.lane.b32.xlu0 %v1374, 64
    %v1377 = vpop.permute.xlu0 %1376
    %v1379 = vmul.f32 %v1361, %v1377
    %v1380 = vpack.c.bf16 %v1379, %v1379
    %1382 = vrot.lane.b32.xlu0 %v1380, 32
    %v1383 = vpop.permute.xlu0 %1382
    %v1385 = vsel %vm98, %v1383, 0
    %1387 = vmatprep.subr.bf16.mxu0 0
    %1388 = vmatpush1.bf16.msra.mxu0 %v810
    %1389 = vmatprep.subr.bf16.mxu0 0
    %1390 = vmatpush1.bf16.msra.mxu0 %v811
    %1391 = vmatprep.subr.bf16.mxu0 0
    %1392 = vmatpush1.bf16.msra.mxu0 0
    %1393 = vmatprep.subr.bf16.mxu0 0
    %1394 = vmatpush1.bf16.msra.mxu0 0
    %1395 = vmatprep.subr.bf16.mxu0 0
    %1396 = vmatpush1.bf16.msra.mxu0 0
    %1397 = vmatprep.subr.bf16.mxu0 0
    %1398 = vmatpush1.bf16.msra.mxu0 0
    %1399 = vmatprep.subr.bf16.mxu0 0
    %1400 = vmatpush1.bf16.msra.mxu0 0
    %1401 = vmatprep.subr.bf16.mxu0 0
    %1402 = vmatpush1.bf16.msra.mxu0 0
    %1403 = vmatprep.subr.bf16.mxu0 0
    %1404 = vmatpush1.bf16.msra.mxu0 0
    %1405 = vmatprep.subr.bf16.mxu0 0
    %1406 = vmatpush1.bf16.msra.mxu0 0
    %1407 = vmatprep.subr.bf16.mxu0 0
    %1408 = vmatpush1.bf16.msra.mxu0 0
    %1409 = vmatprep.subr.bf16.mxu0 0
    %1410 = vmatpush1.bf16.msra.mxu0 0
    %1411 = vmatprep.subr.bf16.mxu0 0
    %1412 = vmatpush1.bf16.msra.mxu0 0
    %1413 = vmatprep.subr.bf16.mxu0 0
    %1414 = vmatpush1.bf16.msra.mxu0 0
    %1415 = vmatprep.subr.bf16.mxu0 0
    %1416 = vmatpush1.bf16.msra.mxu0 0
    %1417 = vmatprep.subr.bf16.mxu0 0
    %1418 = vmatpush1.bf16.msra.mxu0 0
    %1419 = vmatprep.mubr.bf16.mxu0 0
    %1420 = vmatmul.mubr.bf16.gmra.mrb[0].mxu0 %v1385
    %v1421 = vpop.f32.mrb[0].mxu0
    %v1422 = vadd.f32 %v797, %v1421
    %v1423 = vpop.f32.mrb[0].mxu0
    %v1424 = vpop.f32.mrb[0].mxu0
    %v1425 = vpop.f32.mrb[0].mxu0
    %1426 = vdwg.mxu0
    %v1427 = vpack.c.bf16 %v1314, %v1314
    %1429 = vrot.lane.b32.xlu0 %v1427, 32
    %v1430 = vpop.permute.xlu0 %1429
    %v1432 = vsel %vm98, %v1430, 0
    %1434 = vmatprep.subr.bf16.mxu0 0
    %1435 = vmatpush1.bf16.msra.mxu0 %v871
    %1436 = vmatprep.subr.bf16.mxu0 0
    %1437 = vmatpush1.bf16.msra.mxu0 %v872
    %1438 = vmatprep.subr.bf16.mxu0 0
    %1439 = vmatpush1.bf16.msra.mxu0 0
    %1440 = vmatprep.subr.bf16.mxu0 0
    %1441 = vmatpush1.bf16.msra.mxu0 0
    %1442 = vmatprep.subr.bf16.mxu0 0
    %1443 = vmatpush1.bf16.msra.mxu0 0
    %1444 = vmatprep.subr.bf16.mxu0 0
    %1445 = vmatpush1.bf16.msra.mxu0 0
    %1446 = vmatprep.subr.bf16.mxu0 0
    %1447 = vmatpush1.bf16.msra.mxu0 0
    %1448 = vmatprep.subr.bf16.mxu0 0
    %1449 = vmatpush1.bf16.msra.mxu0 0
    %1450 = vmatprep.subr.bf16.mxu0 0
    %1451 = vmatpush1.bf16.msra.mxu0 0
    %1452 = vmatprep.subr.bf16.mxu0 0
    %1453 = vmatpush1.bf16.msra.mxu0 0
    %1454 = vmatprep.subr.bf16.mxu0 0
    %1455 = vmatpush1.bf16.msra.mxu0 0
    %1456 = vmatprep.subr.bf16.mxu0 0
    %1457 = vmatpush1.bf16.msra.mxu0 0
    %1458 = vmatprep.subr.bf16.mxu0 0
    %1459 = vmatpush1.bf16.msra.mxu0 0
    %1460 = vmatprep.subr.bf16.mxu0 0
    %1461 = vmatpush1.bf16.msra.mxu0 0
    %1462 = vmatprep.subr.bf16.mxu0 0
    %1463 = vmatpush1.bf16.msra.mxu0 0
    %1464 = vmatprep.subr.bf16.mxu0 0
    %1465 = vmatpush1.bf16.msra.mxu0 0
    %1466 = vmatprep.mubr.bf16.mxu0 0
    %1467 = vmatmul.mubr.bf16.gmra.mrb[0].mxu0 %v1432
    %v1468 = vpop.f32.mrb[0].mxu0
    %v1469 = vadd.f32 0.0, %v1468
    %v1470 = vpop.f32.mrb[0].mxu0
    %v1471 = vpop.f32.mrb[0].mxu0
    %v1472 = vpop.f32.mrb[0].mxu0
    %1473 = vdwg.mxu0
    %v1474 = vadd.f32 %v1422, %v1469
    %v1475 = vxor.u32 %v1474, 2147483648
    %v1476 = vmul.f32 %v1475, 1.442695
    %v1477 = vpow.pop %v1476
    %v1478 = vadd.f32 %v1477, 1.0
    %v1479 = vrcp.pop %v1478
    %v1480 = vmul.f32 1.0, %v1479
    %v1481 = vtanh.pop %v1474
    %v1482 = vmul.f32 %v1480, %v1308
    %1484 = vrot.lane.b32.xlu0 %v1481, 64
    %v1485 = vpop.permute.xlu0 %1484
    %v1487 = vmul.f32 %v1480, %v1485
    %1489 = vrot.lane.b32.xlu0 %v1487, 32
    %v1490 = vpop.permute.xlu0 %1489
    %v1492 = vadd.f32 %v1482, %v1490
    %v1493 = vtanh.pop %v1492
    %1495 = vrot.lane.b32.xlu0 %v1493, 64
    %v1496 = vpop.permute.xlu0 %1495
    %v1498 = vmul.f32 %v1480, %v1496
    %1499 = vmatprep.subr.bf16.mxu0 0
    %1500 = vmatpush1.bf16.msra.mxu0 %v709
    %1501 = vmatprep.subr.bf16.mxu0 0
    %1502 = vmatpush1.bf16.msra.mxu0 %v710
    %1503 = vmatprep.subr.bf16.mxu0 0
    %1504 = vmatpush1.bf16.msra.mxu0 0
    %1505 = vmatprep.subr.bf16.mxu0 0
    %1506 = vmatpush1.bf16.msra.mxu0 0
    %1507 = vmatprep.subr.bf16.mxu0 0
    %1508 = vmatpush1.bf16.msra.mxu0 0
    %1509 = vmatprep.subr.bf16.mxu0 0
    %1510 = vmatpush1.bf16.msra.mxu0 0
    %1511 = vmatprep.subr.bf16.mxu0 0
    %1512 = vmatpush1.bf16.msra.mxu0 0
    %1513 = vmatprep.subr.bf16.mxu0 0
    %1514 = vmatpush1.bf16.msra.mxu0 0
    %1515 = vmatprep.subr.bf16.mxu0 0
    %1516 = vmatpush1.bf16.msra.mxu0 0
    %1517 = vmatprep.subr.bf16.mxu0 0
    %1518 = vmatpush1.bf16.msra.mxu0 0
    %1519 = vmatprep.subr.bf16.mxu0 0
    %1520 = vmatpush1.bf16.msra.mxu0 0
    %1521 = vmatprep.subr.bf16.mxu0 0
    %1522 = vmatpush1.bf16.msra.mxu0 0
    %1523 = vmatprep.subr.bf16.mxu0 0
    %1524 = vmatpush1.bf16.msra.mxu0 0
    %1525 = vmatprep.subr.bf16.mxu0 0
    %1526 = vmatpush1.bf16.msra.mxu0 0
    %1527 = vmatprep.subr.bf16.mxu0 0
    %1528 = vmatpush1.bf16.msra.mxu0 0
    %1529 = vmatprep.subr.bf16.mxu0 0
    %1530 = vmatpush1.bf16.msra.mxu0 0
    %1531 = vmatprep.mubr.bf16.mxu0 0
    %1532 = vmatmul.mubr.bf16.gmra.mrb[0].mxu0 %v1385
    %v1533 = vpop.f32.mrb[0].mxu0
    %v1534 = vadd.f32 0.0, %v1533
    %v1535 = vpop.f32.mrb[0].mxu0
    %v1536 = vpop.f32.mrb[0].mxu0
    %v1537 = vpop.f32.mrb[0].mxu0
    %1538 = vdwg.mxu0
    %v1539 = vadd.f32 %v676, %v1534
    %v1540 = vxor.u32 %v1539, 2147483648
    %v1541 = vmul.f32 %v1540, 1.442695
    %v1542 = vpow.pop %v1541
    %v1543 = vadd.f32 %v1542, 1.0
    %v1544 = vrcp.pop %v1543
    %v1545 = vmul.f32 1.0, %v1544
    %v1546 = vtanh.pop %v1539
    %v1547 = vmul.f32 %v1545, %v1373
    %1549 = vrot.lane.b32.xlu0 %v1546, 64
    %v1550 = vpop.permute.xlu0 %1549
    %v1552 = vmul.f32 %v1545, %v1550
    %1554 = vrot.lane.b32.xlu0 %v1552, 32
    %v1555 = vpop.permute.xlu0 %1554
    %v1557 = vadd.f32 %v1547, %v1555
    %v1558 = vtanh.pop %v1557
    %1560 = vrot.lane.b32.xlu0 %v1558, 64
    %v1561 = vpop.permute.xlu0 %1560
    %v1563 = vmul.f32 %v1545, %v1561
    %v1564 = vpack.c.bf16 %v1563, %v1563
    %1566 = vrot.lane.b32.xlu0 %v1564, 32
    %v1567 = vpop.permute.xlu0 %1566
    %v1569 = vsel %vm98, %v1567, 0
    %1571 = vmatprep.subr.bf16.mxu0 0
    %1572 = vmatpush1.bf16.msra.mxu0 %v810
    %1573 = vmatprep.subr.bf16.mxu0 0
    %1574 = vmatpush1.bf16.msra.mxu0 %v811
    %1575 = vmatprep.subr.bf16.mxu0 0
    %1576 = vmatpush1.bf16.msra.mxu0 0
    %1577 = vmatprep.subr.bf16.mxu0 0
    %1578 = vmatpush1.bf16.msra.mxu0 0
    %1579 = vmatprep.subr.bf16.mxu0 0
    %1580 = vmatpush1.bf16.msra.mxu0 0
    %1581 = vmatprep.subr.bf16.mxu0 0
    %1582 = vmatpush1.bf16.msra.mxu0 0
    %1583 = vmatprep.subr.bf16.mxu0 0
    %1584 = vmatpush1.bf16.msra.mxu0 0
    %1585 = vmatprep.subr.bf16.mxu0 0
    %1586 = vmatpush1.bf16.msra.mxu0 0
    %1587 = vmatprep.subr.bf16.mxu0 0
    %1588 = vmatpush1.bf16.msra.mxu0 0
    %1589 = vmatprep.subr.bf16.mxu0 0
    %1590 = vmatpush1.bf16.msra.mxu0 0
    %1591 = vmatprep.subr.bf16.mxu0 0
    %1592 = vmatpush1.bf16.msra.mxu0 0
    %1593 = vmatprep.subr.bf16.mxu0 0
    %1594 = vmatpush1.bf16.msra.mxu0 0
    %1595 = vmatprep.subr.bf16.mxu0 0
    %1596 = vmatpush1.bf16.msra.mxu0 0
    %1597 = vmatprep.subr.bf16.mxu0 0
    %1598 = vmatpush1.bf16.msra.mxu0 0
    %1599 = vmatprep.subr.bf16.mxu0 0
    %1600 = vmatpush1.bf16.msra.mxu0 0
    %1601 = vmatprep.subr.bf16.mxu0 0
    %1602 = vmatpush1.bf16.msra.mxu0 0
    %1603 = vmatprep.mubr.bf16.mxu0 0
    %1604 = vmatmul.mubr.bf16.gmra.mrb[0].mxu0 %v1569
    %v1605 = vpop.f32.mrb[0].mxu0
    %v1606 = vadd.f32 %v797, %v1605
    %v1607 = vpop.f32.mrb[0].mxu0
    %v1608 = vpop.f32.mrb[0].mxu0
    %v1609 = vpop.f32.mrb[0].mxu0
    %1610 = vdwg.mxu0
    %v1611 = vpack.c.bf16 %v1498, %v1498
    %1613 = vrot.lane.b32.xlu0 %v1611, 32
    %v1614 = vpop.permute.xlu0 %1613
    %v1616 = vsel %vm98, %v1614, 0
    %1618 = vmatprep.subr.bf16.mxu0 0
    %1619 = vmatpush1.bf16.msra.mxu0 %v871
    %1620 = vmatprep.subr.bf16.mxu0 0
    %1621 = vmatpush1.bf16.msra.mxu0 %v872
    %1622 = vmatprep.subr.bf16.mxu0 0
    %1623 = vmatpush1.bf16.msra.mxu0 0
    %1624 = vmatprep.subr.bf16.mxu0 0
    %1625 = vmatpush1.bf16.msra.mxu0 0
    %1626 = vmatprep.subr.bf16.mxu0 0
    %1627 = vmatpush1.bf16.msra.mxu0 0
    %1628 = vmatprep.subr.bf16.mxu0 0
    %1629 = vmatpush1.bf16.msra.mxu0 0
    %1630 = vmatprep.subr.bf16.mxu0 0
    %1631 = vmatpush1.bf16.msra.mxu0 0
    %1632 = vmatprep.subr.bf16.mxu0 0
    %1633 = vmatpush1.bf16.msra.mxu0 0
    %1634 = vmatprep.subr.bf16.mxu0 0
    %1635 = vmatpush1.bf16.msra.mxu0 0
    %1636 = vmatprep.subr.bf16.mxu0 0
    %1637 = vmatpush1.bf16.msra.mxu0 0
    %1638 = vmatprep.subr.bf16.mxu0 0
    %1639 = vmatpush1.bf16.msra.mxu0 0
    %1640 = vmatprep.subr.bf16.mxu0 0
    %1641 = vmatpush1.bf16.msra.mxu0 0
    %1642 = vmatprep.subr.bf16.mxu0 0
    %1643 = vmatpush1.bf16.msra.mxu0 0
    %1644 = vmatprep.subr.bf16.mxu0 0
    %1645 = vmatpush1.bf16.msra.mxu0 0
    %1646 = vmatprep.subr.bf16.mxu0 0
    %1647 = vmatpush1.bf16.msra.mxu0 0
    %1648 = vmatprep.subr.bf16.mxu0 0
    %1649 = vmatpush1.bf16.msra.mxu0 0
    %1650 = vmatprep.mubr.bf16.mxu0 0
    %1651 = vmatmul.mubr.bf16.gmra.mrb[0].mxu0 %v1616
    %v1652 = vpop.f32.mrb[0].mxu0
    %v1653 = vadd.f32 0.0, %v1652
    %v1654 = vpop.f32.mrb[0].mxu0
    %v1655 = vpop.f32.mrb[0].mxu0
    %v1656 = vpop.f32.mrb[0].mxu0
    %1657 = vdwg.mxu0
    %v1658 = vadd.f32 %v1606, %v1653
    %v1659 = vxor.u32 %v1658, 2147483648
    %v1660 = vmul.f32 %v1659, 1.442695
    %v1661 = vpow.pop %v1660
    %v1662 = vadd.f32 %v1661, 1.0
    %v1663 = vrcp.pop %v1662
    %v1664 = vmul.f32 1.0, %v1663
    %v1665 = vtanh.pop %v1658
    %v1666 = vmul.f32 %v1664, %v1492
    %1668 = vrot.lane.b32.xlu0 %v1665, 64
    %v1669 = vpop.permute.xlu0 %1668
    %v1671 = vmul.f32 %v1664, %v1669
    %1673 = vrot.lane.b32.xlu0 %v1671, 32
    %v1674 = vpop.permute.xlu0 %1673
    %v1676 = vadd.f32 %v1666, %v1674
    %v1677 = vtanh.pop %v1676
    %1679 = vrot.lane.b32.xlu0 %v1677, 64
    %v1680 = vpop.permute.xlu0 %1679
    %v1682 = vmul.f32 %v1664, %v1680
    %1683 = vmatprep.subr.bf16.mxu0 0
    %1684 = vmatpush1.bf16.msra.mxu0 %v709
    %1685 = vmatprep.subr.bf16.mxu0 0
    %1686 = vmatpush1.bf16.msra.mxu0 %v710
    %1687 = vmatprep.subr.bf16.mxu0 0
    %1688 = vmatpush1.bf16.msra.mxu0 0
    %1689 = vmatprep.subr.bf16.mxu0 0
    %1690 = vmatpush1.bf16.msra.mxu0 0
    %1691 = vmatprep.subr.bf16.mxu0 0
    %1692 = vmatpush1.bf16.msra.mxu0 0
    %1693 = vmatprep.subr.bf16.mxu0 0
    %1694 = vmatpush1.bf16.msra.mxu0 0
    %1695 = vmatprep.subr.bf16.mxu0 0
    %1696 = vmatpush1.bf16.msra.mxu0 0
    %1697 = vmatprep.subr.bf16.mxu0 0
    %1698 = vmatpush1.bf16.msra.mxu0 0
    %1699 = vmatprep.subr.bf16.mxu0 0
    %1700 = vmatpush1.bf16.msra.mxu0 0
    %1701 = vmatprep.subr.bf16.mxu0 0
    %1702 = vmatpush1.bf16.msra.mxu0 0
    %1703 = vmatprep.subr.bf16.mxu0 0
    %1704 = vmatpush1.bf16.msra.mxu0 0
    %1705 = vmatprep.subr.bf16.mxu0 0
    %1706 = vmatpush1.bf16.msra.mxu0 0
    %1707 = vmatprep.subr.bf16.mxu0 0
    %1708 = vmatpush1.bf16.msra.mxu0 0
    %1709 = vmatprep.subr.bf16.mxu0 0
    %1710 = vmatpush1.bf16.msra.mxu0 0
    %1711 = vmatprep.subr.bf16.mxu0 0
    %1712 = vmatpush1.bf16.msra.mxu0 0
    %1713 = vmatprep.subr.bf16.mxu0 0
    %1714 = vmatpush1.bf16.msra.mxu0 0
    %1715 = vmatprep.mubr.bf16.mxu0 0
    %1716 = vmatmul.mubr.bf16.gmra.mrb[0].mxu0 %v1569
    %v1717 = vpop.f32.mrb[0].mxu0
    %v1718 = vadd.f32 0.0, %v1717
    %v1719 = vpop.f32.mrb[0].mxu0
    %v1720 = vpop.f32.mrb[0].mxu0
    %v1721 = vpop.f32.mrb[0].mxu0
    %1722 = vdwg.mxu0
    %v1723 = vadd.f32 %v679, %v1718
    %v1724 = vxor.u32 %v1723, 2147483648
    %v1725 = vmul.f32 %v1724, 1.442695
    %v1726 = vpow.pop %v1725
    %v1727 = vadd.f32 %v1726, 1.0
    %v1728 = vrcp.pop %v1727
    %v1729 = vmul.f32 1.0, %v1728
    %v1730 = vtanh.pop %v1723
    %v1731 = vmul.f32 %v1729, %v1557
    %1733 = vrot.lane.b32.xlu0 %v1730, 64
    %v1734 = vpop.permute.xlu0 %1733
    %v1736 = vmul.f32 %v1729, %v1734
    %1738 = vrot.lane.b32.xlu0 %v1736, 32
    %v1739 = vpop.permute.xlu0 %1738
    %v1741 = vadd.f32 %v1731, %v1739
    %v1742 = vtanh.pop %v1741
    %1744 = vrot.lane.b32.xlu0 %v1742, 64
    %v1745 = vpop.permute.xlu0 %1744
    %v1747 = vmul.f32 %v1729, %v1745
    %v1748 = vpack.c.bf16 %v1747, %v1747
    %1750 = vrot.lane.b32.xlu0 %v1748, 32
    %v1751 = vpop.permute.xlu0 %1750
    %v1753 = vsel %vm98, %v1751, 0
    %1755 = vmatprep.subr.bf16.mxu0 0
    %1756 = vmatpush1.bf16.msra.mxu0 %v810
    %1757 = vmatprep.subr.bf16.mxu0 0
    %1758 = vmatpush1.bf16.msra.mxu0 %v811
    %1759 = vmatprep.subr.bf16.mxu0 0
    %1760 = vmatpush1.bf16.msra.mxu0 0
    %1761 = vmatprep.subr.bf16.mxu0 0
    %1762 = vmatpush1.bf16.msra.mxu0 0
    %1763 = vmatprep.subr.bf16.mxu0 0
    %1764 = vmatpush1.bf16.msra.mxu0 0
    %1765 = vmatprep.subr.bf16.mxu0 0
    %1766 = vmatpush1.bf16.msra.mxu0 0
    %1767 = vmatprep.subr.bf16.mxu0 0
    %1768 = vmatpush1.bf16.msra.mxu0 0
    %1769 = vmatprep.subr.bf16.mxu0 0
    %1770 = vmatpush1.bf16.msra.mxu0 0
    %1771 = vmatprep.subr.bf16.mxu0 0
    %1772 = vmatpush1.bf16.msra.mxu0 0
    %1773 = vmatprep.subr.bf16.mxu0 0
    %1774 = vmatpush1.bf16.msra.mxu0 0
    %1775 = vmatprep.subr.bf16.mxu0 0
    %1776 = vmatpush1.bf16.msra.mxu0 0
    %1777 = vmatprep.subr.bf16.mxu0 0
    %1778 = vmatpush1.bf16.msra.mxu0 0
    %1779 = vmatprep.subr.bf16.mxu0 0
    %1780 = vmatpush1.bf16.msra.mxu0 0
    %1781 = vmatprep.subr.bf16.mxu0 0
    %1782 = vmatpush1.bf16.msra.mxu0 0
    %1783 = vmatprep.subr.bf16.mxu0 0
    %1784 = vmatpush1.bf16.msra.mxu0 0
    %1785 = vmatprep.subr.bf16.mxu0 0
    %1786 = vmatpush1.bf16.msra.mxu0 0
    %1787 = vmatprep.mubr.bf16.mxu0 0
    %1788 = vmatmul.mubr.bf16.gmra.mrb[0].mxu0 %v1753
    %v1789 = vpop.f32.mrb[0].mxu0
    %v1790 = vadd.f32 %v797, %v1789
    %v1791 = vpop.f32.mrb[0].mxu0
    %v1792 = vpop.f32.mrb[0].mxu0
    %v1793 = vpop.f32.mrb[0].mxu0
    %1794 = vdwg.mxu0
    %v1795 = vpack.c.bf16 %v1682, %v1682
    %1797 = vrot.lane.b32.xlu0 %v1795, 32
    %v1798 = vpop.permute.xlu0 %1797
    %v1800 = vsel %vm98, %v1798, 0
    %1802 = vmatprep.subr.bf16.mxu0 0
    %1803 = vmatpush1.bf16.msra.mxu0 %v871
    %1804 = vmatprep.subr.bf16.mxu0 0
    %1805 = vmatpush1.bf16.msra.mxu0 %v872
    %1806 = vmatprep.subr.bf16.mxu0 0
    %1807 = vmatpush1.bf16.msra.mxu0 0
    %1808 = vmatprep.subr.bf16.mxu0 0
    %1809 = vmatpush1.bf16.msra.mxu0 0
    %1810 = vmatprep.subr.bf16.mxu0 0
    %1811 = vmatpush1.bf16.msra.mxu0 0
    %1812 = vmatprep.subr.bf16.mxu0 0
    %1813 = vmatpush1.bf16.msra.mxu0 0
    %1814 = vmatprep.subr.bf16.mxu0 0
    %1815 = vmatpush1.bf16.msra.mxu0 0
    %1816 = vmatprep.subr.bf16.mxu0 0
    %1817 = vmatpush1.bf16.msra.mxu0 0
    %1818 = vmatprep.subr.bf16.mxu0 0
    %1819 = vmatpush1.bf16.msra.mxu0 0
    %1820 = vmatprep.subr.bf16.mxu0 0
    %1821 = vmatpush1.bf16.msra.mxu0 0
    %1822 = vmatprep.subr.bf16.mxu0 0
    %1823 = vmatpush1.bf16.msra.mxu0 0
    %1824 = vmatprep.subr.bf16.mxu0 0
    %1825 = vmatpush1.bf16.msra.mxu0 0
    %1826 = vmatprep.subr.bf16.mxu0 0
    %1827 = vmatpush1.bf16.msra.mxu0 0
    %1828 = vmatprep.subr.bf16.mxu0 0
    %1829 = vmatpush1.bf16.msra.mxu0 0
    %1830 = vmatprep.subr.bf16.mxu0 0
    %1831 = vmatpush1.bf16.msra.mxu0 0
    %1832 = vmatprep.subr.bf16.mxu0 0
    %1833 = vmatpush1.bf16.msra.mxu0 0
    %1834 = vmatprep.mubr.bf16.mxu0 0
    %1835 = vmatmul.mubr.bf16.gmra.mrb[0].mxu0 %v1800
    %v1836 = vpop.f32.mrb[0].mxu0
    %v1837 = vadd.f32 0.0, %v1836
    %v1838 = vpop.f32.mrb[0].mxu0
    %v1839 = vpop.f32.mrb[0].mxu0
    %v1840 = vpop.f32.mrb[0].mxu0
    %1841 = vdwg.mxu0
    %v1842 = vadd.f32 %v1790, %v1837
    %v1843 = vxor.u32 %v1842, 2147483648
    %v1844 = vmul.f32 %v1843, 1.442695
    %v1845 = vpow.pop %v1844
    %v1846 = vadd.f32 %v1845, 1.0
    %v1847 = vrcp.pop %v1846
    %v1848 = vmul.f32 1.0, %v1847
    %v1849 = vtanh.pop %v1842
    %v1850 = vmul.f32 %v1848, %v1676
    %1852 = vrot.lane.b32.xlu0 %v1849, 64
    %v1853 = vpop.permute.xlu0 %1852
    %v1855 = vmul.f32 %v1848, %v1853
    %1857 = vrot.lane.b32.xlu0 %v1855, 32
    %v1858 = vpop.permute.xlu0 %1857
    %v1860 = vadd.f32 %v1850, %v1858
    %v1861 = vtanh.pop %v1860
    %1863 = vrot.lane.b32.xlu0 %v1861, 64
    %v1864 = vpop.permute.xlu0 %1863
    %v1866 = vmul.f32 %v1848, %v1864
    %1867 = vmatprep.subr.bf16.mxu0 0
    %1868 = vmatpush1.bf16.msra.mxu0 %v709
    %1869 = vmatprep.subr.bf16.mxu0 0
    %1870 = vmatpush1.bf16.msra.mxu0 %v710
    %1871 = vmatprep.subr.bf16.mxu0 0
    %1872 = vmatpush1.bf16.msra.mxu0 0
    %1873 = vmatprep.subr.bf16.mxu0 0
    %1874 = vmatpush1.bf16.msra.mxu0 0
    %1875 = vmatprep.subr.bf16.mxu0 0
    %1876 = vmatpush1.bf16.msra.mxu0 0
    %1877 = vmatprep.subr.bf16.mxu0 0
    %1878 = vmatpush1.bf16.msra.mxu0 0
    %1879 = vmatprep.subr.bf16.mxu0 0
    %1880 = vmatpush1.bf16.msra.mxu0 0
    %1881 = vmatprep.subr.bf16.mxu0 0
    %1882 = vmatpush1.bf16.msra.mxu0 0
    %1883 = vmatprep.subr.bf16.mxu0 0
    %1884 = vmatpush1.bf16.msra.mxu0 0
    %1885 = vmatprep.subr.bf16.mxu0 0
    %1886 = vmatpush1.bf16.msra.mxu0 0
    %1887 = vmatprep.subr.bf16.mxu0 0
    %1888 = vmatpush1.bf16.msra.mxu0 0
    %1889 = vmatprep.subr.bf16.mxu0 0
    %1890 = vmatpush1.bf16.msra.mxu0 0
    %1891 = vmatprep.subr.bf16.mxu0 0
    %1892 = vmatpush1.bf16.msra.mxu0 0
    %1893 = vmatprep.subr.bf16.mxu0 0
    %1894 = vmatpush1.bf16.msra.mxu0 0
    %1895 = vmatprep.subr.bf16.mxu0 0
    %1896 = vmatpush1.bf16.msra.mxu0 0
    %1897 = vmatprep.subr.bf16.mxu0 0
    %1898 = vmatpush1.bf16.msra.mxu0 0
    %1899 = vmatprep.mubr.bf16.mxu0 0
    %1900 = vmatmul.mubr.bf16.gmra.mrb[0].mxu0 %v1753
    %v1901 = vpop.f32.mrb[0].mxu0
    %v1902 = vadd.f32 0.0, %v1901
    %v1903 = vpop.f32.mrb[0].mxu0
    %v1904 = vpop.f32.mrb[0].mxu0
    %v1905 = vpop.f32.mrb[0].mxu0
    %1906 = vdwg.mxu0
    %v1907 = vadd.f32 %v684, %v1902
    %v1908 = vxor.u32 %v1907, 2147483648
    %v1909 = vmul.f32 %v1908, 1.442695
    %v1910 = vpow.pop %v1909
    %v1911 = vadd.f32 %v1910, 1.0
    %v1912 = vrcp.pop %v1911
    %v1913 = vmul.f32 1.0, %v1912
    %v1914 = vtanh.pop %v1907
    %v1915 = vmul.f32 %v1913, %v1741
    %1917 = vrot.lane.b32.xlu0 %v1914, 64
    %v1918 = vpop.permute.xlu0 %1917
    %v1920 = vmul.f32 %v1913, %v1918
    %1922 = vrot.lane.b32.xlu0 %v1920, 32
    %v1923 = vpop.permute.xlu0 %1922
    %v1925 = vadd.f32 %v1915, %v1923
    %v1926 = vtanh.pop %v1925
    %1928 = vrot.lane.b32.xlu0 %v1926, 64
    %v1929 = vpop.permute.xlu0 %1928
    %v1931 = vmul.f32 %v1913, %v1929
    %v1932 = vpack.c.bf16 %v1931, %v1931
    %1934 = vrot.lane.b32.xlu0 %v1932, 32
    %v1935 = vpop.permute.xlu0 %1934
    %v1937 = vsel %vm98, %v1935, 0
    %1939 = vmatprep.subr.bf16.mxu0 0
    %1940 = vmatpush1.bf16.msra.mxu0 %v810
    %1941 = vmatprep.subr.bf16.mxu0 0
    %1942 = vmatpush1.bf16.msra.mxu0 %v811
    %1943 = vmatprep.subr.bf16.mxu0 0
    %1944 = vmatpush1.bf16.msra.mxu0 0
    %1945 = vmatprep.subr.bf16.mxu0 0
    %1946 = vmatpush1.bf16.msra.mxu0 0
    %1947 = vmatprep.subr.bf16.mxu0 0
    %1948 = vmatpush1.bf16.msra.mxu0 0
    %1949 = vmatprep.subr.bf16.mxu0 0
    %1950 = vmatpush1.bf16.msra.mxu0 0
    %1951 = vmatprep.subr.bf16.mxu0 0
    %1952 = vmatpush1.bf16.msra.mxu0 0
    %1953 = vmatprep.subr.bf16.mxu0 0
    %1954 = vmatpush1.bf16.msra.mxu0 0
    %1955 = vmatprep.subr.bf16.mxu0 0
    %1956 = vmatpush1.bf16.msra.mxu0 0
    %1957 = vmatprep.subr.bf16.mxu0 0
    %1958 = vmatpush1.bf16.msra.mxu0 0
    %1959 = vmatprep.subr.bf16.mxu0 0
    %1960 = vmatpush1.bf16.msra.mxu0 0
    %1961 = vmatprep.subr.bf16.mxu0 0
    %1962 = vmatpush1.bf16.msra.mxu0 0
    %1963 = vmatprep.subr.bf16.mxu0 0
    %1964 = vmatpush1.bf16.msra.mxu0 0
    %1965 = vmatprep.subr.bf16.mxu0 0
    %1966 = vmatpush1.bf16.msra.mxu0 0
    %1967 = vmatprep.subr.bf16.mxu0 0
    %1968 = vmatpush1.bf16.msra.mxu0 0
    %1969 = vmatprep.subr.bf16.mxu0 0
    %1970 = vmatpush1.bf16.msra.mxu0 0
    %1971 = vmatprep.mubr.bf16.mxu0 0
    %1972 = vmatmul.mubr.bf16.gmra.mrb[0].mxu0 %v1937
    %v1973 = vpop.f32.mrb[0].mxu0
    %v1974 = vadd.f32 %v797, %v1973
    %v1975 = vpop.f32.mrb[0].mxu0
    %v1976 = vpop.f32.mrb[0].mxu0
    %v1977 = vpop.f32.mrb[0].mxu0
    %1978 = vdwg.mxu0
    %v1979 = vpack.c.bf16 %v1866, %v1866
    %1981 = vrot.lane.b32.xlu0 %v1979, 32
    %v1982 = vpop.permute.xlu0 %1981
    %v1984 = vsel %vm98, %v1982, 0
    %1986 = vmatprep.subr.bf16.mxu0 0
    %1987 = vmatpush1.bf16.msra.mxu0 %v871
    %1988 = vmatprep.subr.bf16.mxu0 0
    %1989 = vmatpush1.bf16.msra.mxu0 %v872
    %1990 = vmatprep.subr.bf16.mxu0 0
    %1991 = vmatpush1.bf16.msra.mxu0 0
    %1992 = vmatprep.subr.bf16.mxu0 0
    %1993 = vmatpush1.bf16.msra.mxu0 0
    %1994 = vmatprep.subr.bf16.mxu0 0
    %1995 = vmatpush1.bf16.msra.mxu0 0
    %1996 = vmatprep.subr.bf16.mxu0 0
    %1997 = vmatpush1.bf16.msra.mxu0 0
    %1998 = vmatprep.subr.bf16.mxu0 0
    %1999 = vmatpush1.bf16.msra.mxu0 0
    %2000 = vmatprep.subr.bf16.mxu0 0
    %2001 = vmatpush1.bf16.msra.mxu0 0
    %2002 = vmatprep.subr.bf16.mxu0 0
    %2003 = vmatpush1.bf16.msra.mxu0 0
    %2004 = vmatprep.subr.bf16.mxu0 0
    %2005 = vmatpush1.bf16.msra.mxu0 0
    %2006 = vmatprep.subr.bf16.mxu0 0
    %2007 = vmatpush1.bf16.msra.mxu0 0
    %2008 = vmatprep.subr.bf16.mxu0 0
    %2009 = vmatpush1.bf16.msra.mxu0 0
    %2010 = vmatprep.subr.bf16.mxu0 0
    %2011 = vmatpush1.bf16.msra.mxu0 0
    %2012 = vmatprep.subr.bf16.mxu0 0
    %2013 = vmatpush1.bf16.msra.mxu0 0
    %2014 = vmatprep.subr.bf16.mxu0 0
    %2015 = vmatpush1.bf16.msra.mxu0 0
    %2016 = vmatprep.subr.bf16.mxu0 0
    %2017 = vmatpush1.bf16.msra.mxu0 0
    %2018 = vmatprep.mubr.bf16.mxu0 0
    %2019 = vmatmul.mubr.bf16.gmra.mrb[0].mxu0 %v1984
    %v2020 = vpop.f32.mrb[0].mxu0
    %v2021 = vadd.f32 0.0, %v2020
    %v2022 = vpop.f32.mrb[0].mxu0
    %v2023 = vpop.f32.mrb[0].mxu0
    %v2024 = vpop.f32.mrb[0].mxu0
    %2025 = vdwg.mxu0
    %v2026 = vadd.f32 %v1974, %v2021
    %v2027 = vxor.u32 %v2026, 2147483648
    %v2028 = vmul.f32 %v2027, 1.442695
    %v2029 = vpow.pop %v2028
    %v2030 = vadd.f32 %v2029, 1.0
    %v2031 = vrcp.pop %v2030
    %v2032 = vmul.f32 1.0, %v2031
    %v2033 = vtanh.pop %v2026
    %v2034 = vmul.f32 %v2032, %v1860
    %2036 = vrot.lane.b32.xlu0 %v2033, 64
    %v2037 = vpop.permute.xlu0 %2036
    %v2039 = vmul.f32 %v2032, %v2037
    %2041 = vrot.lane.b32.xlu0 %v2039, 32
    %v2042 = vpop.permute.xlu0 %2041
    %v2044 = vadd.f32 %v2034, %v2042
    %v2045 = vtanh.pop %v2044
    %2047 = vrot.lane.b32.xlu0 %v2045, 64
    %v2048 = vpop.permute.xlu0 %2047
    %v2050 = vmul.f32 %v2032, %v2048
    %2051 = vmatprep.subr.bf16.mxu0 0
    %2052 = vmatpush1.bf16.msra.mxu0 %v709
    %2053 = vmatprep.subr.bf16.mxu0 0
    %2054 = vmatpush1.bf16.msra.mxu0 %v710
    %2055 = vmatprep.subr.bf16.mxu0 0
    %2056 = vmatpush1.bf16.msra.mxu0 0
    %2057 = vmatprep.subr.bf16.mxu0 0
    %2058 = vmatpush1.bf16.msra.mxu0 0
    %2059 = vmatprep.subr.bf16.mxu0 0
    %2060 = vmatpush1.bf16.msra.mxu0 0
    %2061 = vmatprep.subr.bf16.mxu0 0
    %2062 = vmatpush1.bf16.msra.mxu0 0
    %2063 = vmatprep.subr.bf16.mxu0 0
    %2064 = vmatpush1.bf16.msra.mxu0 0
    %2065 = vmatprep.subr.bf16.mxu0 0
    %2066 = vmatpush1.bf16.msra.mxu0 0
    %2067 = vmatprep.subr.bf16.mxu0 0
    %2068 = vmatpush1.bf16.msra.mxu0 0
    %2069 = vmatprep.subr.bf16.mxu0 0
    %2070 = vmatpush1.bf16.msra.mxu0 0
    %2071 = vmatprep.subr.bf16.mxu0 0
    %2072 = vmatpush1.bf16.msra.mxu0 0
    %2073 = vmatprep.subr.bf16.mxu0 0
    %2074 = vmatpush1.bf16.msra.mxu0 0
    %2075 = vmatprep.subr.bf16.mxu0 0
    %2076 = vmatpush1.bf16.msra.mxu0 0
    %2077 = vmatprep.subr.bf16.mxu0 0
    %2078 = vmatpush1.bf16.msra.mxu0 0
    %2079 = vmatprep.subr.bf16.mxu0 0
    %2080 = vmatpush1.bf16.msra.mxu0 0
    %2081 = vmatprep.subr.bf16.mxu0 0
    %2082 = vmatpush1.bf16.msra.mxu0 0
    %2083 = vmatprep.mubr.bf16.mxu0 0
    %2084 = vmatmul.mubr.bf16.gmra.mrb[0].mxu0 %v1937
    %v2085 = vpop.f32.mrb[0].mxu0
    %v2086 = vadd.f32 0.0, %v2085
    %v2087 = vpop.f32.mrb[0].mxu0
    %v2088 = vpop.f32.mrb[0].mxu0
    %v2089 = vpop.f32.mrb[0].mxu0
    %2090 = vdwg.mxu0
    %v2091 = vadd.f32 %v687, %v2086
    %v2092 = vxor.u32 %v2091, 2147483648
    %v2093 = vmul.f32 %v2092, 1.442695
    %v2094 = vpow.pop %v2093
    %v2095 = vadd.f32 %v2094, 1.0
    %v2096 = vrcp.pop %v2095
    %v2097 = vmul.f32 1.0, %v2096
    %v2098 = vtanh.pop %v2091
    %v2099 = vmul.f32 %v2097, %v1925
    %2101 = vrot.lane.b32.xlu0 %v2098, 64
    %v2102 = vpop.permute.xlu0 %2101
    %v2104 = vmul.f32 %v2097, %v2102
    %2106 = vrot.lane.b32.xlu0 %v2104, 32
    %v2107 = vpop.permute.xlu0 %2106
    %v2109 = vadd.f32 %v2099, %v2107
    %v2110 = vtanh.pop %v2109
    %2112 = vrot.lane.b32.xlu0 %v2110, 64
    %v2113 = vpop.permute.xlu0 %2112
    %v2115 = vmul.f32 %v2097, %v2113
    %v2116 = vpack.c.bf16 %v2115, %v2115
    %2118 = vrot.lane.b32.xlu0 %v2116, 32
    %v2119 = vpop.permute.xlu0 %2118
    %v2121 = vsel %vm98, %v2119, 0
    %2123 = vmatprep.subr.bf16.mxu0 0
    %2124 = vmatpush1.bf16.msra.mxu0 %v810
    %2125 = vmatprep.subr.bf16.mxu0 0
    %2126 = vmatpush1.bf16.msra.mxu0 %v811
    %2127 = vmatprep.subr.bf16.mxu0 0
    %2128 = vmatpush1.bf16.msra.mxu0 0
    %2129 = vmatprep.subr.bf16.mxu0 0
    %2130 = vmatpush1.bf16.msra.mxu0 0
    %2131 = vmatprep.subr.bf16.mxu0 0
    %2132 = vmatpush1.bf16.msra.mxu0 0
    %2133 = vmatprep.subr.bf16.mxu0 0
    %2134 = vmatpush1.bf16.msra.mxu0 0
    %2135 = vmatprep.subr.bf16.mxu0 0
    %2136 = vmatpush1.bf16.msra.mxu0 0
    %2137 = vmatprep.subr.bf16.mxu0 0
    %2138 = vmatpush1.bf16.msra.mxu0 0
    %2139 = vmatprep.subr.bf16.mxu0 0
    %2140 = vmatpush1.bf16.msra.mxu0 0
    %2141 = vmatprep.subr.bf16.mxu0 0
    %2142 = vmatpush1.bf16.msra.mxu0 0
    %2143 = vmatprep.subr.bf16.mxu0 0
    %2144 = vmatpush1.bf16.msra.mxu0 0
    %2145 = vmatprep.subr.bf16.mxu0 0
    %2146 = vmatpush1.bf16.msra.mxu0 0
    %2147 = vmatprep.subr.bf16.mxu0 0
    %2148 = vmatpush1.bf16.msra.mxu0 0
    %2149 = vmatprep.subr.bf16.mxu0 0
    %2150 = vmatpush1.bf16.msra.mxu0 0
    %2151 = vmatprep.subr.bf16.mxu0 0
    %2152 = vmatpush1.bf16.msra.mxu0 0
    %2153 = vmatprep.subr.bf16.mxu0 0
    %2154 = vmatpush1.bf16.msra.mxu0 0
    %2155 = vmatprep.mubr.bf16.mxu0 0
    %2156 = vmatmul.mubr.bf16.gmra.mrb[0].mxu0 %v2121
    %v2157 = vpop.f32.mrb[0].mxu0
    %v2158 = vadd.f32 %v797, %v2157
    %v2159 = vpop.f32.mrb[0].mxu0
    %v2160 = vpop.f32.mrb[0].mxu0
    %v2161 = vpop.f32.mrb[0].mxu0
    %2162 = vdwg.mxu0
    %v2163 = vpack.c.bf16 %v2050, %v2050
    %2165 = vrot.lane.b32.xlu0 %v2163, 32
    %v2166 = vpop.permute.xlu0 %2165
    %v2168 = vsel %vm98, %v2166, 0
    %2170 = vmatprep.subr.bf16.mxu0 0
    %2171 = vmatpush1.bf16.msra.mxu0 %v871
    %2172 = vmatprep.subr.bf16.mxu0 0
    %2173 = vmatpush1.bf16.msra.mxu0 %v872
    %2174 = vmatprep.subr.bf16.mxu0 0
    %2175 = vmatpush1.bf16.msra.mxu0 0
    %2176 = vmatprep.subr.bf16.mxu0 0
    %2177 = vmatpush1.bf16.msra.mxu0 0
    %2178 = vmatprep.subr.bf16.mxu0 0
    %2179 = vmatpush1.bf16.msra.mxu0 0
    %2180 = vmatprep.subr.bf16.mxu0 0
    %2181 = vmatpush1.bf16.msra.mxu0 0
    %2182 = vmatprep.subr.bf16.mxu0 0
    %2183 = vmatpush1.bf16.msra.mxu0 0
    %2184 = vmatprep.subr.bf16.mxu0 0
    %2185 = vmatpush1.bf16.msra.mxu0 0
    %2186 = vmatprep.subr.bf16.mxu0 0
    %2187 = vmatpush1.bf16.msra.mxu0 0
    %2188 = vmatprep.subr.bf16.mxu0 0
    %2189 = vmatpush1.bf16.msra.mxu0 0
    %2190 = vmatprep.subr.bf16.mxu0 0
    %2191 = vmatpush1.bf16.msra.mxu0 0
    %2192 = vmatprep.subr.bf16.mxu0 0
    %2193 = vmatpush1.bf16.msra.mxu0 0
    %2194 = vmatprep.subr.bf16.mxu0 0
    %2195 = vmatpush1.bf16.msra.mxu0 0
    %2196 = vmatprep.subr.bf16.mxu0 0
    %2197 = vmatpush1.bf16.msra.mxu0 0
    %2198 = vmatprep.subr.bf16.mxu0 0
    %2199 = vmatpush1.bf16.msra.mxu0 0
    %2200 = vmatprep.subr.bf16.mxu0 0
    %2201 = vmatpush1.bf16.msra.mxu0 0
    %2202 = vmatprep.mubr.bf16.mxu0 0
    %2203 = vmatmul.mubr.bf16.gmra.mrb[0].mxu0 %v2168
    %v2204 = vpop.f32.mrb[0].mxu0
    %v2205 = vadd.f32 0.0, %v2204
    %v2206 = vpop.f32.mrb[0].mxu0
    %v2207 = vpop.f32.mrb[0].mxu0
    %v2208 = vpop.f32.mrb[0].mxu0
    %2209 = vdwg.mxu0
    %v2210 = vadd.f32 %v2158, %v2205
    %v2211 = vxor.u32 %v2210, 2147483648
    %v2212 = vmul.f32 %v2211, 1.442695
    %v2213 = vpow.pop %v2212
    %v2214 = vadd.f32 %v2213, 1.0
    %v2215 = vrcp.pop %v2214
    %v2216 = vmul.f32 1.0, %v2215
    %v2217 = vtanh.pop %v2210
    %v2218 = vmul.f32 %v2216, %v2044
    %2220 = vrot.lane.b32.xlu0 %v2217, 64
    %v2221 = vpop.permute.xlu0 %2220
    %v2223 = vmul.f32 %v2216, %v2221
    %2225 = vrot.lane.b32.xlu0 %v2223, 32
    %v2226 = vpop.permute.xlu0 %2225
    %v2228 = vadd.f32 %v2218, %v2226
    %v2229 = vtanh.pop %v2228
    %2231 = vrot.lane.b32.xlu0 %v2229, 64
    %v2232 = vpop.permute.xlu0 %2231
    %v2234 = vmul.f32 %v2216, %v2232
    %2236 = vrot.lane.b32.xlu0 %v2115, 32
    %v2237 = vpop.permute.xlu0 %2236
    %vm2239 = vcmask 254976
    %2240 = vst.msk [vmem:[#allocation7] sm:$0x3] %vm2239, %v2237
    %2242 = vrot.lane.b32.xlu0 %v2109, 96
    %v2243 = vpop.permute.xlu0 %2242
    %2245 = vst.msk [vmem:[#allocation8] sm:$0x3] %vm2239, %v2243
    %2247 = vrot.lane.b32.xlu0 %v2234, 32
    %v2248 = vpop.permute.xlu0 %2247
    %s2250 = scalar_lea.vmem [#allocation7], 2
    %2251 = vst.msk [vmem:[%s2250] sm:$0x3] %vm2239, %v2248
    %2253 = vrot.lane.b32.xlu0 %v2228, 96
    %v2254 = vpop.permute.xlu0 %2253
    %s2256 = scalar_lea.vmem [#allocation8], 2
    %2257 = vst.msk [vmem:[%s2256] sm:$0x3] %vm2239, %v2254
    %vm2258 = vcmask 253952
    %2259 = vst.msk [vmem:[#allocation10] sm:$0x1] %vm2258, %v2254
    // Predicated region
    $region42: #{tpu_custom_call.1} parent=1 // pred_check
      _
    $region43: #{tpu_custom_call.1} parent=1 // pred_check_branch
      %2261 = sbr.rel (0) target = $region45
    $region44: #{tpu_custom_call.1} parent=1 // pred_region
      %s2263 = ssub.s32 64, 64
      %2264 = vsyncadd [#allocation4], %s2263
      %s2265 = sshll.u32 [#allocation7], 4
      %s2266 = int_to_ptr.vmem [resolvable:$true] %s2265
      %2271 = dma.vmem_to_hbm [thread:$0]  %s2266, 64, %s8, [#allocation4], 32, 32, 2
    $region45: #{tpu_custom_call.1} parent=1 // pred_fallthru
      _
    // Predicated region
    $region46: #{tpu_custom_call.1} parent=1 // pred_check
      _
    $region47: #{tpu_custom_call.1} parent=1 // pred_check_branch
      %2273 = sbr.rel (0) target = $region49
    $region48: #{tpu_custom_call.1} parent=1 // pred_region
      %s2275 = ssub.s32 64, 64
      %2276 = vsyncadd [#allocation9], %s2275
      %s2277 = sshll.u32 [#allocation8], 4
      %s2278 = int_to_ptr.vmem [resolvable:$true] %s2277
      %2283 = dma.vmem_to_hbm [thread:$0]  %s2278, 64, %s9, [#allocation9], 32, 32, 2
    $region49: #{tpu_custom_call.1} parent=1 // pred_fallthru
      _
    // Predicated region
    $region50: #{tpu_custom_call.1} parent=1 // pred_check
      _
    $region51: #{tpu_custom_call.1} parent=1 // pred_check_branch
      %2285 = sbr.rel (0) target = $region53
    $region52: #{tpu_custom_call.1} parent=1 // pred_region
      %s2287 = ssub.s32 16, 16
      %2288 = vsyncadd [#allocation9], %s2287
      %s2290 = sshll.u32 [#allocation10], 4
      %s2291 = int_to_ptr.vmem [resolvable:$true] %s2290
      %2293 = dma.vmem_to_hbm [thread:$0]  %s2291, 16, %s10, [#allocation9]
    $region53: #{tpu_custom_call.1} parent=1 // pred_fallthru
      _
    // Predicated region
    $region54: #{tpu_custom_call.1} parent=1 // pred_check
      _
    $region55: #{tpu_custom_call.1} parent=1 // pred_check_branch
      %2295 = sbr.rel (0) target = $region57
    $region56: #{tpu_custom_call.1} parent=1 // pred_region
      %2296 = dma.done [#allocation4], 64
    $region57: #{tpu_custom_call.1} parent=1 // pred_fallthru
      _
    // Predicated region
    $region58: #{tpu_custom_call.1} parent=1 // pred_check
      _
    $region59: #{tpu_custom_call.1} parent=1 // pred_check_branch
      %2298 = sbr.rel (0) target = $region61
    $region60: #{tpu_custom_call.1} parent=1 // pred_region
      %2299 = dma.done [#allocation9], 64
    $region61: #{tpu_custom_call.1} parent=1 // pred_fallthru
      _
    // Predicated region
    $region62: #{tpu_custom_call.1} parent=1 // pred_check
      _
    $region63: #{tpu_custom_call.1} parent=1 // pred_check_branch
      %2301 = sbr.rel (0) target = $region65
    $region64: #{tpu_custom_call.1} parent=1 // pred_region
      %2302 = dma.done [#allocation9], 16
    $region65: #{tpu_custom_call.1} parent=1 // pred_fallthru
      _
    %2303 = vsyncpa [#allocation3], 1
    %2304 = vsyncpa [#allocation6], 1
    %2305 = vsyncpa [#allocation4], 1
    %2306 = vsyncpa [#allocation9], 1

</llo_original>
